<compile_context>
chip_gen: v7x
topology: tpu7x:2x2x1
jax: 0.10.0
libtpu: 0.0.40
codegen_flags: <defaults>
</compile_context>

<pallas_src>
import functools
import numpy as np
import jax
import jax.numpy as jnp
from jax.experimental import pallas as pl
from jax.experimental.pallas import tpu as pltpu

# Matmul input dtype.  float32 keeps parity with the PyTorch reference at these tiny,
# launch-bound shapes.  Flip to jnp.bfloat16 on v6e/v7x when scaling E/F up (MXU is
# native bf16 there); accumulation stays f32 and all LayerNorm/softmax/elementwise
# math below stays f32 (important on v5e, whose VPU/EUP have no bf16).
MATMUL_DTYPE = jnp.float32


def _mm(a, b):
    """MXU matmul with f32 accumulation (optionally bf16 inputs)."""
    return jnp.dot(a.astype(MATMUL_DTYPE), b.astype(MATMUL_DTYPE),
                   preferred_element_type=jnp.float32)


# ----------------------------------------------------------------------------
# The single fused Pallas kernel
# ----------------------------------------------------------------------------
def _bert_kernel(*refs, nlayers, nheads, eps, n_head_layers, has_tanh,
                 use_affine, use_pe):
    """Whole BERT forward for one (S*B, ·) slab.

    Ref order: x, [affine_w], [pe_rows], mask,
               wqkv, bqkv, wo, bo, ln1_g, ln1_b, w1, b1, w2, b2, ln2_g, ln2_b,
               (head_w, head_b) * n_head_layers, out.
    Encoder weights are stacked along a leading (nlayers,) axis and sliced with a
    static index inside the unrolled layer loop.
    """
    o_ref = refs[-1]
    refs = refs[:-1]
    idx = 0

    # ---- stem: affine projection (Linear, bias=False in reference) + PE add ----
    x = refs[idx][...].astype(jnp.float32); idx += 1            # (M, Din)
    if use_affine:
        x = _mm(x, refs[idx][...]); idx += 1                    # (M, E)
    if use_pe:
        x = x + refs[idx][...]; idx += 1                        # + PE rows (M, E)
    mask = refs[idx][...]; idx += 1                             # (M, M) additive

    (wqkv, bqkv, wo, bo, ln1g, ln1b,
     w1, b1, w2, b2, ln2g, ln2b) = refs[idx:idx + 12]
    idx += 12
    head_refs = refs[idx:]

    M, E = x.shape
    Dh = E // nheads
    scale = 1.0 / float(np.sqrt(Dh))

    def layernorm(z, g, b):
        mu = jnp.mean(z, axis=-1, keepdims=True)
        zc = z - mu
        var = jnp.mean(zc * zc, axis=-1, keepdims=True)
        return zc * jax.lax.rsqrt(var + eps) * g + b

    # ---- transformer encoder layers (post-norm, relu; PyTorch defaults) ----
    for l in range(nlayers):
        qkv = _mm(x, wqkv[l]) + bqkv[l]                         # (M, 3E) fused QKV
        wo_l = wo[l]                                            # (E, E)
        a = jnp.zeros((M, E), jnp.float32)
        for h in range(nheads):
            q = qkv[:, h * Dh:(h + 1) * Dh]                     # (M, Dh)
            k = qkv[:, E + h * Dh:E + (h + 1) * Dh]
            v = qkv[:, 2 * E + h * Dh:2 * E + (h + 1) * Dh]
            # Full-slab scores; additive mask (-1e30) removes cross-batch pairs.
            s = _mm(q, k.T) * scale + mask                      # (M, M)
            m = jnp.max(s, axis=-1, keepdims=True)
            p = jnp.exp(s - m)
            p = p / jnp.sum(p, axis=-1, keepdims=True)          # exact softmax
            ctx = _mm(p, v)                                     # (M, Dh)
            # concat(heads) @ Wo  ==  sum_h  ctx_h @ Wo[h*Dh:(h+1)*Dh, :]
            a = a + _mm(ctx, wo_l[h * Dh:(h + 1) * Dh, :])
        a = a + bo[l]
        x = layernorm(x + a, ln1g[l], ln1b[l])
        f = jnp.maximum(_mm(x, w1[l]) + b1[l], 0.0)             # relu FFN
        x = layernorm(x + _mm(f, w2[l]) + b2[l], ln2g[l], ln2b[l])

    # ---- fused regressor head(s): block-diag packed, final layer 128-lane padded ----
    h = x
    for li in range(n_head_layers):
        w = head_refs[2 * li][...]
        b = head_refs[2 * li + 1][...]
        h = _mm(h, w) + b
        if li < n_head_layers - 1:
            h = jnp.maximum(h, 0.0)                             # ReLU between layers
        elif has_tanh:
            h = jnp.tanh(h)                                     # tanh(0)=0 keeps padding zero
    o_ref[...] = h.astype(o_ref.dtype)                          # lane-dense (M, 128) store


# ----------------------------------------------------------------------------
# pallas_call wrapper (no transposes, single launch)
# ----------------------------------------------------------------------------
def _full_spec(shape):
    nd = len(shape)
    return pl.BlockSpec(shape, lambda i: (0,) * nd)


def bert_forward(x_sbd, packed, cfg):
    """x: (S, B, input_dim) -> (S, B, out_total); batch_first=False like nn.Transformer."""
    S, B, Din = x_sbd.shape
    use_affine = cfg["affine_dim"] is not None
    use_pe = cfg["use_pe"]
    M = S * B
    out_total = (2 if cfg["task"] == "va" else 1) * cfg["out_dim"]
    head = packed["head"]
    out_pad = head[-1][0].shape[1]

    # Row ordering is (s, b): a layout-free reshape, no transposes anywhere.
    x2d = x_sbd.reshape(M, Din)

    args = [x2d]
    if use_affine:
        args.append(packed["affine_w"])
    if use_pe:
        # PE row for flat row s*B + b is pe[s] -> repeat each position B times.
        args.append(jnp.repeat(packed["pe_table"][:S], B, axis=0))
    # Static additive attention mask: -1e30 where row batch != col batch.
    rows = np.arange(M)
    same = (rows[:, None] % B) == (rows[None, :] % B)
    args.append(jnp.asarray(np.where(same, 0.0, -1e30), dtype=jnp.float32))

    args += [packed[k] for k in ("wqkv", "bqkv", "wo", "bo", "ln1_g", "ln1_b",
                                 "w1", "b1", "w2", "b2", "ln2_g", "ln2_b")]
    for w, b in head:
        args += [w, b]

    out_padded = pl.pallas_call(
        functools.partial(
            _bert_kernel, nlayers=cfg["nlayers"], nheads=cfg["nheads"], eps=1e-5,
            n_head_layers=len(head), has_tanh=(cfg["task"] == "va"),
            use_affine=use_affine, use_pe=use_pe),
        out_shape=jax.ShapeDtypeStruct((M, out_pad), jnp.float32),
        grid=(1,),
        in_specs=[_full_spec(a.shape) for a in args],
        out_specs=_full_spec((M, out_pad)),
        compiler_params=pltpu.CompilerParams(dimension_semantics=("arbitrary",)),
    )(*args)

    # Drop the lane padding; (s,b)-ordered rows reshape directly to (S, B, out).
    return out_padded[:, :out_total].reshape(S, B, out_total)


# ----------------------------------------------------------------------------
# Parameter init (torch-like structure) + one-time packing for the fused kernel
# ----------------------------------------------------------------------------
def get_sinusoid_encoding_table(n_position, d_model):
    pos = np.arange(n_position, dtype=np.float64)[:, None]
    hid = np.arange(d_model)[None, :]
    table = pos / np.power(10000.0, 2 * (hid // 2) / d_model)
    table[:, 0::2] = np.sin(table[:, 0::2])
    table[:, 1::2] = np.cos(table[:, 1::2])
    return jnp.asarray(table, dtype=jnp.float32)


def init_params(key, cfg):
    E = cfg["affine_dim"] if cfg["affine_dim"] is not None else cfg["input_dim"]
    F = cfg["feedforward_dim"]

    def nrm(k, shape, scale=0.05):
        return scale * jax.random.normal(k, shape, dtype=jnp.float32)

    keys = iter(jax.random.split(key, 512))
    params = {"pe_table": get_sinusoid_encoding_table(cfg["seq_len"], E), "layers": []}
    if cfg["affine_dim"] is not None:
        params["affine_w"] = nrm(next(keys), (cfg["input_dim"], E))   # Linear(bias=False)

    for _ in range(cfg["nlayers"]):
        params["layers"].append({
            "wqkv": nrm(next(keys), (E, 3 * E)), "bqkv": nrm(next(keys), (3 * E,)),
            "wo": nrm(next(keys), (E, E)), "bo": nrm(next(keys), (E,)),
            "ln1_g": jnp.ones((E,), jnp.float32), "ln1_b": jnp.zeros((E,), jnp.float32),
            "w1": nrm(next(keys), (E, F)), "b1": nrm(next(keys), (F,)),
            "w2": nrm(next(keys), (F, E)), "b2": nrm(next(keys), (E,)),
            "ln2_g": jnp.ones((E,), jnp.float32), "ln2_b": jnp.zeros((E,), jnp.float32),
        })

    def make_head(dims):
        dims_full = [E] + list(dims) + [cfg["out_dim"]]
        return [(nrm(next(keys), (din, dout)), nrm(next(keys), (dout,)))
                for din, dout in zip(dims_full[:-1], dims_full[1:])]

    if cfg["task"] == "va":
        params["v_head"] = make_head(cfg["head_dims"])
        params["a_head"] = make_head(cfg["head_dims"])
    else:
        params["head"] = make_head(cfg["head_dims"])
    return params


def _block_diag(ws):
    if len(ws) == 1:
        return ws[0]
    rows = sum(w.shape[0] for w in ws)
    cols = sum(w.shape[1] for w in ws)
    out = jnp.zeros((rows, cols), ws[0].dtype)
    r = c = 0
    for w in ws:
        out = out.at[r:r + w.shape[0], c:c + w.shape[1]].set(w)
        r += w.shape[0]
        c += w.shape[1]
    return out


def pack_params(params, cfg):
    """One-time packing: stack per-layer encoder weights along a leading (L,) axis and
    pack the regressor branches block-diagonally with a 128-lane-padded final layer."""
    def stack(key, reshape=None):
        ws = [lp[key] for lp in params["layers"]]
        if reshape is not None:
            ws = [w.reshape(reshape) for w in ws]
        return jnp.stack(ws)

    packed = {
        "pe_table": params["pe_table"],
        "wqkv": stack("wqkv"), "bqkv": stack("bqkv", (1, -1)),
        "wo": stack("wo"), "bo": stack("bo", (1, -1)),
        "ln1_g": stack("ln1_g", (1, -1)), "ln1_b": stack("ln1_b", (1, -1)),
        "w1": stack("w1"), "b1": stack("b1", (1, -1)),
        "w2": stack("w2"), "b2": stack("b2", (1, -1)),
        "ln2_g": stack("ln2_g", (1, -1)), "ln2_b": stack("ln2_b", (1, -1)),
    }
    if cfg["affine_dim"] is not None:
        packed["affine_w"] = params["affine_w"]

    branches = ([params["v_head"], params["a_head"]] if cfg["task"] == "va"
                else [params["head"]])
    out_total = len(branches) * cfg["out_dim"]
    out_pad = max(128, ((out_total + 127) // 128) * 128)

    n_hl = len(branches[0])
    head = []
    for li in range(n_hl):
        ws = [br[li][0] for br in branches]
        bs = [br[li][1] for br in branches]
        w = jnp.concatenate(ws, axis=1) if li == 0 else _block_diag(ws)
        b = jnp.concatenate(bs, axis=0)
        if li == n_hl - 1:                                   # lane-dense final store
            w = jnp.pad(w, ((0, 0), (0, out_pad - w.shape[1])))
            b = jnp.pad(b, ((0, out_pad - b.shape[0]),))
        head.append((w, b.reshape(1, -1)))
    packed["head"] = head
    return packed


# ----------------------------------------------------------------------------
if __name__ == "__main__":
    cfg = dict(
        input_dim=16,
        feedforward_dim=64,
        affine_dim=32,
        nheads=4,
        nlayers=2,
        dropout=0.1,        # identity at inference
        use_pe=True,
        seq_len=8,
        head_dropout=0.3,   # identity at inference
        head_dims=[64, 32],
        out_dim=1,
        task="va",
    )
    # TODO(synk): training-mode dropout (stochastic masking) is omitted; eval-mode forward only.

    key = jax.random.PRNGKey(0)
    kp, kx = jax.random.split(key)
    params = init_params(kp, cfg)
    packed = pack_params(params, cfg)

    S, B = cfg["seq_len"], 2
    x = jax.random.normal(kx, (S, B, cfg["input_dim"]), dtype=jnp.float32)

    fwd = jax.jit(lambda inp, prm: bert_forward(inp, prm, cfg))
    out = jax.block_until_ready(fwd(x, packed))

    assert out.shape == (S, B, 2 * cfg["out_dim"]), out.shape
    assert bool(jnp.all(jnp.isfinite(out)))
    print("KERNEL_OK")
</pallas_src>

<mosaic_0001>
module attributes {stable_mosaic.version = 11 : i64} {
  func.func @_bert_kernel(%arg0: i32, %arg1: memref<16x16xf32, #tpu.memory_space<vmem>>, %arg2: memref<16x32xf32, #tpu.memory_space<vmem>>, %arg3: memref<16x32xf32, #tpu.memory_space<vmem>>, %arg4: memref<16x16xf32, #tpu.memory_space<vmem>>, %arg5: memref<2x32x96xf32, #tpu.memory_space<vmem>>, %arg6: memref<2x1x96xf32, #tpu.memory_space<vmem>>, %arg7: memref<2x32x32xf32, #tpu.memory_space<vmem>>, %arg8: memref<2x1x32xf32, #tpu.memory_space<vmem>>, %arg9: memref<2x1x32xf32, #tpu.memory_space<vmem>>, %arg10: memref<2x1x32xf32, #tpu.memory_space<vmem>>, %arg11: memref<2x32x64xf32, #tpu.memory_space<vmem>>, %arg12: memref<2x1x64xf32, #tpu.memory_space<vmem>>, %arg13: memref<2x64x32xf32, #tpu.memory_space<vmem>>, %arg14: memref<2x1x32xf32, #tpu.memory_space<vmem>>, %arg15: memref<2x1x32xf32, #tpu.memory_space<vmem>>, %arg16: memref<2x1x32xf32, #tpu.memory_space<vmem>>, %arg17: memref<32x128xf32, #tpu.memory_space<vmem>>, %arg18: memref<1x128xf32, #tpu.memory_space<vmem>>, %arg19: memref<128x64xf32, #tpu.memory_space<vmem>>, %arg20: memref<1x64xf32, #tpu.memory_space<vmem>>, %arg21: memref<64x128xf32, #tpu.memory_space<vmem>>, %arg22: memref<1x128xf32, #tpu.memory_space<vmem>>, %arg23: memref<16x128xf32, #tpu.memory_space<vmem>>) attributes {dimension_semantics = [#tpu.dimension_semantics<arbitrary>], iteration_bounds = array<i64: 1>, scalar_prefetch = 0 : i64, scratch_operands = 0 : i64, tpu.core_type = #tpu.core_type<tc>, window_params = [{pipeline_mode = #tpu.pipeline_mode<synchronous>, transform_indices = @transform_0, window_bounds = array<i64: 16, 16>}, {pipeline_mode = #tpu.pipeline_mode<synchronous>, transform_indices = @transform_1, window_bounds = array<i64: 16, 32>}, {pipeline_mode = #tpu.pipeline_mode<synchronous>, transform_indices = @transform_2, window_bounds = array<i64: 16, 32>}, {pipeline_mode = #tpu.pipeline_mode<synchronous>, transform_indices = @transform_3, window_bounds = array<i64: 16, 16>}, {pipeline_mode = #tpu.pipeline_mode<synchronous>, transform_indices = @transform_4, window_bounds = array<i64: 2, 32, 96>}, {pipeline_mode = #tpu.pipeline_mode<synchronous>, transform_indices = @transform_5, window_bounds = array<i64: 2, 1, 96>}, {pipeline_mode = #tpu.pipeline_mode<synchronous>, transform_indices = @transform_6, window_bounds = array<i64: 2, 32, 32>}, {pipeline_mode = #tpu.pipeline_mode<synchronous>, transform_indices = @transform_7, window_bounds = array<i64: 2, 1, 32>}, {pipeline_mode = #tpu.pipeline_mode<synchronous>, transform_indices = @transform_8, window_bounds = array<i64: 2, 1, 32>}, {pipeline_mode = #tpu.pipeline_mode<synchronous>, transform_indices = @transform_9, window_bounds = array<i64: 2, 1, 32>}, {pipeline_mode = #tpu.pipeline_mode<synchronous>, transform_indices = @transform_10, window_bounds = array<i64: 2, 32, 64>}, {pipeline_mode = #tpu.pipeline_mode<synchronous>, transform_indices = @transform_11, window_bounds = array<i64: 2, 1, 64>}, {pipeline_mode = #tpu.pipeline_mode<synchronous>, transform_indices = @transform_12, window_bounds = array<i64: 2, 64, 32>}, {pipeline_mode = #tpu.pipeline_mode<synchronous>, transform_indices = @transform_13, window_bounds = array<i64: 2, 1, 32>}, {pipeline_mode = #tpu.pipeline_mode<synchronous>, transform_indices = @transform_14, window_bounds = array<i64: 2, 1, 32>}, {pipeline_mode = #tpu.pipeline_mode<synchronous>, transform_indices = @transform_15, window_bounds = array<i64: 2, 1, 32>}, {pipeline_mode = #tpu.pipeline_mode<synchronous>, transform_indices = @transform_16, window_bounds = array<i64: 32, 128>}, {pipeline_mode = #tpu.pipeline_mode<synchronous>, transform_indices = @transform_17, window_bounds = array<i64: 1, 128>}, {pipeline_mode = #tpu.pipeline_mode<synchronous>, transform_indices = @transform_18, window_bounds = array<i64: 128, 64>}, {pipeline_mode = #tpu.pipeline_mode<synchronous>, transform_indices = @transform_19, window_bounds = array<i64: 1, 64>}, {pipeline_mode = #tpu.pipeline_mode<synchronous>, transform_indices = @transform_20, window_bounds = array<i64: 64, 128>}, {pipeline_mode = #tpu.pipeline_mode<synchronous>, transform_indices = @transform_21, window_bounds = array<i64: 1, 128>}, {pipeline_mode = #tpu.pipeline_mode<synchronous>, transform_indices = @transform_22, window_bounds = array<i64: 16, 128>}]} {
    %c0 = arith.constant 0 : index
    %c0_0 = arith.constant 0 : index
    %0 = vector.load %arg1[%c0, %c0_0] : memref<16x16xf32, #tpu.memory_space<vmem>>, vector<16x16xf32>
    %c0_1 = arith.constant 0 : index
    %c0_2 = arith.constant 0 : index
    %1 = vector.load %arg2[%c0_1, %c0_2] : memref<16x32xf32, #tpu.memory_space<vmem>>, vector<16x32xf32>
    %cst = arith.constant dense<0.000000e+00> : vector<16x32xf32>
    %2 = tpu.matmul %0, %1, %cst {dimension_numbers = #tpu.dot_dimension_numbers<[1], [0], [0], [1], [0, 0, 1, 1], [], []>} : vector<16x16xf32>, vector<16x32xf32>, vector<16x32xf32> -> vector<16x32xf32>
    %c0_3 = arith.constant 0 : index
    %c0_4 = arith.constant 0 : index
    %3 = vector.load %arg3[%c0_3, %c0_4] : memref<16x32xf32, #tpu.memory_space<vmem>>, vector<16x32xf32>
    %4 = arith.addf %2, %3 : vector<16x32xf32>
    %c0_5 = arith.constant 0 : index
    %c0_6 = arith.constant 0 : index
    %5 = vector.load %arg4[%c0_5, %c0_6] : memref<16x16xf32, #tpu.memory_space<vmem>>, vector<16x16xf32>
    %c0_7 = arith.constant 0 : index
    %c0_8 = arith.constant 0 : index
    %c0_9 = arith.constant 0 : index
    %6 = vector.load %arg5[%c0_7, %c0_8, %c0_9] : memref<2x32x96xf32, #tpu.memory_space<vmem>>, vector<1x32x96xf32>
    %7 = vector.shape_cast %6 : vector<1x32x96xf32> to vector<32x96xf32>
    %cst_10 = arith.constant dense<0.000000e+00> : vector<16x96xf32>
    %8 = tpu.matmul %4, %7, %cst_10 {dimension_numbers = #tpu.dot_dimension_numbers<[1], [0], [0], [1], [0, 0, 1, 1], [], []>} : vector<16x32xf32>, vector<32x96xf32>, vector<16x96xf32> -> vector<16x96xf32>
    %c0_11 = arith.constant 0 : index
    %c0_12 = arith.constant 0 : index
    %c0_13 = arith.constant 0 : index
    %9 = vector.load %arg6[%c0_11, %c0_12, %c0_13] : memref<2x1x96xf32, #tpu.memory_space<vmem>>, vector<1x1x96xf32>
    %10 = vector.shape_cast %9 : vector<1x1x96xf32> to vector<1x96xf32>
    %11 = vector.broadcast %10 : vector<1x96xf32> to vector<16x96xf32>
    %12 = arith.addf %8, %11 : vector<16x96xf32>
    %c0_14 = arith.constant 0 : index
    %c0_15 = arith.constant 0 : index
    %c0_16 = arith.constant 0 : index
    %13 = vector.load %arg7[%c0_14, %c0_15, %c0_16] : memref<2x32x32xf32, #tpu.memory_space<vmem>>, vector<1x32x32xf32>
    %14 = vector.shape_cast %13 : vector<1x32x32xf32> to vector<32x32xf32>
    %cst_17 = arith.constant 0.000000e+00 : f32
    %15 = vector.broadcast %cst_17 : f32 to vector<16x32xf32>
    %16 = vector.extract_strided_slice %12 {offsets = [0, 0], sizes = [16, 8], strides = [1, 1]} : vector<16x96xf32> to vector<16x8xf32>
    %17 = vector.extract_strided_slice %12 {offsets = [0, 32], sizes = [16, 8], strides = [1, 1]} : vector<16x96xf32> to vector<16x8xf32>
    %18 = vector.extract_strided_slice %12 {offsets = [0, 64], sizes = [16, 8], strides = [1, 1]} : vector<16x96xf32> to vector<16x8xf32>
    %19 = tpu.transpose %17, [1, 0] : vector<16x8xf32> -> vector<8x16xf32>
    %cst_18 = arith.constant dense<0.000000e+00> : vector<16x16xf32>
    %20 = tpu.matmul %16, %19, %cst_18 {dimension_numbers = #tpu.dot_dimension_numbers<[1], [0], [0], [1], [0, 0, 1, 1], [], []>} : vector<16x8xf32>, vector<8x16xf32>, vector<16x16xf32> -> vector<16x16xf32>
    %cst_19 = arith.constant 0.353553385 : f32
    %21 = vector.broadcast %cst_19 : f32 to vector<16x16xf32>
    %22 = arith.mulf %20, %21 : vector<16x16xf32>
    %23 = arith.addf %22, %5 : vector<16x16xf32>
    %cst_20 = arith.constant dense<0xFF800000> : vector<16xf32>
    %24 = vector.multi_reduction <maximumf>, %23, %cst_20 [1] : vector<16x16xf32> to vector<16xf32>
    %25 = vector.shape_cast %24 : vector<16xf32> to vector<16x1xf32>
    %26 = vector.broadcast %25 : vector<16x1xf32> to vector<16x16xf32>
    %27 = arith.subf %23, %26 : vector<16x16xf32>
    %28 = math.exp %27 : vector<16x16xf32>
    %cst_21 = arith.constant dense<0.000000e+00> : vector<16xf32>
    %29 = vector.multi_reduction <add>, %28, %cst_21 [1] : vector<16x16xf32> to vector<16xf32>
    %30 = vector.shape_cast %29 : vector<16xf32> to vector<16x1xf32>
    %31 = vector.broadcast %30 : vector<16x1xf32> to vector<16x16xf32>
    %32 = arith.divf %28, %31 : vector<16x16xf32>
    %cst_22 = arith.constant dense<0.000000e+00> : vector<16x8xf32>
    %33 = tpu.matmul %32, %18, %cst_22 {dimension_numbers = #tpu.dot_dimension_numbers<[1], [0], [0], [1], [0, 0, 1, 1], [], []>} : vector<16x16xf32>, vector<16x8xf32>, vector<16x8xf32> -> vector<16x8xf32>
    %34 = vector.extract_strided_slice %14 {offsets = [0, 0], sizes = [8, 32], strides = [1, 1]} : vector<32x32xf32> to vector<8x32xf32>
    %cst_23 = arith.constant dense<0.000000e+00> : vector<16x32xf32>
    %35 = tpu.matmul %33, %34, %cst_23 {dimension_numbers = #tpu.dot_dimension_numbers<[1], [0], [0], [1], [0, 0, 1, 1], [], []>} : vector<16x8xf32>, vector<8x32xf32>, vector<16x32xf32> -> vector<16x32xf32>
    %36 = arith.addf %15, %35 : vector<16x32xf32>
    %37 = vector.extract_strided_slice %12 {offsets = [0, 8], sizes = [16, 8], strides = [1, 1]} : vector<16x96xf32> to vector<16x8xf32>
    %38 = vector.extract_strided_slice %12 {offsets = [0, 40], sizes = [16, 8], strides = [1, 1]} : vector<16x96xf32> to vector<16x8xf32>
    %39 = vector.extract_strided_slice %12 {offsets = [0, 72], sizes = [16, 8], strides = [1, 1]} : vector<16x96xf32> to vector<16x8xf32>
    %40 = tpu.transpose %38, [1, 0] : vector<16x8xf32> -> vector<8x16xf32>
    %cst_24 = arith.constant dense<0.000000e+00> : vector<16x16xf32>
    %41 = tpu.matmul %37, %40, %cst_24 {dimension_numbers = #tpu.dot_dimension_numbers<[1], [0], [0], [1], [0, 0, 1, 1], [], []>} : vector<16x8xf32>, vector<8x16xf32>, vector<16x16xf32> -> vector<16x16xf32>
    %cst_25 = arith.constant 0.353553385 : f32
    %42 = vector.broadcast %cst_25 : f32 to vector<16x16xf32>
    %43 = arith.mulf %41, %42 : vector<16x16xf32>
    %44 = arith.addf %43, %5 : vector<16x16xf32>
    %cst_26 = arith.constant dense<0xFF800000> : vector<16xf32>
    %45 = vector.multi_reduction <maximumf>, %44, %cst_26 [1] : vector<16x16xf32> to vector<16xf32>
    %46 = vector.shape_cast %45 : vector<16xf32> to vector<16x1xf32>
    %47 = vector.broadcast %46 : vector<16x1xf32> to vector<16x16xf32>
    %48 = arith.subf %44, %47 : vector<16x16xf32>
    %49 = math.exp %48 : vector<16x16xf32>
    %cst_27 = arith.constant dense<0.000000e+00> : vector<16xf32>
    %50 = vector.multi_reduction <add>, %49, %cst_27 [1] : vector<16x16xf32> to vector<16xf32>
    %51 = vector.shape_cast %50 : vector<16xf32> to vector<16x1xf32>
    %52 = vector.broadcast %51 : vector<16x1xf32> to vector<16x16xf32>
    %53 = arith.divf %49, %52 : vector<16x16xf32>
    %cst_28 = arith.constant dense<0.000000e+00> : vector<16x8xf32>
    %54 = tpu.matmul %53, %39, %cst_28 {dimension_numbers = #tpu.dot_dimension_numbers<[1], [0], [0], [1], [0, 0, 1, 1], [], []>} : vector<16x16xf32>, vector<16x8xf32>, vector<16x8xf32> -> vector<16x8xf32>
    %55 = vector.extract_strided_slice %14 {offsets = [8, 0], sizes = [8, 32], strides = [1, 1]} : vector<32x32xf32> to vector<8x32xf32>
    %cst_29 = arith.constant dense<0.000000e+00> : vector<16x32xf32>
    %56 = tpu.matmul %54, %55, %cst_29 {dimension_numbers = #tpu.dot_dimension_numbers<[1], [0], [0], [1], [0, 0, 1, 1], [], []>} : vector<16x8xf32>, vector<8x32xf32>, vector<16x32xf32> -> vector<16x32xf32>
    %57 = arith.addf %36, %56 : vector<16x32xf32>
    %58 = vector.extract_strided_slice %12 {offsets = [0, 16], sizes = [16, 8], strides = [1, 1]} : vector<16x96xf32> to vector<16x8xf32>
    %59 = vector.extract_strided_slice %12 {offsets = [0, 48], sizes = [16, 8], strides = [1, 1]} : vector<16x96xf32> to vector<16x8xf32>
    %60 = vector.extract_strided_slice %12 {offsets = [0, 80], sizes = [16, 8], strides = [1, 1]} : vector<16x96xf32> to vector<16x8xf32>
    %61 = tpu.transpose %59, [1, 0] : vector<16x8xf32> -> vector<8x16xf32>
    %cst_30 = arith.constant dense<0.000000e+00> : vector<16x16xf32>
    %62 = tpu.matmul %58, %61, %cst_30 {dimension_numbers = #tpu.dot_dimension_numbers<[1], [0], [0], [1], [0, 0, 1, 1], [], []>} : vector<16x8xf32>, vector<8x16xf32>, vector<16x16xf32> -> vector<16x16xf32>
    %cst_31 = arith.constant 0.353553385 : f32
    %63 = vector.broadcast %cst_31 : f32 to vector<16x16xf32>
    %64 = arith.mulf %62, %63 : vector<16x16xf32>
    %65 = arith.addf %64, %5 : vector<16x16xf32>
    %cst_32 = arith.constant dense<0xFF800000> : vector<16xf32>
    %66 = vector.multi_reduction <maximumf>, %65, %cst_32 [1] : vector<16x16xf32> to vector<16xf32>
    %67 = vector.shape_cast %66 : vector<16xf32> to vector<16x1xf32>
    %68 = vector.broadcast %67 : vector<16x1xf32> to vector<16x16xf32>
    %69 = arith.subf %65, %68 : vector<16x16xf32>
    %70 = math.exp %69 : vector<16x16xf32>
    %cst_33 = arith.constant dense<0.000000e+00> : vector<16xf32>
    %71 = vector.multi_reduction <add>, %70, %cst_33 [1] : vector<16x16xf32> to vector<16xf32>
    %72 = vector.shape_cast %71 : vector<16xf32> to vector<16x1xf32>
    %73 = vector.broadcast %72 : vector<16x1xf32> to vector<16x16xf32>
    %74 = arith.divf %70, %73 : vector<16x16xf32>
    %cst_34 = arith.constant dense<0.000000e+00> : vector<16x8xf32>
    %75 = tpu.matmul %74, %60, %cst_34 {dimension_numbers = #tpu.dot_dimension_numbers<[1], [0], [0], [1], [0, 0, 1, 1], [], []>} : vector<16x16xf32>, vector<16x8xf32>, vector<16x8xf32> -> vector<16x8xf32>
    %76 = vector.extract_strided_slice %14 {offsets = [16, 0], sizes = [8, 32], strides = [1, 1]} : vector<32x32xf32> to vector<8x32xf32>
    %cst_35 = arith.constant dense<0.000000e+00> : vector<16x32xf32>
    %77 = tpu.matmul %75, %76, %cst_35 {dimension_numbers = #tpu.dot_dimension_numbers<[1], [0], [0], [1], [0, 0, 1, 1], [], []>} : vector<16x8xf32>, vector<8x32xf32>, vector<16x32xf32> -> vector<16x32xf32>
    %78 = arith.addf %57, %77 : vector<16x32xf32>
    %79 = vector.extract_strided_slice %12 {offsets = [0, 24], sizes = [16, 8], strides = [1, 1]} : vector<16x96xf32> to vector<16x8xf32>
    %80 = vector.extract_strided_slice %12 {offsets = [0, 56], sizes = [16, 8], strides = [1, 1]} : vector<16x96xf32> to vector<16x8xf32>
    %81 = vector.extract_strided_slice %12 {offsets = [0, 88], sizes = [16, 8], strides = [1, 1]} : vector<16x96xf32> to vector<16x8xf32>
    %82 = tpu.transpose %80, [1, 0] : vector<16x8xf32> -> vector<8x16xf32>
    %cst_36 = arith.constant dense<0.000000e+00> : vector<16x16xf32>
    %83 = tpu.matmul %79, %82, %cst_36 {dimension_numbers = #tpu.dot_dimension_numbers<[1], [0], [0], [1], [0, 0, 1, 1], [], []>} : vector<16x8xf32>, vector<8x16xf32>, vector<16x16xf32> -> vector<16x16xf32>
    %cst_37 = arith.constant 0.353553385 : f32
    %84 = vector.broadcast %cst_37 : f32 to vector<16x16xf32>
    %85 = arith.mulf %83, %84 : vector<16x16xf32>
    %86 = arith.addf %85, %5 : vector<16x16xf32>
    %cst_38 = arith.constant dense<0xFF800000> : vector<16xf32>
    %87 = vector.multi_reduction <maximumf>, %86, %cst_38 [1] : vector<16x16xf32> to vector<16xf32>
    %88 = vector.shape_cast %87 : vector<16xf32> to vector<16x1xf32>
    %89 = vector.broadcast %88 : vector<16x1xf32> to vector<16x16xf32>
    %90 = arith.subf %86, %89 : vector<16x16xf32>
    %91 = math.exp %90 : vector<16x16xf32>
    %cst_39 = arith.constant dense<0.000000e+00> : vector<16xf32>
    %92 = vector.multi_reduction <add>, %91, %cst_39 [1] : vector<16x16xf32> to vector<16xf32>
    %93 = vector.shape_cast %92 : vector<16xf32> to vector<16x1xf32>
    %94 = vector.broadcast %93 : vector<16x1xf32> to vector<16x16xf32>
    %95 = arith.divf %91, %94 : vector<16x16xf32>
    %cst_40 = arith.constant dense<0.000000e+00> : vector<16x8xf32>
    %96 = tpu.matmul %95, %81, %cst_40 {dimension_numbers = #tpu.dot_dimension_numbers<[1], [0], [0], [1], [0, 0, 1, 1], [], []>} : vector<16x16xf32>, vector<16x8xf32>, vector<16x8xf32> -> vector<16x8xf32>
    %97 = vector.extract_strided_slice %14 {offsets = [24, 0], sizes = [8, 32], strides = [1, 1]} : vector<32x32xf32> to vector<8x32xf32>
    %cst_41 = arith.constant dense<0.000000e+00> : vector<16x32xf32>
    %98 = tpu.matmul %96, %97, %cst_41 {dimension_numbers = #tpu.dot_dimension_numbers<[1], [0], [0], [1], [0, 0, 1, 1], [], []>} : vector<16x8xf32>, vector<8x32xf32>, vector<16x32xf32> -> vector<16x32xf32>
    %99 = arith.addf %78, %98 : vector<16x32xf32>
    %c0_42 = arith.constant 0 : index
    %c0_43 = arith.constant 0 : index
    %c0_44 = arith.constant 0 : index
    %100 = vector.load %arg8[%c0_42, %c0_43, %c0_44] : memref<2x1x32xf32, #tpu.memory_space<vmem>>, vector<1x1x32xf32>
    %101 = vector.shape_cast %100 : vector<1x1x32xf32> to vector<1x32xf32>
    %102 = vector.broadcast %101 : vector<1x32xf32> to vector<16x32xf32>
    %103 = arith.addf %99, %102 : vector<16x32xf32>
    %104 = arith.addf %4, %103 : vector<16x32xf32>
    %c0_45 = arith.constant 0 : index
    %c0_46 = arith.constant 0 : index
    %c0_47 = arith.constant 0 : index
    %105 = vector.load %arg9[%c0_45, %c0_46, %c0_47] : memref<2x1x32xf32, #tpu.memory_space<vmem>>, vector<1x1x32xf32>
    %106 = vector.shape_cast %105 : vector<1x1x32xf32> to vector<1x32xf32>
    %c0_48 = arith.constant 0 : index
    %c0_49 = arith.constant 0 : index
    %c0_50 = arith.constant 0 : index
    %107 = vector.load %arg10[%c0_48, %c0_49, %c0_50] : memref<2x1x32xf32, #tpu.memory_space<vmem>>, vector<1x1x32xf32>
    %108 = vector.shape_cast %107 : vector<1x1x32xf32> to vector<1x32xf32>
    %cst_51 = arith.constant dense<0.000000e+00> : vector<16xf32>
    %109 = vector.multi_reduction <add>, %104, %cst_51 [1] : vector<16x32xf32> to vector<16xf32>
    %110 = vector.shape_cast %109 : vector<16xf32> to vector<16x1xf32>
    %cst_52 = arith.constant 3.200000e+01 : f32
    %111 = vector.broadcast %cst_52 : f32 to vector<16x1xf32>
    %112 = arith.divf %110, %111 : vector<16x1xf32>
    %113 = vector.broadcast %112 : vector<16x1xf32> to vector<16x32xf32>
    %114 = arith.subf %104, %113 : vector<16x32xf32>
    %115 = arith.mulf %114, %114 : vector<16x32xf32>
    %cst_53 = arith.constant dense<0.000000e+00> : vector<16xf32>
    %116 = vector.multi_reduction <add>, %115, %cst_53 [1] : vector<16x32xf32> to vector<16xf32>
    %117 = vector.shape_cast %116 : vector<16xf32> to vector<16x1xf32>
    %cst_54 = arith.constant 3.200000e+01 : f32
    %118 = vector.broadcast %cst_54 : f32 to vector<16x1xf32>
    %119 = arith.divf %117, %118 : vector<16x1xf32>
    %cst_55 = arith.constant 9.99999974E-6 : f32
    %120 = vector.broadcast %cst_55 : f32 to vector<16x1xf32>
    %121 = arith.addf %119, %120 : vector<16x1xf32>
    %122 = math.rsqrt %121 : vector<16x1xf32>
    %123 = vector.broadcast %122 : vector<16x1xf32> to vector<16x32xf32>
    %124 = arith.mulf %114, %123 : vector<16x32xf32>
    %125 = vector.broadcast %106 : vector<1x32xf32> to vector<16x32xf32>
    %126 = arith.mulf %124, %125 : vector<16x32xf32>
    %127 = vector.broadcast %108 : vector<1x32xf32> to vector<16x32xf32>
    %128 = arith.addf %126, %127 : vector<16x32xf32>
    %c0_56 = arith.constant 0 : index
    %c0_57 = arith.constant 0 : index
    %c0_58 = arith.constant 0 : index
    %129 = vector.load %arg11[%c0_56, %c0_57, %c0_58] : memref<2x32x64xf32, #tpu.memory_space<vmem>>, vector<1x32x64xf32>
    %130 = vector.shape_cast %129 : vector<1x32x64xf32> to vector<32x64xf32>
    %cst_59 = arith.constant dense<0.000000e+00> : vector<16x64xf32>
    %131 = tpu.matmul %128, %130, %cst_59 {dimension_numbers = #tpu.dot_dimension_numbers<[1], [0], [0], [1], [0, 0, 1, 1], [], []>} : vector<16x32xf32>, vector<32x64xf32>, vector<16x64xf32> -> vector<16x64xf32>
    %c0_60 = arith.constant 0 : index
    %c0_61 = arith.constant 0 : index
    %c0_62 = arith.constant 0 : index
    %132 = vector.load %arg12[%c0_60, %c0_61, %c0_62] : memref<2x1x64xf32, #tpu.memory_space<vmem>>, vector<1x1x64xf32>
    %133 = vector.shape_cast %132 : vector<1x1x64xf32> to vector<1x64xf32>
    %134 = vector.broadcast %133 : vector<1x64xf32> to vector<16x64xf32>
    %135 = arith.addf %131, %134 : vector<16x64xf32>
    %cst_63 = arith.constant 0.000000e+00 : f32
    %136 = vector.broadcast %cst_63 : f32 to vector<16x64xf32>
    %137 = arith.maximumf %135, %136 : vector<16x64xf32>
    %c0_64 = arith.constant 0 : index
    %c0_65 = arith.constant 0 : index
    %c0_66 = arith.constant 0 : index
    %138 = vector.load %arg13[%c0_64, %c0_65, %c0_66] : memref<2x64x32xf32, #tpu.memory_space<vmem>>, vector<1x64x32xf32>
    %139 = vector.shape_cast %138 : vector<1x64x32xf32> to vector<64x32xf32>
    %cst_67 = arith.constant dense<0.000000e+00> : vector<16x32xf32>
    %140 = tpu.matmul %137, %139, %cst_67 {dimension_numbers = #tpu.dot_dimension_numbers<[1], [0], [0], [1], [0, 0, 1, 1], [], []>} : vector<16x64xf32>, vector<64x32xf32>, vector<16x32xf32> -> vector<16x32xf32>
    %141 = arith.addf %128, %140 : vector<16x32xf32>
    %c0_68 = arith.constant 0 : index
    %c0_69 = arith.constant 0 : index
    %c0_70 = arith.constant 0 : index
    %142 = vector.load %arg14[%c0_68, %c0_69, %c0_70] : memref<2x1x32xf32, #tpu.memory_space<vmem>>, vector<1x1x32xf32>
    %143 = vector.shape_cast %142 : vector<1x1x32xf32> to vector<1x32xf32>
    %144 = vector.broadcast %143 : vector<1x32xf32> to vector<16x32xf32>
    %145 = arith.addf %141, %144 : vector<16x32xf32>
    %c0_71 = arith.constant 0 : index
    %c0_72 = arith.constant 0 : index
    %c0_73 = arith.constant 0 : index
    %146 = vector.load %arg15[%c0_71, %c0_72, %c0_73] : memref<2x1x32xf32, #tpu.memory_space<vmem>>, vector<1x1x32xf32>
    %147 = vector.shape_cast %146 : vector<1x1x32xf32> to vector<1x32xf32>
    %c0_74 = arith.constant 0 : index
    %c0_75 = arith.constant 0 : index
    %c0_76 = arith.constant 0 : index
    %148 = vector.load %arg16[%c0_74, %c0_75, %c0_76] : memref<2x1x32xf32, #tpu.memory_space<vmem>>, vector<1x1x32xf32>
    %149 = vector.shape_cast %148 : vector<1x1x32xf32> to vector<1x32xf32>
    %cst_77 = arith.constant dense<0.000000e+00> : vector<16xf32>
    %150 = vector.multi_reduction <add>, %145, %cst_77 [1] : vector<16x32xf32> to vector<16xf32>
    %151 = vector.shape_cast %150 : vector<16xf32> to vector<16x1xf32>
    %cst_78 = arith.constant 3.200000e+01 : f32
    %152 = vector.broadcast %cst_78 : f32 to vector<16x1xf32>
    %153 = arith.divf %151, %152 : vector<16x1xf32>
    %154 = vector.broadcast %153 : vector<16x1xf32> to vector<16x32xf32>
    %155 = arith.subf %145, %154 : vector<16x32xf32>
    %156 = arith.mulf %155, %155 : vector<16x32xf32>
    %cst_79 = arith.constant dense<0.000000e+00> : vector<16xf32>
    %157 = vector.multi_reduction <add>, %156, %cst_79 [1] : vector<16x32xf32> to vector<16xf32>
    %158 = vector.shape_cast %157 : vector<16xf32> to vector<16x1xf32>
    %cst_80 = arith.constant 3.200000e+01 : f32
    %159 = vector.broadcast %cst_80 : f32 to vector<16x1xf32>
    %160 = arith.divf %158, %159 : vector<16x1xf32>
    %cst_81 = arith.constant 9.99999974E-6 : f32
    %161 = vector.broadcast %cst_81 : f32 to vector<16x1xf32>
    %162 = arith.addf %160, %161 : vector<16x1xf32>
    %163 = math.rsqrt %162 : vector<16x1xf32>
    %164 = vector.broadcast %163 : vector<16x1xf32> to vector<16x32xf32>
    %165 = arith.mulf %155, %164 : vector<16x32xf32>
    %166 = vector.broadcast %147 : vector<1x32xf32> to vector<16x32xf32>
    %167 = arith.mulf %165, %166 : vector<16x32xf32>
    %168 = vector.broadcast %149 : vector<1x32xf32> to vector<16x32xf32>
    %169 = arith.addf %167, %168 : vector<16x32xf32>
    %c1 = arith.constant 1 : index
    %c0_82 = arith.constant 0 : index
    %c0_83 = arith.constant 0 : index
    %170 = vector.load %arg5[%c1, %c0_82, %c0_83] : memref<2x32x96xf32, #tpu.memory_space<vmem>>, vector<1x32x96xf32>
    %171 = vector.shape_cast %170 : vector<1x32x96xf32> to vector<32x96xf32>
    %cst_84 = arith.constant dense<0.000000e+00> : vector<16x96xf32>
    %172 = tpu.matmul %169, %171, %cst_84 {dimension_numbers = #tpu.dot_dimension_numbers<[1], [0], [0], [1], [0, 0, 1, 1], [], []>} : vector<16x32xf32>, vector<32x96xf32>, vector<16x96xf32> -> vector<16x96xf32>
    %c1_85 = arith.constant 1 : index
    %c0_86 = arith.constant 0 : index
    %c0_87 = arith.constant 0 : index
    %173 = vector.load %arg6[%c1_85, %c0_86, %c0_87] : memref<2x1x96xf32, #tpu.memory_space<vmem>>, vector<1x1x96xf32>
    %174 = vector.shape_cast %173 : vector<1x1x96xf32> to vector<1x96xf32>
    %175 = vector.broadcast %174 : vector<1x96xf32> to vector<16x96xf32>
    %176 = arith.addf %172, %175 : vector<16x96xf32>
    %c1_88 = arith.constant 1 : index
    %c0_89 = arith.constant 0 : index
    %c0_90 = arith.constant 0 : index
    %177 = vector.load %arg7[%c1_88, %c0_89, %c0_90] : memref<2x32x32xf32, #tpu.memory_space<vmem>>, vector<1x32x32xf32>
    %178 = vector.shape_cast %177 : vector<1x32x32xf32> to vector<32x32xf32>
    %cst_91 = arith.constant 0.000000e+00 : f32
    %179 = vector.broadcast %cst_91 : f32 to vector<16x32xf32>
    %180 = vector.extract_strided_slice %176 {offsets = [0, 0], sizes = [16, 8], strides = [1, 1]} : vector<16x96xf32> to vector<16x8xf32>
    %181 = vector.extract_strided_slice %176 {offsets = [0, 32], sizes = [16, 8], strides = [1, 1]} : vector<16x96xf32> to vector<16x8xf32>
    %182 = vector.extract_strided_slice %176 {offsets = [0, 64], sizes = [16, 8], strides = [1, 1]} : vector<16x96xf32> to vector<16x8xf32>
    %183 = tpu.transpose %181, [1, 0] : vector<16x8xf32> -> vector<8x16xf32>
    %cst_92 = arith.constant dense<0.000000e+00> : vector<16x16xf32>
    %184 = tpu.matmul %180, %183, %cst_92 {dimension_numbers = #tpu.dot_dimension_numbers<[1], [0], [0], [1], [0, 0, 1, 1], [], []>} : vector<16x8xf32>, vector<8x16xf32>, vector<16x16xf32> -> vector<16x16xf32>
    %cst_93 = arith.constant 0.353553385 : f32
    %185 = vector.broadcast %cst_93 : f32 to vector<16x16xf32>
    %186 = arith.mulf %184, %185 : vector<16x16xf32>
    %187 = arith.addf %186, %5 : vector<16x16xf32>
    %cst_94 = arith.constant dense<0xFF800000> : vector<16xf32>
    %188 = vector.multi_reduction <maximumf>, %187, %cst_94 [1] : vector<16x16xf32> to vector<16xf32>
    %189 = vector.shape_cast %188 : vector<16xf32> to vector<16x1xf32>
    %190 = vector.broadcast %189 : vector<16x1xf32> to vector<16x16xf32>
    %191 = arith.subf %187, %190 : vector<16x16xf32>
    %192 = math.exp %191 : vector<16x16xf32>
    %cst_95 = arith.constant dense<0.000000e+00> : vector<16xf32>
    %193 = vector.multi_reduction <add>, %192, %cst_95 [1] : vector<16x16xf32> to vector<16xf32>
    %194 = vector.shape_cast %193 : vector<16xf32> to vector<16x1xf32>
    %195 = vector.broadcast %194 : vector<16x1xf32> to vector<16x16xf32>
    %196 = arith.divf %192, %195 : vector<16x16xf32>
    %cst_96 = arith.constant dense<0.000000e+00> : vector<16x8xf32>
    %197 = tpu.matmul %196, %182, %cst_96 {dimension_numbers = #tpu.dot_dimension_numbers<[1], [0], [0], [1], [0, 0, 1, 1], [], []>} : vector<16x16xf32>, vector<16x8xf32>, vector<16x8xf32> -> vector<16x8xf32>
    %198 = vector.extract_strided_slice %178 {offsets = [0, 0], sizes = [8, 32], strides = [1, 1]} : vector<32x32xf32> to vector<8x32xf32>
    %cst_97 = arith.constant dense<0.000000e+00> : vector<16x32xf32>
    %199 = tpu.matmul %197, %198, %cst_97 {dimension_numbers = #tpu.dot_dimension_numbers<[1], [0], [0], [1], [0, 0, 1, 1], [], []>} : vector<16x8xf32>, vector<8x32xf32>, vector<16x32xf32> -> vector<16x32xf32>
    %200 = arith.addf %179, %199 : vector<16x32xf32>
    %201 = vector.extract_strided_slice %176 {offsets = [0, 8], sizes = [16, 8], strides = [1, 1]} : vector<16x96xf32> to vector<16x8xf32>
    %202 = vector.extract_strided_slice %176 {offsets = [0, 40], sizes = [16, 8], strides = [1, 1]} : vector<16x96xf32> to vector<16x8xf32>
    %203 = vector.extract_strided_slice %176 {offsets = [0, 72], sizes = [16, 8], strides = [1, 1]} : vector<16x96xf32> to vector<16x8xf32>
    %204 = tpu.transpose %202, [1, 0] : vector<16x8xf32> -> vector<8x16xf32>
    %cst_98 = arith.constant dense<0.000000e+00> : vector<16x16xf32>
    %205 = tpu.matmul %201, %204, %cst_98 {dimension_numbers = #tpu.dot_dimension_numbers<[1], [0], [0], [1], [0, 0, 1, 1], [], []>} : vector<16x8xf32>, vector<8x16xf32>, vector<16x16xf32> -> vector<16x16xf32>
    %cst_99 = arith.constant 0.353553385 : f32
    %206 = vector.broadcast %cst_99 : f32 to vector<16x16xf32>
    %207 = arith.mulf %205, %206 : vector<16x16xf32>
    %208 = arith.addf %207, %5 : vector<16x16xf32>
    %cst_100 = arith.constant dense<0xFF800000> : vector<16xf32>
    %209 = vector.multi_reduction <maximumf>, %208, %cst_100 [1] : vector<16x16xf32> to vector<16xf32>
    %210 = vector.shape_cast %209 : vector<16xf32> to vector<16x1xf32>
    %211 = vector.broadcast %210 : vector<16x1xf32> to vector<16x16xf32>
    %212 = arith.subf %208, %211 : vector<16x16xf32>
    %213 = math.exp %212 : vector<16x16xf32>
    %cst_101 = arith.constant dense<0.000000e+00> : vector<16xf32>
    %214 = vector.multi_reduction <add>, %213, %cst_101 [1] : vector<16x16xf32> to vector<16xf32>
    %215 = vector.shape_cast %214 : vector<16xf32> to vector<16x1xf32>
    %216 = vector.broadcast %215 : vector<16x1xf32> to vector<16x16xf32>
    %217 = arith.divf %213, %216 : vector<16x16xf32>
    %cst_102 = arith.constant dense<0.000000e+00> : vector<16x8xf32>
    %218 = tpu.matmul %217, %203, %cst_102 {dimension_numbers = #tpu.dot_dimension_numbers<[1], [0], [0], [1], [0, 0, 1, 1], [], []>} : vector<16x16xf32>, vector<16x8xf32>, vector<16x8xf32> -> vector<16x8xf32>
    %219 = vector.extract_strided_slice %178 {offsets = [8, 0], sizes = [8, 32], strides = [1, 1]} : vector<32x32xf32> to vector<8x32xf32>
    %cst_103 = arith.constant dense<0.000000e+00> : vector<16x32xf32>
    %220 = tpu.matmul %218, %219, %cst_103 {dimension_numbers = #tpu.dot_dimension_numbers<[1], [0], [0], [1], [0, 0, 1, 1], [], []>} : vector<16x8xf32>, vector<8x32xf32>, vector<16x32xf32> -> vector<16x32xf32>
    %221 = arith.addf %200, %220 : vector<16x32xf32>
    %222 = vector.extract_strided_slice %176 {offsets = [0, 16], sizes = [16, 8], strides = [1, 1]} : vector<16x96xf32> to vector<16x8xf32>
    %223 = vector.extract_strided_slice %176 {offsets = [0, 48], sizes = [16, 8], strides = [1, 1]} : vector<16x96xf32> to vector<16x8xf32>
    %224 = vector.extract_strided_slice %176 {offsets = [0, 80], sizes = [16, 8], strides = [1, 1]} : vector<16x96xf32> to vector<16x8xf32>
    %225 = tpu.transpose %223, [1, 0] : vector<16x8xf32> -> vector<8x16xf32>
    %cst_104 = arith.constant dense<0.000000e+00> : vector<16x16xf32>
    %226 = tpu.matmul %222, %225, %cst_104 {dimension_numbers = #tpu.dot_dimension_numbers<[1], [0], [0], [1], [0, 0, 1, 1], [], []>} : vector<16x8xf32>, vector<8x16xf32>, vector<16x16xf32> -> vector<16x16xf32>
    %cst_105 = arith.constant 0.353553385 : f32
    %227 = vector.broadcast %cst_105 : f32 to vector<16x16xf32>
    %228 = arith.mulf %226, %227 : vector<16x16xf32>
    %229 = arith.addf %228, %5 : vector<16x16xf32>
    %cst_106 = arith.constant dense<0xFF800000> : vector<16xf32>
    %230 = vector.multi_reduction <maximumf>, %229, %cst_106 [1] : vector<16x16xf32> to vector<16xf32>
    %231 = vector.shape_cast %230 : vector<16xf32> to vector<16x1xf32>
    %232 = vector.broadcast %231 : vector<16x1xf32> to vector<16x16xf32>
    %233 = arith.subf %229, %232 : vector<16x16xf32>
    %234 = math.exp %233 : vector<16x16xf32>
    %cst_107 = arith.constant dense<0.000000e+00> : vector<16xf32>
    %235 = vector.multi_reduction <add>, %234, %cst_107 [1] : vector<16x16xf32> to vector<16xf32>
    %236 = vector.shape_cast %235 : vector<16xf32> to vector<16x1xf32>
    %237 = vector.broadcast %236 : vector<16x1xf32> to vector<16x16xf32>
    %238 = arith.divf %234, %237 : vector<16x16xf32>
    %cst_108 = arith.constant dense<0.000000e+00> : vector<16x8xf32>
    %239 = tpu.matmul %238, %224, %cst_108 {dimension_numbers = #tpu.dot_dimension_numbers<[1], [0], [0], [1], [0, 0, 1, 1], [], []>} : vector<16x16xf32>, vector<16x8xf32>, vector<16x8xf32> -> vector<16x8xf32>
    %240 = vector.extract_strided_slice %178 {offsets = [16, 0], sizes = [8, 32], strides = [1, 1]} : vector<32x32xf32> to vector<8x32xf32>
    %cst_109 = arith.constant dense<0.000000e+00> : vector<16x32xf32>
    %241 = tpu.matmul %239, %240, %cst_109 {dimension_numbers = #tpu.dot_dimension_numbers<[1], [0], [0], [1], [0, 0, 1, 1], [], []>} : vector<16x8xf32>, vector<8x32xf32>, vector<16x32xf32> -> vector<16x32xf32>
    %242 = arith.addf %221, %241 : vector<16x32xf32>
    %243 = vector.extract_strided_slice %176 {offsets = [0, 24], sizes = [16, 8], strides = [1, 1]} : vector<16x96xf32> to vector<16x8xf32>
    %244 = vector.extract_strided_slice %176 {offsets = [0, 56], sizes = [16, 8], strides = [1, 1]} : vector<16x96xf32> to vector<16x8xf32>
    %245 = vector.extract_strided_slice %176 {offsets = [0, 88], sizes = [16, 8], strides = [1, 1]} : vector<16x96xf32> to vector<16x8xf32>
    %246 = tpu.transpose %244, [1, 0] : vector<16x8xf32> -> vector<8x16xf32>
    %cst_110 = arith.constant dense<0.000000e+00> : vector<16x16xf32>
    %247 = tpu.matmul %243, %246, %cst_110 {dimension_numbers = #tpu.dot_dimension_numbers<[1], [0], [0], [1], [0, 0, 1, 1], [], []>} : vector<16x8xf32>, vector<8x16xf32>, vector<16x16xf32> -> vector<16x16xf32>
    %cst_111 = arith.constant 0.353553385 : f32
    %248 = vector.broadcast %cst_111 : f32 to vector<16x16xf32>
    %249 = arith.mulf %247, %248 : vector<16x16xf32>
    %250 = arith.addf %249, %5 : vector<16x16xf32>
    %cst_112 = arith.constant dense<0xFF800000> : vector<16xf32>
    %251 = vector.multi_reduction <maximumf>, %250, %cst_112 [1] : vector<16x16xf32> to vector<16xf32>
    %252 = vector.shape_cast %251 : vector<16xf32> to vector<16x1xf32>
    %253 = vector.broadcast %252 : vector<16x1xf32> to vector<16x16xf32>
    %254 = arith.subf %250, %253 : vector<16x16xf32>
    %255 = math.exp %254 : vector<16x16xf32>
    %cst_113 = arith.constant dense<0.000000e+00> : vector<16xf32>
    %256 = vector.multi_reduction <add>, %255, %cst_113 [1] : vector<16x16xf32> to vector<16xf32>
    %257 = vector.shape_cast %256 : vector<16xf32> to vector<16x1xf32>
    %258 = vector.broadcast %257 : vector<16x1xf32> to vector<16x16xf32>
    %259 = arith.divf %255, %258 : vector<16x16xf32>
    %cst_114 = arith.constant dense<0.000000e+00> : vector<16x8xf32>
    %260 = tpu.matmul %259, %245, %cst_114 {dimension_numbers = #tpu.dot_dimension_numbers<[1], [0], [0], [1], [0, 0, 1, 1], [], []>} : vector<16x16xf32>, vector<16x8xf32>, vector<16x8xf32> -> vector<16x8xf32>
    %261 = vector.extract_strided_slice %178 {offsets = [24, 0], sizes = [8, 32], strides = [1, 1]} : vector<32x32xf32> to vector<8x32xf32>
    %cst_115 = arith.constant dense<0.000000e+00> : vector<16x32xf32>
    %262 = tpu.matmul %260, %261, %cst_115 {dimension_numbers = #tpu.dot_dimension_numbers<[1], [0], [0], [1], [0, 0, 1, 1], [], []>} : vector<16x8xf32>, vector<8x32xf32>, vector<16x32xf32> -> vector<16x32xf32>
    %263 = arith.addf %242, %262 : vector<16x32xf32>
    %c1_116 = arith.constant 1 : index
    %c0_117 = arith.constant 0 : index
    %c0_118 = arith.constant 0 : index
    %264 = vector.load %arg8[%c1_116, %c0_117, %c0_118] : memref<2x1x32xf32, #tpu.memory_space<vmem>>, vector<1x1x32xf32>
    %265 = vector.shape_cast %264 : vector<1x1x32xf32> to vector<1x32xf32>
    %266 = vector.broadcast %265 : vector<1x32xf32> to vector<16x32xf32>
    %267 = arith.addf %263, %266 : vector<16x32xf32>
    %268 = arith.addf %169, %267 : vector<16x32xf32>
    %c1_119 = arith.constant 1 : index
    %c0_120 = arith.constant 0 : index
    %c0_121 = arith.constant 0 : index
    %269 = vector.load %arg9[%c1_119, %c0_120, %c0_121] : memref<2x1x32xf32, #tpu.memory_space<vmem>>, vector<1x1x32xf32>
    %270 = vector.shape_cast %269 : vector<1x1x32xf32> to vector<1x32xf32>
    %c1_122 = arith.constant 1 : index
    %c0_123 = arith.constant 0 : index
    %c0_124 = arith.constant 0 : index
    %271 = vector.load %arg10[%c1_122, %c0_123, %c0_124] : memref<2x1x32xf32, #tpu.memory_space<vmem>>, vector<1x1x32xf32>
    %272 = vector.shape_cast %271 : vector<1x1x32xf32> to vector<1x32xf32>
    %cst_125 = arith.constant dense<0.000000e+00> : vector<16xf32>
    %273 = vector.multi_reduction <add>, %268, %cst_125 [1] : vector<16x32xf32> to vector<16xf32>
    %274 = vector.shape_cast %273 : vector<16xf32> to vector<16x1xf32>
    %cst_126 = arith.constant 3.200000e+01 : f32
    %275 = vector.broadcast %cst_126 : f32 to vector<16x1xf32>
    %276 = arith.divf %274, %275 : vector<16x1xf32>
    %277 = vector.broadcast %276 : vector<16x1xf32> to vector<16x32xf32>
    %278 = arith.subf %268, %277 : vector<16x32xf32>
    %279 = arith.mulf %278, %278 : vector<16x32xf32>
    %cst_127 = arith.constant dense<0.000000e+00> : vector<16xf32>
    %280 = vector.multi_reduction <add>, %279, %cst_127 [1] : vector<16x32xf32> to vector<16xf32>
    %281 = vector.shape_cast %280 : vector<16xf32> to vector<16x1xf32>
    %cst_128 = arith.constant 3.200000e+01 : f32
    %282 = vector.broadcast %cst_128 : f32 to vector<16x1xf32>
    %283 = arith.divf %281, %282 : vector<16x1xf32>
    %cst_129 = arith.constant 9.99999974E-6 : f32
    %284 = vector.broadcast %cst_129 : f32 to vector<16x1xf32>
    %285 = arith.addf %283, %284 : vector<16x1xf32>
    %286 = math.rsqrt %285 : vector<16x1xf32>
    %287 = vector.broadcast %286 : vector<16x1xf32> to vector<16x32xf32>
    %288 = arith.mulf %278, %287 : vector<16x32xf32>
    %289 = vector.broadcast %270 : vector<1x32xf32> to vector<16x32xf32>
    %290 = arith.mulf %288, %289 : vector<16x32xf32>
    %291 = vector.broadcast %272 : vector<1x32xf32> to vector<16x32xf32>
    %292 = arith.addf %290, %291 : vector<16x32xf32>
    %c1_130 = arith.constant 1 : index
    %c0_131 = arith.constant 0 : index
    %c0_132 = arith.constant 0 : index
    %293 = vector.load %arg11[%c1_130, %c0_131, %c0_132] : memref<2x32x64xf32, #tpu.memory_space<vmem>>, vector<1x32x64xf32>
    %294 = vector.shape_cast %293 : vector<1x32x64xf32> to vector<32x64xf32>
    %cst_133 = arith.constant dense<0.000000e+00> : vector<16x64xf32>
    %295 = tpu.matmul %292, %294, %cst_133 {dimension_numbers = #tpu.dot_dimension_numbers<[1], [0], [0], [1], [0, 0, 1, 1], [], []>} : vector<16x32xf32>, vector<32x64xf32>, vector<16x64xf32> -> vector<16x64xf32>
    %c1_134 = arith.constant 1 : index
    %c0_135 = arith.constant 0 : index
    %c0_136 = arith.constant 0 : index
    %296 = vector.load %arg12[%c1_134, %c0_135, %c0_136] : memref<2x1x64xf32, #tpu.memory_space<vmem>>, vector<1x1x64xf32>
    %297 = vector.shape_cast %296 : vector<1x1x64xf32> to vector<1x64xf32>
    %298 = vector.broadcast %297 : vector<1x64xf32> to vector<16x64xf32>
    %299 = arith.addf %295, %298 : vector<16x64xf32>
    %cst_137 = arith.constant 0.000000e+00 : f32
    %300 = vector.broadcast %cst_137 : f32 to vector<16x64xf32>
    %301 = arith.maximumf %299, %300 : vector<16x64xf32>
    %c1_138 = arith.constant 1 : index
    %c0_139 = arith.constant 0 : index
    %c0_140 = arith.constant 0 : index
    %302 = vector.load %arg13[%c1_138, %c0_139, %c0_140] : memref<2x64x32xf32, #tpu.memory_space<vmem>>, vector<1x64x32xf32>
    %303 = vector.shape_cast %302 : vector<1x64x32xf32> to vector<64x32xf32>
    %cst_141 = arith.constant dense<0.000000e+00> : vector<16x32xf32>
    %304 = tpu.matmul %301, %303, %cst_141 {dimension_numbers = #tpu.dot_dimension_numbers<[1], [0], [0], [1], [0, 0, 1, 1], [], []>} : vector<16x64xf32>, vector<64x32xf32>, vector<16x32xf32> -> vector<16x32xf32>
    %305 = arith.addf %292, %304 : vector<16x32xf32>
    %c1_142 = arith.constant 1 : index
    %c0_143 = arith.constant 0 : index
    %c0_144 = arith.constant 0 : index
    %306 = vector.load %arg14[%c1_142, %c0_143, %c0_144] : memref<2x1x32xf32, #tpu.memory_space<vmem>>, vector<1x1x32xf32>
    %307 = vector.shape_cast %306 : vector<1x1x32xf32> to vector<1x32xf32>
    %308 = vector.broadcast %307 : vector<1x32xf32> to vector<16x32xf32>
    %309 = arith.addf %305, %308 : vector<16x32xf32>
    %c1_145 = arith.constant 1 : index
    %c0_146 = arith.constant 0 : index
    %c0_147 = arith.constant 0 : index
    %310 = vector.load %arg15[%c1_145, %c0_146, %c0_147] : memref<2x1x32xf32, #tpu.memory_space<vmem>>, vector<1x1x32xf32>
    %311 = vector.shape_cast %310 : vector<1x1x32xf32> to vector<1x32xf32>
    %c1_148 = arith.constant 1 : index
    %c0_149 = arith.constant 0 : index
    %c0_150 = arith.constant 0 : index
    %312 = vector.load %arg16[%c1_148, %c0_149, %c0_150] : memref<2x1x32xf32, #tpu.memory_space<vmem>>, vector<1x1x32xf32>
    %313 = vector.shape_cast %312 : vector<1x1x32xf32> to vector<1x32xf32>
    %cst_151 = arith.constant dense<0.000000e+00> : vector<16xf32>
    %314 = vector.multi_reduction <add>, %309, %cst_151 [1] : vector<16x32xf32> to vector<16xf32>
    %315 = vector.shape_cast %314 : vector<16xf32> to vector<16x1xf32>
    %cst_152 = arith.constant 3.200000e+01 : f32
    %316 = vector.broadcast %cst_152 : f32 to vector<16x1xf32>
    %317 = arith.divf %315, %316 : vector<16x1xf32>
    %318 = vector.broadcast %317 : vector<16x1xf32> to vector<16x32xf32>
    %319 = arith.subf %309, %318 : vector<16x32xf32>
    %320 = arith.mulf %319, %319 : vector<16x32xf32>
    %cst_153 = arith.constant dense<0.000000e+00> : vector<16xf32>
    %321 = vector.multi_reduction <add>, %320, %cst_153 [1] : vector<16x32xf32> to vector<16xf32>
    %322 = vector.shape_cast %321 : vector<16xf32> to vector<16x1xf32>
    %cst_154 = arith.constant 3.200000e+01 : f32
    %323 = vector.broadcast %cst_154 : f32 to vector<16x1xf32>
    %324 = arith.divf %322, %323 : vector<16x1xf32>
    %cst_155 = arith.constant 9.99999974E-6 : f32
    %325 = vector.broadcast %cst_155 : f32 to vector<16x1xf32>
    %326 = arith.addf %324, %325 : vector<16x1xf32>
    %327 = math.rsqrt %326 : vector<16x1xf32>
    %328 = vector.broadcast %327 : vector<16x1xf32> to vector<16x32xf32>
    %329 = arith.mulf %319, %328 : vector<16x32xf32>
    %330 = vector.broadcast %311 : vector<1x32xf32> to vector<16x32xf32>
    %331 = arith.mulf %329, %330 : vector<16x32xf32>
    %332 = vector.broadcast %313 : vector<1x32xf32> to vector<16x32xf32>
    %333 = arith.addf %331, %332 : vector<16x32xf32>
    %c0_156 = arith.constant 0 : index
    %c0_157 = arith.constant 0 : index
    %334 = vector.load %arg17[%c0_156, %c0_157] : memref<32x128xf32, #tpu.memory_space<vmem>>, vector<32x128xf32>
    %c0_158 = arith.constant 0 : index
    %c0_159 = arith.constant 0 : index
    %335 = vector.load %arg18[%c0_158, %c0_159] : memref<1x128xf32, #tpu.memory_space<vmem>>, vector<1x128xf32>
    %cst_160 = arith.constant dense<0.000000e+00> : vector<16x128xf32>
    %336 = tpu.matmul %333, %334, %cst_160 {dimension_numbers = #tpu.dot_dimension_numbers<[1], [0], [0], [1], [0, 0, 1, 1], [], []>} : vector<16x32xf32>, vector<32x128xf32>, vector<16x128xf32> -> vector<16x128xf32>
    %337 = vector.broadcast %335 : vector<1x128xf32> to vector<16x128xf32>
    %338 = arith.addf %336, %337 : vector<16x128xf32>
    %cst_161 = arith.constant 0.000000e+00 : f32
    %339 = vector.broadcast %cst_161 : f32 to vector<16x128xf32>
    %340 = arith.maximumf %338, %339 : vector<16x128xf32>
    %c0_162 = arith.constant 0 : index
    %c0_163 = arith.constant 0 : index
    %341 = vector.load %arg19[%c0_162, %c0_163] : memref<128x64xf32, #tpu.memory_space<vmem>>, vector<128x64xf32>
    %c0_164 = arith.constant 0 : index
    %c0_165 = arith.constant 0 : index
    %342 = vector.load %arg20[%c0_164, %c0_165] : memref<1x64xf32, #tpu.memory_space<vmem>>, vector<1x64xf32>
    %cst_166 = arith.constant dense<0.000000e+00> : vector<16x64xf32>
    %343 = tpu.matmul %340, %341, %cst_166 {dimension_numbers = #tpu.dot_dimension_numbers<[1], [0], [0], [1], [0, 0, 1, 1], [], []>} : vector<16x128xf32>, vector<128x64xf32>, vector<16x64xf32> -> vector<16x64xf32>
    %344 = vector.broadcast %342 : vector<1x64xf32> to vector<16x64xf32>
    %345 = arith.addf %343, %344 : vector<16x64xf32>
    %cst_167 = arith.constant 0.000000e+00 : f32
    %346 = vector.broadcast %cst_167 : f32 to vector<16x64xf32>
    %347 = arith.maximumf %345, %346 : vector<16x64xf32>
    %c0_168 = arith.constant 0 : index
    %c0_169 = arith.constant 0 : index
    %348 = vector.load %arg21[%c0_168, %c0_169] : memref<64x128xf32, #tpu.memory_space<vmem>>, vector<64x128xf32>
    %c0_170 = arith.constant 0 : index
    %c0_171 = arith.constant 0 : index
    %349 = vector.load %arg22[%c0_170, %c0_171] : memref<1x128xf32, #tpu.memory_space<vmem>>, vector<1x128xf32>
    %cst_172 = arith.constant dense<0.000000e+00> : vector<16x128xf32>
    %350 = tpu.matmul %347, %348, %cst_172 {dimension_numbers = #tpu.dot_dimension_numbers<[1], [0], [0], [1], [0, 0, 1, 1], [], []>} : vector<16x64xf32>, vector<64x128xf32>, vector<16x128xf32> -> vector<16x128xf32>
    %351 = vector.broadcast %349 : vector<1x128xf32> to vector<16x128xf32>
    %352 = arith.addf %350, %351 : vector<16x128xf32>
    %353 = math.tanh %352 : vector<16x128xf32>
    %c0_173 = arith.constant 0 : index
    %c0_174 = arith.constant 0 : index
    %354 = vector.load %arg23[%c0_173, %c0_174] : memref<16x128xf32, #tpu.memory_space<vmem>>, vector<16x128xf32>
    tpu.vector_store %arg23[%c0_173, %c0_174], %353 {strides = array<i32>} : memref<16x128xf32, #tpu.memory_space<vmem>>, vector<16x128xf32>,
    return
  }
  func.func @transform_0(%arg0: i32) -> (i32, i32) {
    %c0_i32 = arith.constant 0 : i32
    %c0_i32_0 = arith.constant 0 : i32
    %c0_i32_1 = arith.constant 0 : i32
    return %c0_i32, %c0_i32_0 : i32, i32
  }
  func.func @transform_1(%arg0: i32) -> (i32, i32) {
    %c0_i32 = arith.constant 0 : i32
    %c0_i32_0 = arith.constant 0 : i32
    %c0_i32_1 = arith.constant 0 : i32
    return %c0_i32, %c0_i32_0 : i32, i32
  }
  func.func @transform_2(%arg0: i32) -> (i32, i32) {
    %c0_i32 = arith.constant 0 : i32
    %c0_i32_0 = arith.constant 0 : i32
    %c0_i32_1 = arith.constant 0 : i32
    return %c0_i32, %c0_i32_0 : i32, i32
  }
  func.func @transform_3(%arg0: i32) -> (i32, i32) {
    %c0_i32 = arith.constant 0 : i32
    %c0_i32_0 = arith.constant 0 : i32
    %c0_i32_1 = arith.constant 0 : i32
    return %c0_i32, %c0_i32_0 : i32, i32
  }
  func.func @transform_4(%arg0: i32) -> (i32, i32, i32) {
    %c0_i32 = arith.constant 0 : i32
    %c0_i32_0 = arith.constant 0 : i32
    %c0_i32_1 = arith.constant 0 : i32
    %c0_i32_2 = arith.constant 0 : i32
    return %c0_i32, %c0_i32_0, %c0_i32_1 : i32, i32, i32
  }
  func.func @transform_5(%arg0: i32) -> (i32, i32, i32) {
    %c0_i32 = arith.constant 0 : i32
    %c0_i32_0 = arith.constant 0 : i32
    %c0_i32_1 = arith.constant 0 : i32
    %c0_i32_2 = arith.constant 0 : i32
    return %c0_i32, %c0_i32_0, %c0_i32_1 : i32, i32, i32
  }
  func.func @transform_6(%arg0: i32) -> (i32, i32, i32) {
    %c0_i32 = arith.constant 0 : i32
    %c0_i32_0 = arith.constant 0 : i32
    %c0_i32_1 = arith.constant 0 : i32
    %c0_i32_2 = arith.constant 0 : i32
    return %c0_i32, %c0_i32_0, %c0_i32_1 : i32, i32, i32
  }
  func.func @transform_7(%arg0: i32) -> (i32, i32, i32) {
    %c0_i32 = arith.constant 0 : i32
    %c0_i32_0 = arith.constant 0 : i32
    %c0_i32_1 = arith.constant 0 : i32
    %c0_i32_2 = arith.constant 0 : i32
    return %c0_i32, %c0_i32_0, %c0_i32_1 : i32, i32, i32
  }
  func.func @transform_8(%arg0: i32) -> (i32, i32, i32) {
    %c0_i32 = arith.constant 0 : i32
    %c0_i32_0 = arith.constant 0 : i32
    %c0_i32_1 = arith.constant 0 : i32
    %c0_i32_2 = arith.constant 0 : i32
    return %c0_i32, %c0_i32_0, %c0_i32_1 : i32, i32, i32
  }
  func.func @transform_9(%arg0: i32) -> (i32, i32, i32) {
    %c0_i32 = arith.constant 0 : i32
    %c0_i32_0 = arith.constant 0 : i32
    %c0_i32_1 = arith.constant 0 : i32
    %c0_i32_2 = arith.constant 0 : i32
    return %c0_i32, %c0_i32_0, %c0_i32_1 : i32, i32, i32
  }
  func.func @transform_10(%arg0: i32) -> (i32, i32, i32) {
    %c0_i32 = arith.constant 0 : i32
    %c0_i32_0 = arith.constant 0 : i32
    %c0_i32_1 = arith.constant 0 : i32
    %c0_i32_2 = arith.constant 0 : i32
    return %c0_i32, %c0_i32_0, %c0_i32_1 : i32, i32, i32
  }
  func.func @transform_11(%arg0: i32) -> (i32, i32, i32) {
    %c0_i32 = arith.constant 0 : i32
    %c0_i32_0 = arith.constant 0 : i32
    %c0_i32_1 = arith.constant 0 : i32
    %c0_i32_2 = arith.constant 0 : i32
    return %c0_i32, %c0_i32_0, %c0_i32_1 : i32, i32, i32
  }
  func.func @transform_12(%arg0: i32) -> (i32, i32, i32) {
    %c0_i32 = arith.constant 0 : i32
    %c0_i32_0 = arith.constant 0 : i32
    %c0_i32_1 = arith.constant 0 : i32
    %c0_i32_2 = arith.constant 0 : i32
    return %c0_i32, %c0_i32_0, %c0_i32_1 : i32, i32, i32
  }
  func.func @transform_13(%arg0: i32) -> (i32, i32, i32) {
    %c0_i32 = arith.constant 0 : i32
    %c0_i32_0 = arith.constant 0 : i32
    %c0_i32_1 = arith.constant 0 : i32
    %c0_i32_2 = arith.constant 0 : i32
    return %c0_i32, %c0_i32_0, %c0_i32_1 : i32, i32, i32
  }
  func.func @transform_14(%arg0: i32) -> (i32, i32, i32) {
    %c0_i32 = arith.constant 0 : i32
    %c0_i32_0 = arith.constant 0 : i32
    %c0_i32_1 = arith.constant 0 : i32
    %c0_i32_2 = arith.constant 0 : i32
    return %c0_i32, %c0_i32_0, %c0_i32_1 : i32, i32, i32
  }
  func.func @transform_15(%arg0: i32) -> (i32, i32, i32) {
    %c0_i32 = arith.constant 0 : i32
    %c0_i32_0 = arith.constant 0 : i32
    %c0_i32_1 = arith.constant 0 : i32
    %c0_i32_2 = arith.constant 0 : i32
    return %c0_i32, %c0_i32_0, %c0_i32_1 : i32, i32, i32
  }
  func.func @transform_16(%arg0: i32) -> (i32, i32) {
    %c0_i32 = arith.constant 0 : i32
    %c0_i32_0 = arith.constant 0 : i32
    %c0_i32_1 = arith.constant 0 : i32
    return %c0_i32, %c0_i32_0 : i32, i32
  }
  func.func @transform_17(%arg0: i32) -> (i32, i32) {
    %c0_i32 = arith.constant 0 : i32
    %c0_i32_0 = arith.constant 0 : i32
    %c0_i32_1 = arith.constant 0 : i32
    return %c0_i32, %c0_i32_0 : i32, i32
  }
  func.func @transform_18(%arg0: i32) -> (i32, i32) {
    %c0_i32 = arith.constant 0 : i32
    %c0_i32_0 = arith.constant 0 : i32
    %c0_i32_1 = arith.constant 0 : i32
    return %c0_i32, %c0_i32_0 : i32, i32
  }
  func.func @transform_19(%arg0: i32) -> (i32, i32) {
    %c0_i32 = arith.constant 0 : i32
    %c0_i32_0 = arith.constant 0 : i32
    %c0_i32_1 = arith.constant 0 : i32
    return %c0_i32, %c0_i32_0 : i32, i32
  }
  func.func @transform_20(%arg0: i32) -> (i32, i32) {
    %c0_i32 = arith.constant 0 : i32
    %c0_i32_0 = arith.constant 0 : i32
    %c0_i32_1 = arith.constant 0 : i32
    return %c0_i32, %c0_i32_0 : i32, i32
  }
  func.func @transform_21(%arg0: i32) -> (i32, i32) {
    %c0_i32 = arith.constant 0 : i32
    %c0_i32_0 = arith.constant 0 : i32
    %c0_i32_1 = arith.constant 0 : i32
    return %c0_i32, %c0_i32_0 : i32, i32
  }
  func.func @transform_22(%arg0: i32) -> (i32, i32) {
    %c0_i32 = arith.constant 0 : i32
    %c0_i32_0 = arith.constant 0 : i32
    %c0_i32_1 = arith.constant 0 : i32
    return %c0_i32, %c0_i32_0 : i32, i32
  }
}

</mosaic_0001>

<llo_original>
// kernel: _lambda_.1
$region0: #{_lambda_.1}
  #allocation0 [shape = 'u32[]', space=smem, size = 0x4, offset = 0x4, fixed_abs, tag = 'smem constant byte address 0x4 - core index']
  #allocation1 [shape = 'u32[144,128]{1,0:T(1,128)}', space=vmem, size = 0x12000, scoped, tag = 'internal scratch']
  %s0 = inlined_call_operand.vmem [shape: f32[16,16], index: 0, kind: input, shape index: {}]
  %s1 = inlined_call_operand.vmem [shape: f32[16,32], index: 1, kind: input, shape index: {}]
  %s2 = inlined_call_operand.vmem [shape: f32[16,32], index: 2, kind: input, shape index: {}]
  %s3 = inlined_call_operand.vmem [shape: f32[16,16], index: 3, kind: input, shape index: {}]
  %s4 = inlined_call_operand.vmem [shape: f32[2,32,96], index: 4, kind: input, shape index: {}]
  %s5 = inlined_call_operand.vmem [shape: f32[2,1,96], index: 5, kind: input, shape index: {}]
  %s6 = inlined_call_operand.vmem [shape: f32[2,32,32], index: 6, kind: input, shape index: {}]
  %s7 = inlined_call_operand.vmem [shape: f32[2,1,32], index: 7, kind: input, shape index: {}]
  %s8 = inlined_call_operand.vmem [shape: f32[2,1,32], index: 8, kind: input, shape index: {}]
  %s9 = inlined_call_operand.vmem [shape: f32[2,1,32], index: 9, kind: input, shape index: {}]
  %s10 = inlined_call_operand.vmem [shape: f32[2,32,64], index: 10, kind: input, shape index: {}]
  %s11 = inlined_call_operand.vmem [shape: f32[2,1,64], index: 11, kind: input, shape index: {}]
  %s12 = inlined_call_operand.vmem [shape: f32[2,64,32], index: 12, kind: input, shape index: {}]
  %s13 = inlined_call_operand.vmem [shape: f32[2,1,32], index: 13, kind: input, shape index: {}]
  %s14 = inlined_call_operand.vmem [shape: f32[2,1,32], index: 14, kind: input, shape index: {}]
  %s15 = inlined_call_operand.vmem [shape: f32[2,1,32], index: 15, kind: input, shape index: {}]
  %s16 = inlined_call_operand.vmem [shape: f32[32,128], index: 16, kind: input, shape index: {}]
  %s17 = inlined_call_operand.vmem [shape: f32[1,128], index: 17, kind: input, shape index: {}]
  %s18 = inlined_call_operand.vmem [shape: f32[128,64], index: 18, kind: input, shape index: {}]
  %s19 = inlined_call_operand.vmem [shape: f32[1,64], index: 19, kind: input, shape index: {}]
  %s20 = inlined_call_operand.vmem [shape: f32[64,128], index: 20, kind: input, shape index: {}]
  %s21 = inlined_call_operand.vmem [shape: f32[1,128], index: 21, kind: input, shape index: {}]
  %s22 = inlined_call_operand.vmem [shape: f32[16,128], index: 22, kind: output, shape index: {}]
  %s23 = sld [smem:[#allocation0]]
  $region98: #{_lambda_.1} parent=0
    _
  %s25 = ssub.s32 1, %s23
  %s26 = scalar_select 0, %s25, %s23
  // Predicated region
  $region2: #{_lambda_.1} parent=0 // pred_check
    _
  $region3: #{_lambda_.1} parent=0 // pred_check_branch
    %28 = sbr.rel (0) target = $region5
  $region4: #{_lambda_.1} parent=0 // pred_region
    _
  $region5: #{_lambda_.1} parent=0 // pred_fallthru
    _
  // Predicated region
  $region6: #{_lambda_.1} parent=0 // pred_check
    _
  $region7: #{_lambda_.1} parent=0 // pred_check_branch
    %30 = sbr.rel (0) target = $region9
  $region8: #{_lambda_.1} parent=0 // pred_region
    _
  $region9: #{_lambda_.1} parent=0 // pred_fallthru
    _
  // Predicated region
  $region10: #{_lambda_.1} parent=0 // pred_check
    _
  $region11: #{_lambda_.1} parent=0 // pred_check_branch
    %32 = sbr.rel (0) target = $region13
  $region12: #{_lambda_.1} parent=0 // pred_region
    _
  $region13: #{_lambda_.1} parent=0 // pred_fallthru
    _
  // Predicated region
  $region14: #{_lambda_.1} parent=0 // pred_check
    _
  $region15: #{_lambda_.1} parent=0 // pred_check_branch
    %34 = sbr.rel (0) target = $region17
  $region16: #{_lambda_.1} parent=0 // pred_region
    _
  $region17: #{_lambda_.1} parent=0 // pred_fallthru
    _
  // Predicated region
  $region18: #{_lambda_.1} parent=0 // pred_check
    _
  $region19: #{_lambda_.1} parent=0 // pred_check_branch
    %36 = sbr.rel (0) target = $region21
  $region20: #{_lambda_.1} parent=0 // pred_region
    _
  $region21: #{_lambda_.1} parent=0 // pred_fallthru
    _
  // Predicated region
  $region22: #{_lambda_.1} parent=0 // pred_check
    _
  $region23: #{_lambda_.1} parent=0 // pred_check_branch
    %38 = sbr.rel (0) target = $region25
  $region24: #{_lambda_.1} parent=0 // pred_region
    _
  $region25: #{_lambda_.1} parent=0 // pred_fallthru
    _
  // Predicated region
  $region26: #{_lambda_.1} parent=0 // pred_check
    _
  $region27: #{_lambda_.1} parent=0 // pred_check_branch
    %40 = sbr.rel (0) target = $region29
  $region28: #{_lambda_.1} parent=0 // pred_region
    _
  $region29: #{_lambda_.1} parent=0 // pred_fallthru
    _
  // Predicated region
  $region30: #{_lambda_.1} parent=0 // pred_check
    _
  $region31: #{_lambda_.1} parent=0 // pred_check_branch
    %42 = sbr.rel (0) target = $region33
  $region32: #{_lambda_.1} parent=0 // pred_region
    _
  $region33: #{_lambda_.1} parent=0 // pred_fallthru
    _
  // Predicated region
  $region34: #{_lambda_.1} parent=0 // pred_check
    _
  $region35: #{_lambda_.1} parent=0 // pred_check_branch
    %44 = sbr.rel (0) target = $region37
  $region36: #{_lambda_.1} parent=0 // pred_region
    _
  $region37: #{_lambda_.1} parent=0 // pred_fallthru
    _
  // Predicated region
  $region38: #{_lambda_.1} parent=0 // pred_check
    _
  $region39: #{_lambda_.1} parent=0 // pred_check_branch
    %46 = sbr.rel (0) target = $region41
  $region40: #{_lambda_.1} parent=0 // pred_region
    _
  $region41: #{_lambda_.1} parent=0 // pred_fallthru
    _
  // Predicated region
  $region42: #{_lambda_.1} parent=0 // pred_check
    _
  $region43: #{_lambda_.1} parent=0 // pred_check_branch
    %48 = sbr.rel (0) target = $region45
  $region44: #{_lambda_.1} parent=0 // pred_region
    _
  $region45: #{_lambda_.1} parent=0 // pred_fallthru
    _
  // Predicated region
  $region46: #{_lambda_.1} parent=0 // pred_check
    _
  $region47: #{_lambda_.1} parent=0 // pred_check_branch
    %50 = sbr.rel (0) target = $region49
  $region48: #{_lambda_.1} parent=0 // pred_region
    _
  $region49: #{_lambda_.1} parent=0 // pred_fallthru
    _
  // Predicated region
  $region50: #{_lambda_.1} parent=0 // pred_check
    _
  $region51: #{_lambda_.1} parent=0 // pred_check_branch
    %52 = sbr.rel (0) target = $region53
  $region52: #{_lambda_.1} parent=0 // pred_region
    _
  $region53: #{_lambda_.1} parent=0 // pred_fallthru
    _
  // Predicated region
  $region54: #{_lambda_.1} parent=0 // pred_check
    _
  $region55: #{_lambda_.1} parent=0 // pred_check_branch
    %54 = sbr.rel (0) target = $region57
  $region56: #{_lambda_.1} parent=0 // pred_region
    _
  $region57: #{_lambda_.1} parent=0 // pred_fallthru
    _
  // Predicated region
  $region58: #{_lambda_.1} parent=0 // pred_check
    _
  $region59: #{_lambda_.1} parent=0 // pred_check_branch
    %56 = sbr.rel (0) target = $region61
  $region60: #{_lambda_.1} parent=0 // pred_region
    _
  $region61: #{_lambda_.1} parent=0 // pred_fallthru
    _
  // Predicated region
  $region62: #{_lambda_.1} parent=0 // pred_check
    _
  $region63: #{_lambda_.1} parent=0 // pred_check_branch
    %58 = sbr.rel (0) target = $region65
  $region64: #{_lambda_.1} parent=0 // pred_region
    _
  $region65: #{_lambda_.1} parent=0 // pred_fallthru
    _
  // Predicated region
  $region66: #{_lambda_.1} parent=0 // pred_check
    _
  $region67: #{_lambda_.1} parent=0 // pred_check_branch
    %60 = sbr.rel (0) target = $region69
  $region68: #{_lambda_.1} parent=0 // pred_region
    _
  $region69: #{_lambda_.1} parent=0 // pred_fallthru
    _
  // Predicated region
  $region70: #{_lambda_.1} parent=0 // pred_check
    _
  $region71: #{_lambda_.1} parent=0 // pred_check_branch
    %62 = sbr.rel (0) target = $region73
  $region72: #{_lambda_.1} parent=0 // pred_region
    _
  $region73: #{_lambda_.1} parent=0 // pred_fallthru
    _
  // Predicated region
  $region74: #{_lambda_.1} parent=0 // pred_check
    _
  $region75: #{_lambda_.1} parent=0 // pred_check_branch
    %64 = sbr.rel (0) target = $region77
  $region76: #{_lambda_.1} parent=0 // pred_region
    _
  $region77: #{_lambda_.1} parent=0 // pred_fallthru
    _
  // Predicated region
  $region78: #{_lambda_.1} parent=0 // pred_check
    _
  $region79: #{_lambda_.1} parent=0 // pred_check_branch
    %66 = sbr.rel (0) target = $region81
  $region80: #{_lambda_.1} parent=0 // pred_region
    _
  $region81: #{_lambda_.1} parent=0 // pred_fallthru
    _
  // Predicated region
  $region82: #{_lambda_.1} parent=0 // pred_check
    _
  $region83: #{_lambda_.1} parent=0 // pred_check_branch
    %68 = sbr.rel (0) target = $region85
  $region84: #{_lambda_.1} parent=0 // pred_region
    _
  $region85: #{_lambda_.1} parent=0 // pred_fallthru
    _
  // Predicated region
  $region86: #{_lambda_.1} parent=0 // pred_check
    _
  $region87: #{_lambda_.1} parent=0 // pred_check_branch
    %70 = sbr.rel (0) target = $region89
  $region88: #{_lambda_.1} parent=0 // pred_region
    _
  $region89: #{_lambda_.1} parent=0 // pred_fallthru
    _
  %v71 = vld [vmem:[%s0] sm:$0xff]
  %v72 = vld [vmem:[%s0 + $0x8] sm:$0xff]
  %v73 = vld [vmem:[%s1] sm:$0xff]
  %v74 = vld [vmem:[%s1 + $0x8] sm:$0xff]
  %v75 = vld [vmem:[%s2] sm:$0xff]
  %v76 = vld [vmem:[%s2 + $0x8] sm:$0xff]
  %vm77 = vcmask 130048
  %v79 = vsel %vm77, %v71, 0
  %v82 = vsel %vm77, %v72, 0
  %84 = vmatprep.subr.mxu0 0.0
  %85 = vmatpush1.msra.mxu0 %v73
  %86 = vmatprep.subr.mxu0 0.0
  %87 = vmatpush1.msra.mxu0 %v74
  %88 = vmatprep.subr.mxu0 0.0
  %89 = vmatpush1.msra.mxu0 0.0
  %90 = vmatprep.subr.mxu0 0.0
  %91 = vmatpush1.msra.mxu0 0.0
  %92 = vmatprep.subr.mxu0 0.0
  %93 = vmatpush1.msra.mxu0 0.0
  %94 = vmatprep.subr.mxu0 0.0
  %95 = vmatpush1.msra.mxu0 0.0
  %96 = vmatprep.subr.mxu0 0.0
  %97 = vmatpush1.msra.mxu0 0.0
  %98 = vmatprep.subr.mxu0 0.0
  %99 = vmatpush1.msra.mxu0 0.0
  %100 = vmatprep.subr.mxu0 0.0
  %101 = vmatpush1.msra.mxu0 0.0
  %102 = vmatprep.subr.mxu0 0.0
  %103 = vmatpush1.msra.mxu0 0.0
  %104 = vmatprep.subr.mxu0 0.0
  %105 = vmatpush1.msra.mxu0 0.0
  %106 = vmatprep.subr.mxu0 0.0
  %107 = vmatpush1.msra.mxu0 0.0
  %108 = vmatprep.subr.mxu0 0.0
  %109 = vmatpush1.msra.mxu0 0.0
  %110 = vmatprep.subr.mxu0 0.0
  %111 = vmatpush1.msra.mxu0 0.0
  %112 = vmatprep.subr.mxu0 0.0
  %113 = vmatpush1.msra.mxu0 0.0
  %114 = vmatprep.subr.mxu0 0.0
  %115 = vmatpush1.msra.mxu0 0.0
  %116 = vmatprep.subr.mxu0 0.0
  %117 = vmatpush1.msra.mxu0 0.0
  %118 = vmatprep.subr.mxu0 0.0
  %119 = vmatpush1.msra.mxu0 0.0
  %120 = vmatprep.subr.mxu0 0.0
  %121 = vmatpush1.msra.mxu0 0.0
  %122 = vmatprep.subr.mxu0 0.0
  %123 = vmatpush1.msra.mxu0 0.0
  %124 = vmatprep.subr.mxu0 0.0
  %125 = vmatpush1.msra.mxu0 0.0
  %126 = vmatprep.subr.mxu0 0.0
  %127 = vmatpush1.msra.mxu0 0.0
  %128 = vmatprep.subr.mxu0 0.0
  %129 = vmatpush1.msra.mxu0 0.0
  %130 = vmatprep.subr.mxu0 0.0
  %131 = vmatpush1.msra.mxu0 0.0
  %132 = vmatprep.subr.mxu0 0.0
  %133 = vmatpush1.msra.mxu0 0.0
  %134 = vmatprep.subr.mxu0 0.0
  %135 = vmatpush1.msra.mxu0 0.0
  %136 = vmatprep.subr.mxu0 0.0
  %137 = vmatpush1.msra.mxu0 0.0
  %138 = vmatprep.subr.mxu0 0.0
  %139 = vmatpush1.msra.mxu0 0.0
  %140 = vmatprep.subr.mxu0 0.0
  %141 = vmatpush1.msra.mxu0 0.0
  %142 = vmatprep.subr.mxu0 0.0
  %143 = vmatpush1.msra.mxu0 0.0
  %144 = vmatprep.subr.mxu0 0.0
  %145 = vmatpush1.msra.mxu0 0.0
  %146 = vmatprep.subr.mxu0 0.0
  %147 = vmatpush1.msra.mxu0 0.0
  %148 = vmatprep.mubr.f32.mxu0 0.0
  %149 = vmatmul.mubr.f32.gmra.mrb[0].mxu0 %v79
  %v150 = vpop.f32.mrb[0].mxu0
  %v151 = vadd.f32 %v75, %v150
  %v152 = vpop.f32.mrb[0].mxu0
  %153 = vmatprep.mubr.f32.mxu0 0.0
  %154 = vmatmul.mubr.f32.gmra.mrb[0].mxu0 %v82
  %v155 = vpop.f32.mrb[0].mxu0
  %v156 = vadd.f32 %v76, %v155
  %v157 = vpop.f32.mrb[0].mxu0
  %158 = vdwg.mxu0
  %v159 = vld [vmem:[%s3] sm:$0xff]
  %v160 = vld [vmem:[%s3 + $0x8] sm:$0xff]
  %v161 = vld [vmem:[%s4] sm:$0xff]
  %v162 = vld [vmem:[%s4 + $0x8] sm:$0xff]
  %v163 = vld [vmem:[%s4 + $0x10] sm:$0xff]
  %v164 = vld [vmem:[%s4 + $0x18] sm:$0xff]
  %v165 = vld [vmem:[%s5] sm:$0x1]
  %v167 = vlaneseq
  %v168 = vshrl.u32 %v167, 7
  %v169 = vsub.s32 0, %v168
  %v170 = vrot.slane %v165, %v169
  %vm172 = vcmask 261120
  %v174 = vsel %vm172, %v151, 0
  %v177 = vsel %vm172, %v156, 0
  %179 = vmatprep.subr.mxu0 0.0
  %180 = vmatpush1.msra.mxu0 %v161
  %181 = vmatprep.subr.mxu0 0.0
  %182 = vmatpush1.msra.mxu0 %v162
  %183 = vmatprep.subr.mxu0 0.0
  %184 = vmatpush1.msra.mxu0 %v163
  %185 = vmatprep.subr.mxu0 0.0
  %186 = vmatpush1.msra.mxu0 %v164
  %187 = vmatprep.subr.mxu0 0.0
  %188 = vmatpush1.msra.mxu0 0.0
  %189 = vmatprep.subr.mxu0 0.0
  %190 = vmatpush1.msra.mxu0 0.0
  %191 = vmatprep.subr.mxu0 0.0
  %192 = vmatpush1.msra.mxu0 0.0
  %193 = vmatprep.subr.mxu0 0.0
  %194 = vmatpush1.msra.mxu0 0.0
  %195 = vmatprep.subr.mxu0 0.0
  %196 = vmatpush1.msra.mxu0 0.0
  %197 = vmatprep.subr.mxu0 0.0
  %198 = vmatpush1.msra.mxu0 0.0
  %199 = vmatprep.subr.mxu0 0.0
  %200 = vmatpush1.msra.mxu0 0.0
  %201 = vmatprep.subr.mxu0 0.0
  %202 = vmatpush1.msra.mxu0 0.0
  %203 = vmatprep.subr.mxu0 0.0
  %204 = vmatpush1.msra.mxu0 0.0
  %205 = vmatprep.subr.mxu0 0.0
  %206 = vmatpush1.msra.mxu0 0.0
  %207 = vmatprep.subr.mxu0 0.0
  %208 = vmatpush1.msra.mxu0 0.0
  %209 = vmatprep.subr.mxu0 0.0
  %210 = vmatpush1.msra.mxu0 0.0
  %211 = vmatprep.subr.mxu0 0.0
  %212 = vmatpush1.msra.mxu0 0.0
  %213 = vmatprep.subr.mxu0 0.0
  %214 = vmatpush1.msra.mxu0 0.0
  %215 = vmatprep.subr.mxu0 0.0
  %216 = vmatpush1.msra.mxu0 0.0
  %217 = vmatprep.subr.mxu0 0.0
  %218 = vmatpush1.msra.mxu0 0.0
  %219 = vmatprep.subr.mxu0 0.0
  %220 = vmatpush1.msra.mxu0 0.0
  %221 = vmatprep.subr.mxu0 0.0
  %222 = vmatpush1.msra.mxu0 0.0
  %223 = vmatprep.subr.mxu0 0.0
  %224 = vmatpush1.msra.mxu0 0.0
  %225 = vmatprep.subr.mxu0 0.0
  %226 = vmatpush1.msra.mxu0 0.0
  %227 = vmatprep.subr.mxu0 0.0
  %228 = vmatpush1.msra.mxu0 0.0
  %229 = vmatprep.subr.mxu0 0.0
  %230 = vmatpush1.msra.mxu0 0.0
  %231 = vmatprep.subr.mxu0 0.0
  %232 = vmatpush1.msra.mxu0 0.0
  %233 = vmatprep.subr.mxu0 0.0
  %234 = vmatpush1.msra.mxu0 0.0
  %235 = vmatprep.subr.mxu0 0.0
  %236 = vmatpush1.msra.mxu0 0.0
  %237 = vmatprep.subr.mxu0 0.0
  %238 = vmatpush1.msra.mxu0 0.0
  %239 = vmatprep.subr.mxu0 0.0
  %240 = vmatpush1.msra.mxu0 0.0
  %241 = vmatprep.subr.mxu0 0.0
  %242 = vmatpush1.msra.mxu0 0.0
  %243 = vmatprep.mubr.f32.mxu0 0.0
  %244 = vmatmul.mubr.f32.gmra.mrb[0].mxu0 %v174
  %v245 = vpop.f32.mrb[0].mxu0
  %v246 = vadd.f32 %v170, %v245
  %v247 = vpop.f32.mrb[0].mxu0
  %248 = vmatprep.mubr.f32.mxu0 0.0
  %249 = vmatmul.mubr.f32.gmra.mrb[0].mxu0 %v177
  %v250 = vpop.f32.mrb[0].mxu0
  %v251 = vadd.f32 %v170, %v250
  %v252 = vpop.f32.mrb[0].mxu0
  %253 = vdwg.mxu0
  %v254 = vld [vmem:[%s6] sm:$0xff]
  %v255 = vld [vmem:[%s6 + $0x8] sm:$0xff]
  %v256 = vld [vmem:[%s6 + $0x10] sm:$0xff]
  %v257 = vld [vmem:[%s6 + $0x18] sm:$0xff]
  %260 = vrot.lane.b32.xlu0 %v246, 96
  %v261 = vpop.permute.xlu0 %260
  %262 = vrot.lane.b32.xlu0 %v251, 96
  %v263 = vpop.permute.xlu0 %262
  %vm264 = vcmask 64512
  %v265 = vsel %vm264, %v246, 0
  %v267 = vsel %vm264, %v251, 0
  %v269 = vsel %vm264, %v261, 0
  %v271 = vsel %vm264, %v263, 0
  %273 = vmatprep.subr.mxu0 0.0
  %274 = vmatpush1.xpose.msra.mxu0 %v269
  %275 = vmatprep.subr.mxu0 0.0
  %276 = vmatpush1.xpose.msra.mxu0 %v271
  %277 = vmatprep.subr.mxu0 0.0
  %278 = vmatpush1.xpose.msra.mxu0 0.0
  %279 = vmatprep.subr.mxu0 0.0
  %280 = vmatpush1.xpose.msra.mxu0 0.0
  %281 = vmatprep.subr.mxu0 0.0
  %282 = vmatpush1.xpose.msra.mxu0 0.0
  %283 = vmatprep.subr.mxu0 0.0
  %284 = vmatpush1.xpose.msra.mxu0 0.0
  %285 = vmatprep.subr.mxu0 0.0
  %286 = vmatpush1.xpose.msra.mxu0 0.0
  %287 = vmatprep.subr.mxu0 0.0
  %288 = vmatpush1.xpose.msra.mxu0 0.0
  %289 = vmatprep.subr.mxu0 0.0
  %290 = vmatpush1.xpose.msra.mxu0 0.0
  %291 = vmatprep.subr.mxu0 0.0
  %292 = vmatpush1.xpose.msra.mxu0 0.0
  %293 = vmatprep.subr.mxu0 0.0
  %294 = vmatpush1.xpose.msra.mxu0 0.0
  %295 = vmatprep.subr.mxu0 0.0
  %296 = vmatpush1.xpose.msra.mxu0 0.0
  %297 = vmatprep.subr.mxu0 0.0
  %298 = vmatpush1.xpose.msra.mxu0 0.0
  %299 = vmatprep.subr.mxu0 0.0
  %300 = vmatpush1.xpose.msra.mxu0 0.0
  %301 = vmatprep.subr.mxu0 0.0
  %302 = vmatpush1.xpose.msra.mxu0 0.0
  %303 = vmatprep.subr.mxu0 0.0
  %304 = vmatpush1.xpose.msra.mxu0 0.0
  %305 = vmatprep.subr.mxu0 0.0
  %306 = vmatpush1.xpose.msra.mxu0 0.0
  %307 = vmatprep.subr.mxu0 0.0
  %308 = vmatpush1.xpose.msra.mxu0 0.0
  %309 = vmatprep.subr.mxu0 0.0
  %310 = vmatpush1.xpose.msra.mxu0 0.0
  %311 = vmatprep.subr.mxu0 0.0
  %312 = vmatpush1.xpose.msra.mxu0 0.0
  %313 = vmatprep.subr.mxu0 0.0
  %314 = vmatpush1.xpose.msra.mxu0 0.0
  %315 = vmatprep.subr.mxu0 0.0
  %316 = vmatpush1.xpose.msra.mxu0 0.0
  %317 = vmatprep.subr.mxu0 0.0
  %318 = vmatpush1.xpose.msra.mxu0 0.0
  %319 = vmatprep.subr.mxu0 0.0
  %320 = vmatpush1.xpose.msra.mxu0 0.0
  %321 = vmatprep.subr.mxu0 0.0
  %322 = vmatpush1.xpose.msra.mxu0 0.0
  %323 = vmatprep.subr.mxu0 0.0
  %324 = vmatpush1.xpose.msra.mxu0 0.0
  %325 = vmatprep.subr.mxu0 0.0
  %326 = vmatpush1.xpose.msra.mxu0 0.0
  %327 = vmatprep.subr.mxu0 0.0
  %328 = vmatpush1.xpose.msra.mxu0 0.0
  %329 = vmatprep.subr.mxu0 0.0
  %330 = vmatpush1.xpose.msra.mxu0 0.0
  %331 = vmatprep.subr.mxu0 0.0
  %332 = vmatpush1.xpose.msra.mxu0 0.0
  %333 = vmatprep.subr.mxu0 0.0
  %334 = vmatpush1.xpose.msra.mxu0 0.0
  %335 = vmatprep.subr.mxu0 0.0
  %336 = vmatpush1.xpose.msra.mxu0 0.0
  %337 = vmatprep.mubr.f32.mxu0 0.0
  %338 = vmatmul.mubr.f32.gmra.mrb[0].mxu0 %v265
  %v339 = vpop.f32.mrb[0].mxu0
  %v340 = vadd.f32 0.0, %v339
  %v341 = vpop.f32.mrb[0].mxu0
  %342 = vmatprep.mubr.f32.mxu0 0.0
  %343 = vmatmul.mubr.f32.gmra.mrb[0].mxu0 %v267
  %v344 = vpop.f32.mrb[0].mxu0
  %v345 = vadd.f32 0.0, %v344
  %v346 = vpop.f32.mrb[0].mxu0
  %347 = vdwg.mxu0
  %v348 = vmul.f32 %v340, 0.35355338
  %v349 = vmul.f32 %v345, 0.35355338
  %v350 = vadd.f32 %v348, %v159
  %v351 = vadd.f32 %v349, %v160
  %v352 = vsel %vm77, %v350, -inf
  %353 = vmax.xlane.f32.xlu0 %v352
  %v354 = vpop.xlane.xlu0 %353
  %v355 = vsel %vm77, %v351, -inf
  %356 = vmax.xlane.f32.xlu0 %v355
  %v357 = vpop.xlane.xlu0 %356
  %v358 = vsub.f32 %v350, %v354
  %v359 = vsub.f32 %v351, %v357
  %v360 = vmul.f32 %v358, 1.442695
  %v361 = vpow.pop %v360
  %v362 = vmul.f32 %v359, 1.442695
  %v363 = vpow.pop %v362
  %v364 = vsel %vm77, %v361, 0.0
  %365 = vadd.xlane.f32.xlu0 %v364
  %v366 = vpop.xlane.xlu0 %365
  %v367 = vsel %vm77, %v363, 0.0
  %368 = vadd.xlane.f32.xlu0 %v367
  %v369 = vpop.xlane.xlu0 %368
  %v370 = vrcp.pop %v366
  %v371 = vmul.f32 %v361, %v370
  %v372 = vrcp.pop %v369
  %v373 = vmul.f32 %v363, %v372
  %374 = vrot.lane.b32.xlu0 %v246, 64
  %v375 = vpop.permute.xlu0 %374
  %376 = vrot.lane.b32.xlu0 %v251, 64
  %v377 = vpop.permute.xlu0 %376
  %v381 = vsel %vm77, %v371, 0
  %v384 = vsel %vm77, %v373, 0
  %386 = vmatprep.subr.mxu0 0.0
  %387 = vmatpush1.msra.mxu0 %v375
  %388 = vmatprep.subr.mxu0 0.0
  %389 = vmatpush1.msra.mxu0 %v377
  %390 = vmatprep.subr.mxu0 0.0
  %391 = vmatpush1.msra.mxu0 0.0
  %392 = vmatprep.subr.mxu0 0.0
  %393 = vmatpush1.msra.mxu0 0.0
  %394 = vmatprep.subr.mxu0 0.0
  %395 = vmatpush1.msra.mxu0 0.0
  %396 = vmatprep.subr.mxu0 0.0
  %397 = vmatpush1.msra.mxu0 0.0
  %398 = vmatprep.subr.mxu0 0.0
  %399 = vmatpush1.msra.mxu0 0.0
  %400 = vmatprep.subr.mxu0 0.0
  %401 = vmatpush1.msra.mxu0 0.0
  %402 = vmatprep.subr.mxu0 0.0
  %403 = vmatpush1.msra.mxu0 0.0
  %404 = vmatprep.subr.mxu0 0.0
  %405 = vmatpush1.msra.mxu0 0.0
  %406 = vmatprep.subr.mxu0 0.0
  %407 = vmatpush1.msra.mxu0 0.0
  %408 = vmatprep.subr.mxu0 0.0
  %409 = vmatpush1.msra.mxu0 0.0
  %410 = vmatprep.subr.mxu0 0.0
  %411 = vmatpush1.msra.mxu0 0.0
  %412 = vmatprep.subr.mxu0 0.0
  %413 = vmatpush1.msra.mxu0 0.0
  %414 = vmatprep.subr.mxu0 0.0
  %415 = vmatpush1.msra.mxu0 0.0
  %416 = vmatprep.subr.mxu0 0.0
  %417 = vmatpush1.msra.mxu0 0.0
  %418 = vmatprep.subr.mxu0 0.0
  %419 = vmatpush1.msra.mxu0 0.0
  %420 = vmatprep.subr.mxu0 0.0
  %421 = vmatpush1.msra.mxu0 0.0
  %422 = vmatprep.subr.mxu0 0.0
  %423 = vmatpush1.msra.mxu0 0.0
  %424 = vmatprep.subr.mxu0 0.0
  %425 = vmatpush1.msra.mxu0 0.0
  %426 = vmatprep.subr.mxu0 0.0
  %427 = vmatpush1.msra.mxu0 0.0
  %428 = vmatprep.subr.mxu0 0.0
  %429 = vmatpush1.msra.mxu0 0.0
  %430 = vmatprep.subr.mxu0 0.0
  %431 = vmatpush1.msra.mxu0 0.0
  %432 = vmatprep.subr.mxu0 0.0
  %433 = vmatpush1.msra.mxu0 0.0
  %434 = vmatprep.subr.mxu0 0.0
  %435 = vmatpush1.msra.mxu0 0.0
  %436 = vmatprep.subr.mxu0 0.0
  %437 = vmatpush1.msra.mxu0 0.0
  %438 = vmatprep.subr.mxu0 0.0
  %439 = vmatpush1.msra.mxu0 0.0
  %440 = vmatprep.subr.mxu0 0.0
  %441 = vmatpush1.msra.mxu0 0.0
  %442 = vmatprep.subr.mxu0 0.0
  %443 = vmatpush1.msra.mxu0 0.0
  %444 = vmatprep.subr.mxu0 0.0
  %445 = vmatpush1.msra.mxu0 0.0
  %446 = vmatprep.subr.mxu0 0.0
  %447 = vmatpush1.msra.mxu0 0.0
  %448 = vmatprep.subr.mxu0 0.0
  %449 = vmatpush1.msra.mxu0 0.0
  %450 = vmatprep.mubr.f32.mxu0 0.0
  %451 = vmatmul.mubr.f32.gmra.mrb[0].mxu0 %v381
  %v452 = vpop.f32.mrb[0].mxu0
  %v453 = vadd.f32 0.0, %v452
  %v454 = vpop.f32.mrb[0].mxu0
  %455 = vmatprep.mubr.f32.mxu0 0.0
  %456 = vmatmul.mubr.f32.gmra.mrb[0].mxu0 %v384
  %v457 = vpop.f32.mrb[0].mxu0
  %v458 = vadd.f32 0.0, %v457
  %v459 = vpop.f32.mrb[0].mxu0
  %460 = vdwg.mxu0
  %461 = vrot.lane.b32.xlu0 %v246, 120
  %v462 = vpop.permute.xlu0 %461
  %463 = vrot.lane.b32.xlu0 %v251, 120
  %v464 = vpop.permute.xlu0 %463
  %465 = vrot.lane.b32.xlu0 %v246, 88
  %v466 = vpop.permute.xlu0 %465
  %467 = vrot.lane.b32.xlu0 %v251, 88
  %v468 = vpop.permute.xlu0 %467
  %v469 = vsel %vm264, %v462, 0
  %v471 = vsel %vm264, %v464, 0
  %v473 = vsel %vm264, %v466, 0
  %v475 = vsel %vm264, %v468, 0
  %477 = vmatprep.subr.mxu0 0.0
  %478 = vmatpush1.xpose.msra.mxu0 %v473
  %479 = vmatprep.subr.mxu0 0.0
  %480 = vmatpush1.xpose.msra.mxu0 %v475
  %481 = vmatprep.subr.mxu0 0.0
  %482 = vmatpush1.xpose.msra.mxu0 0.0
  %483 = vmatprep.subr.mxu0 0.0
  %484 = vmatpush1.xpose.msra.mxu0 0.0
  %485 = vmatprep.subr.mxu0 0.0
  %486 = vmatpush1.xpose.msra.mxu0 0.0
  %487 = vmatprep.subr.mxu0 0.0
  %488 = vmatpush1.xpose.msra.mxu0 0.0
  %489 = vmatprep.subr.mxu0 0.0
  %490 = vmatpush1.xpose.msra.mxu0 0.0
  %491 = vmatprep.subr.mxu0 0.0
  %492 = vmatpush1.xpose.msra.mxu0 0.0
  %493 = vmatprep.subr.mxu0 0.0
  %494 = vmatpush1.xpose.msra.mxu0 0.0
  %495 = vmatprep.subr.mxu0 0.0
  %496 = vmatpush1.xpose.msra.mxu0 0.0
  %497 = vmatprep.subr.mxu0 0.0
  %498 = vmatpush1.xpose.msra.mxu0 0.0
  %499 = vmatprep.subr.mxu0 0.0
  %500 = vmatpush1.xpose.msra.mxu0 0.0
  %501 = vmatprep.subr.mxu0 0.0
  %502 = vmatpush1.xpose.msra.mxu0 0.0
  %503 = vmatprep.subr.mxu0 0.0
  %504 = vmatpush1.xpose.msra.mxu0 0.0
  %505 = vmatprep.subr.mxu0 0.0
  %506 = vmatpush1.xpose.msra.mxu0 0.0
  %507 = vmatprep.subr.mxu0 0.0
  %508 = vmatpush1.xpose.msra.mxu0 0.0
  %509 = vmatprep.subr.mxu0 0.0
  %510 = vmatpush1.xpose.msra.mxu0 0.0
  %511 = vmatprep.subr.mxu0 0.0
  %512 = vmatpush1.xpose.msra.mxu0 0.0
  %513 = vmatprep.subr.mxu0 0.0
  %514 = vmatpush1.xpose.msra.mxu0 0.0
  %515 = vmatprep.subr.mxu0 0.0
  %516 = vmatpush1.xpose.msra.mxu0 0.0
  %517 = vmatprep.subr.mxu0 0.0
  %518 = vmatpush1.xpose.msra.mxu0 0.0
  %519 = vmatprep.subr.mxu0 0.0
  %520 = vmatpush1.xpose.msra.mxu0 0.0
  %521 = vmatprep.subr.mxu0 0.0
  %522 = vmatpush1.xpose.msra.mxu0 0.0
  %523 = vmatprep.subr.mxu0 0.0
  %524 = vmatpush1.xpose.msra.mxu0 0.0
  %525 = vmatprep.subr.mxu0 0.0
  %526 = vmatpush1.xpose.msra.mxu0 0.0
  %527 = vmatprep.subr.mxu0 0.0
  %528 = vmatpush1.xpose.msra.mxu0 0.0
  %529 = vmatprep.subr.mxu0 0.0
  %530 = vmatpush1.xpose.msra.mxu0 0.0
  %531 = vmatprep.subr.mxu0 0.0
  %532 = vmatpush1.xpose.msra.mxu0 0.0
  %533 = vmatprep.subr.mxu0 0.0
  %534 = vmatpush1.xpose.msra.mxu0 0.0
  %535 = vmatprep.subr.mxu0 0.0
  %536 = vmatpush1.xpose.msra.mxu0 0.0
  %537 = vmatprep.subr.mxu0 0.0
  %538 = vmatpush1.xpose.msra.mxu0 0.0
  %539 = vmatprep.subr.mxu0 0.0
  %540 = vmatpush1.xpose.msra.mxu0 0.0
  %541 = vmatprep.mubr.f32.mxu0 0.0
  %542 = vmatmul.mubr.f32.gmra.mrb[0].mxu0 %v469
  %v543 = vpop.f32.mrb[0].mxu0
  %v544 = vadd.f32 0.0, %v543
  %v545 = vpop.f32.mrb[0].mxu0
  %546 = vmatprep.mubr.f32.mxu0 0.0
  %547 = vmatmul.mubr.f32.gmra.mrb[0].mxu0 %v471
  %v548 = vpop.f32.mrb[0].mxu0
  %v549 = vadd.f32 0.0, %v548
  %v550 = vpop.f32.mrb[0].mxu0
  %551 = vdwg.mxu0
  %v552 = vmul.f32 %v544, 0.35355338
  %v553 = vmul.f32 %v549, 0.35355338
  %v554 = vadd.f32 %v552, %v159
  %v555 = vadd.f32 %v553, %v160
  %v556 = vsel %vm77, %v554, -inf
  %557 = vmax.xlane.f32.xlu0 %v556
  %v558 = vpop.xlane.xlu0 %557
  %v559 = vsel %vm77, %v555, -inf
  %560 = vmax.xlane.f32.xlu0 %v559
  %v561 = vpop.xlane.xlu0 %560
  %v562 = vsub.f32 %v554, %v558
  %v563 = vsub.f32 %v555, %v561
  %v564 = vmul.f32 %v562, 1.442695
  %v565 = vpow.pop %v564
  %v566 = vmul.f32 %v563, 1.442695
  %v567 = vpow.pop %v566
  %v568 = vsel %vm77, %v565, 0.0
  %569 = vadd.xlane.f32.xlu0 %v568
  %v570 = vpop.xlane.xlu0 %569
  %v571 = vsel %vm77, %v567, 0.0
  %572 = vadd.xlane.f32.xlu0 %v571
  %v573 = vpop.xlane.xlu0 %572
  %v574 = vrcp.pop %v570
  %v575 = vmul.f32 %v565, %v574
  %v576 = vrcp.pop %v573
  %v577 = vmul.f32 %v567, %v576
  %578 = vrot.lane.b32.xlu0 %v246, 56
  %v579 = vpop.permute.xlu0 %578
  %580 = vrot.lane.b32.xlu0 %v251, 56
  %v581 = vpop.permute.xlu0 %580
  %v585 = vsel %vm77, %v575, 0
  %v588 = vsel %vm77, %v577, 0
  %590 = vmatprep.subr.mxu0 0.0
  %591 = vmatpush1.msra.mxu0 %v579
  %592 = vmatprep.subr.mxu0 0.0
  %593 = vmatpush1.msra.mxu0 %v581
  %594 = vmatprep.subr.mxu0 0.0
  %595 = vmatpush1.msra.mxu0 0.0
  %596 = vmatprep.subr.mxu0 0.0
  %597 = vmatpush1.msra.mxu0 0.0
  %598 = vmatprep.subr.mxu0 0.0
  %599 = vmatpush1.msra.mxu0 0.0
  %600 = vmatprep.subr.mxu0 0.0
  %601 = vmatpush1.msra.mxu0 0.0
  %602 = vmatprep.subr.mxu0 0.0
  %603 = vmatpush1.msra.mxu0 0.0
  %604 = vmatprep.subr.mxu0 0.0
  %605 = vmatpush1.msra.mxu0 0.0
  %606 = vmatprep.subr.mxu0 0.0
  %607 = vmatpush1.msra.mxu0 0.0
  %608 = vmatprep.subr.mxu0 0.0
  %609 = vmatpush1.msra.mxu0 0.0
  %610 = vmatprep.subr.mxu0 0.0
  %611 = vmatpush1.msra.mxu0 0.0
  %612 = vmatprep.subr.mxu0 0.0
  %613 = vmatpush1.msra.mxu0 0.0
  %614 = vmatprep.subr.mxu0 0.0
  %615 = vmatpush1.msra.mxu0 0.0
  %616 = vmatprep.subr.mxu0 0.0
  %617 = vmatpush1.msra.mxu0 0.0
  %618 = vmatprep.subr.mxu0 0.0
  %619 = vmatpush1.msra.mxu0 0.0
  %620 = vmatprep.subr.mxu0 0.0
  %621 = vmatpush1.msra.mxu0 0.0
  %622 = vmatprep.subr.mxu0 0.0
  %623 = vmatpush1.msra.mxu0 0.0
  %624 = vmatprep.subr.mxu0 0.0
  %625 = vmatpush1.msra.mxu0 0.0
  %626 = vmatprep.subr.mxu0 0.0
  %627 = vmatpush1.msra.mxu0 0.0
  %628 = vmatprep.subr.mxu0 0.0
  %629 = vmatpush1.msra.mxu0 0.0
  %630 = vmatprep.subr.mxu0 0.0
  %631 = vmatpush1.msra.mxu0 0.0
  %632 = vmatprep.subr.mxu0 0.0
  %633 = vmatpush1.msra.mxu0 0.0
  %634 = vmatprep.subr.mxu0 0.0
  %635 = vmatpush1.msra.mxu0 0.0
  %636 = vmatprep.subr.mxu0 0.0
  %637 = vmatpush1.msra.mxu0 0.0
  %638 = vmatprep.subr.mxu0 0.0
  %639 = vmatpush1.msra.mxu0 0.0
  %640 = vmatprep.subr.mxu0 0.0
  %641 = vmatpush1.msra.mxu0 0.0
  %642 = vmatprep.subr.mxu0 0.0
  %643 = vmatpush1.msra.mxu0 0.0
  %644 = vmatprep.subr.mxu0 0.0
  %645 = vmatpush1.msra.mxu0 0.0
  %646 = vmatprep.subr.mxu0 0.0
  %647 = vmatpush1.msra.mxu0 0.0
  %648 = vmatprep.subr.mxu0 0.0
  %649 = vmatpush1.msra.mxu0 0.0
  %650 = vmatprep.subr.mxu0 0.0
  %651 = vmatpush1.msra.mxu0 0.0
  %652 = vmatprep.subr.mxu0 0.0
  %653 = vmatpush1.msra.mxu0 0.0
  %654 = vmatprep.mubr.f32.mxu0 0.0
  %655 = vmatmul.mubr.f32.gmra.mrb[0].mxu0 %v585
  %v656 = vpop.f32.mrb[0].mxu0
  %v657 = vadd.f32 0.0, %v656
  %v658 = vpop.f32.mrb[0].mxu0
  %659 = vmatprep.mubr.f32.mxu0 0.0
  %660 = vmatmul.mubr.f32.gmra.mrb[0].mxu0 %v588
  %v661 = vpop.f32.mrb[0].mxu0
  %v662 = vadd.f32 0.0, %v661
  %v663 = vpop.f32.mrb[0].mxu0
  %664 = vdwg.mxu0
  %v666 = vsel %vm264, %v657, 0
  %v669 = vsel %vm264, %v662, 0
  %671 = vmatprep.subr.mxu0 0.0
  %672 = vmatpush1.msra.mxu0 %v255
  %673 = vmatprep.subr.mxu0 0.0
  %674 = vmatpush1.msra.mxu0 0.0
  %675 = vmatprep.subr.mxu0 0.0
  %676 = vmatpush1.msra.mxu0 0.0
  %677 = vmatprep.subr.mxu0 0.0
  %678 = vmatpush1.msra.mxu0 0.0
  %679 = vmatprep.subr.mxu0 0.0
  %680 = vmatpush1.msra.mxu0 0.0
  %681 = vmatprep.subr.mxu0 0.0
  %682 = vmatpush1.msra.mxu0 0.0
  %683 = vmatprep.subr.mxu0 0.0
  %684 = vmatpush1.msra.mxu0 0.0
  %685 = vmatprep.subr.mxu0 0.0
  %686 = vmatpush1.msra.mxu0 0.0
  %687 = vmatprep.subr.mxu0 0.0
  %688 = vmatpush1.msra.mxu0 0.0
  %689 = vmatprep.subr.mxu0 0.0
  %690 = vmatpush1.msra.mxu0 0.0
  %691 = vmatprep.subr.mxu0 0.0
  %692 = vmatpush1.msra.mxu0 0.0
  %693 = vmatprep.subr.mxu0 0.0
  %694 = vmatpush1.msra.mxu0 0.0
  %695 = vmatprep.subr.mxu0 0.0
  %696 = vmatpush1.msra.mxu0 0.0
  %697 = vmatprep.subr.mxu0 0.0
  %698 = vmatpush1.msra.mxu0 0.0
  %699 = vmatprep.subr.mxu0 0.0
  %700 = vmatpush1.msra.mxu0 0.0
  %701 = vmatprep.subr.mxu0 0.0
  %702 = vmatpush1.msra.mxu0 0.0
  %703 = vmatprep.subr.mxu0 0.0
  %704 = vmatpush1.msra.mxu0 0.0
  %705 = vmatprep.subr.mxu0 0.0
  %706 = vmatpush1.msra.mxu0 0.0
  %707 = vmatprep.subr.mxu0 0.0
  %708 = vmatpush1.msra.mxu0 0.0
  %709 = vmatprep.subr.mxu0 0.0
  %710 = vmatpush1.msra.mxu0 0.0
  %711 = vmatprep.subr.mxu0 0.0
  %712 = vmatpush1.msra.mxu0 0.0
  %713 = vmatprep.subr.mxu0 0.0
  %714 = vmatpush1.msra.mxu0 0.0
  %715 = vmatprep.subr.mxu0 0.0
  %716 = vmatpush1.msra.mxu0 0.0
  %717 = vmatprep.subr.mxu0 0.0
  %718 = vmatpush1.msra.mxu0 0.0
  %719 = vmatprep.subr.mxu0 0.0
  %720 = vmatpush1.msra.mxu0 0.0
  %721 = vmatprep.subr.mxu0 0.0
  %722 = vmatpush1.msra.mxu0 0.0
  %723 = vmatprep.subr.mxu0 0.0
  %724 = vmatpush1.msra.mxu0 0.0
  %725 = vmatprep.subr.mxu0 0.0
  %726 = vmatpush1.msra.mxu0 0.0
  %727 = vmatprep.subr.mxu0 0.0
  %728 = vmatpush1.msra.mxu0 0.0
  %729 = vmatprep.subr.mxu0 0.0
  %730 = vmatpush1.msra.mxu0 0.0
  %731 = vmatprep.subr.mxu0 0.0
  %732 = vmatpush1.msra.mxu0 0.0
  %733 = vmatprep.subr.mxu0 0.0
  %734 = vmatpush1.msra.mxu0 0.0
  %735 = vmatprep.mubr.f32.mxu0 0.0
  %736 = vmatmul.mubr.f32.gmra.mrb[0].mxu0 %v666
  %v737 = vpop.f32.mrb[0].mxu0
  %v738 = vadd.f32 0.0, %v737
  %v739 = vpop.f32.mrb[0].mxu0
  %740 = vmatprep.mubr.f32.mxu0 0.0
  %741 = vmatmul.mubr.f32.gmra.mrb[0].mxu0 %v669
  %v742 = vpop.f32.mrb[0].mxu0
  %v743 = vadd.f32 0.0, %v742
  %v744 = vpop.f32.mrb[0].mxu0
  %745 = vdwg.mxu0
  %v747 = vsel %vm264, %v453, 0
  %v750 = vsel %vm264, %v458, 0
  %752 = vmatprep.subr.mxu0 0.0
  %753 = vmatpush1.msra.mxu0 %v254
  %754 = vmatprep.subr.mxu0 0.0
  %755 = vmatpush1.msra.mxu0 0.0
  %756 = vmatprep.subr.mxu0 0.0
  %757 = vmatpush1.msra.mxu0 0.0
  %758 = vmatprep.subr.mxu0 0.0
  %759 = vmatpush1.msra.mxu0 0.0
  %760 = vmatprep.subr.mxu0 0.0
  %761 = vmatpush1.msra.mxu0 0.0
  %762 = vmatprep.subr.mxu0 0.0
  %763 = vmatpush1.msra.mxu0 0.0
  %764 = vmatprep.subr.mxu0 0.0
  %765 = vmatpush1.msra.mxu0 0.0
  %766 = vmatprep.subr.mxu0 0.0
  %767 = vmatpush1.msra.mxu0 0.0
  %768 = vmatprep.subr.mxu0 0.0
  %769 = vmatpush1.msra.mxu0 0.0
  %770 = vmatprep.subr.mxu0 0.0
  %771 = vmatpush1.msra.mxu0 0.0
  %772 = vmatprep.subr.mxu0 0.0
  %773 = vmatpush1.msra.mxu0 0.0
  %774 = vmatprep.subr.mxu0 0.0
  %775 = vmatpush1.msra.mxu0 0.0
  %776 = vmatprep.subr.mxu0 0.0
  %777 = vmatpush1.msra.mxu0 0.0
  %778 = vmatprep.subr.mxu0 0.0
  %779 = vmatpush1.msra.mxu0 0.0
  %780 = vmatprep.subr.mxu0 0.0
  %781 = vmatpush1.msra.mxu0 0.0
  %782 = vmatprep.subr.mxu0 0.0
  %783 = vmatpush1.msra.mxu0 0.0
  %784 = vmatprep.subr.mxu0 0.0
  %785 = vmatpush1.msra.mxu0 0.0
  %786 = vmatprep.subr.mxu0 0.0
  %787 = vmatpush1.msra.mxu0 0.0
  %788 = vmatprep.subr.mxu0 0.0
  %789 = vmatpush1.msra.mxu0 0.0
  %790 = vmatprep.subr.mxu0 0.0
  %791 = vmatpush1.msra.mxu0 0.0
  %792 = vmatprep.subr.mxu0 0.0
  %793 = vmatpush1.msra.mxu0 0.0
  %794 = vmatprep.subr.mxu0 0.0
  %795 = vmatpush1.msra.mxu0 0.0
  %796 = vmatprep.subr.mxu0 0.0
  %797 = vmatpush1.msra.mxu0 0.0
  %798 = vmatprep.subr.mxu0 0.0
  %799 = vmatpush1.msra.mxu0 0.0
  %800 = vmatprep.subr.mxu0 0.0
  %801 = vmatpush1.msra.mxu0 0.0
  %802 = vmatprep.subr.mxu0 0.0
  %803 = vmatpush1.msra.mxu0 0.0
  %804 = vmatprep.subr.mxu0 0.0
  %805 = vmatpush1.msra.mxu0 0.0
  %806 = vmatprep.subr.mxu0 0.0
  %807 = vmatpush1.msra.mxu0 0.0
  %808 = vmatprep.subr.mxu0 0.0
  %809 = vmatpush1.msra.mxu0 0.0
  %810 = vmatprep.subr.mxu0 0.0
  %811 = vmatpush1.msra.mxu0 0.0
  %812 = vmatprep.subr.mxu0 0.0
  %813 = vmatpush1.msra.mxu0 0.0
  %814 = vmatprep.subr.mxu0 0.0
  %815 = vmatpush1.msra.mxu0 0.0
  %816 = vmatprep.mubr.f32.mxu0 0.0
  %817 = vmatmul.mubr.f32.gmra.mrb[0].mxu0 %v747
  %v818 = vpop.f32.mrb[0].mxu0
  %v819 = vadd.f32 %v738, %v818
  %v820 = vpop.f32.mrb[0].mxu0
  %821 = vmatprep.mubr.f32.mxu0 0.0
  %822 = vmatmul.mubr.f32.gmra.mrb[0].mxu0 %v750
  %v823 = vpop.f32.mrb[0].mxu0
  %v824 = vadd.f32 %v743, %v823
  %v825 = vpop.f32.mrb[0].mxu0
  %826 = vdwg.mxu0
  %827 = vrot.lane.b32.xlu0 %v246, 112
  %v828 = vpop.permute.xlu0 %827
  %829 = vrot.lane.b32.xlu0 %v251, 112
  %v830 = vpop.permute.xlu0 %829
  %831 = vrot.lane.b32.xlu0 %v246, 80
  %v832 = vpop.permute.xlu0 %831
  %833 = vrot.lane.b32.xlu0 %v251, 80
  %v834 = vpop.permute.xlu0 %833
  %v835 = vsel %vm264, %v828, 0
  %v837 = vsel %vm264, %v830, 0
  %v839 = vsel %vm264, %v832, 0
  %v841 = vsel %vm264, %v834, 0
  %843 = vmatprep.subr.mxu0 0.0
  %844 = vmatpush1.xpose.msra.mxu0 %v839
  %845 = vmatprep.subr.mxu0 0.0
  %846 = vmatpush1.xpose.msra.mxu0 %v841
  %847 = vmatprep.subr.mxu0 0.0
  %848 = vmatpush1.xpose.msra.mxu0 0.0
  %849 = vmatprep.subr.mxu0 0.0
  %850 = vmatpush1.xpose.msra.mxu0 0.0
  %851 = vmatprep.subr.mxu0 0.0
  %852 = vmatpush1.xpose.msra.mxu0 0.0
  %853 = vmatprep.subr.mxu0 0.0
  %854 = vmatpush1.xpose.msra.mxu0 0.0
  %855 = vmatprep.subr.mxu0 0.0
  %856 = vmatpush1.xpose.msra.mxu0 0.0
  %857 = vmatprep.subr.mxu0 0.0
  %858 = vmatpush1.xpose.msra.mxu0 0.0
  %859 = vmatprep.subr.mxu0 0.0
  %860 = vmatpush1.xpose.msra.mxu0 0.0
  %861 = vmatprep.subr.mxu0 0.0
  %862 = vmatpush1.xpose.msra.mxu0 0.0
  %863 = vmatprep.subr.mxu0 0.0
  %864 = vmatpush1.xpose.msra.mxu0 0.0
  %865 = vmatprep.subr.mxu0 0.0
  %866 = vmatpush1.xpose.msra.mxu0 0.0
  %867 = vmatprep.subr.mxu0 0.0
  %868 = vmatpush1.xpose.msra.mxu0 0.0
  %869 = vmatprep.subr.mxu0 0.0
  %870 = vmatpush1.xpose.msra.mxu0 0.0
  %871 = vmatprep.subr.mxu0 0.0
  %872 = vmatpush1.xpose.msra.mxu0 0.0
  %873 = vmatprep.subr.mxu0 0.0
  %874 = vmatpush1.xpose.msra.mxu0 0.0
  %875 = vmatprep.subr.mxu0 0.0
  %876 = vmatpush1.xpose.msra.mxu0 0.0
  %877 = vmatprep.subr.mxu0 0.0
  %878 = vmatpush1.xpose.msra.mxu0 0.0
  %879 = vmatprep.subr.mxu0 0.0
  %880 = vmatpush1.xpose.msra.mxu0 0.0
  %881 = vmatprep.subr.mxu0 0.0
  %882 = vmatpush1.xpose.msra.mxu0 0.0
  %883 = vmatprep.subr.mxu0 0.0
  %884 = vmatpush1.xpose.msra.mxu0 0.0
  %885 = vmatprep.subr.mxu0 0.0
  %886 = vmatpush1.xpose.msra.mxu0 0.0
  %887 = vmatprep.subr.mxu0 0.0
  %888 = vmatpush1.xpose.msra.mxu0 0.0
  %889 = vmatprep.subr.mxu0 0.0
  %890 = vmatpush1.xpose.msra.mxu0 0.0
  %891 = vmatprep.subr.mxu0 0.0
  %892 = vmatpush1.xpose.msra.mxu0 0.0
  %893 = vmatprep.subr.mxu0 0.0
  %894 = vmatpush1.xpose.msra.mxu0 0.0
  %895 = vmatprep.subr.mxu0 0.0
  %896 = vmatpush1.xpose.msra.mxu0 0.0
  %897 = vmatprep.subr.mxu0 0.0
  %898 = vmatpush1.xpose.msra.mxu0 0.0
  %899 = vmatprep.subr.mxu0 0.0
  %900 = vmatpush1.xpose.msra.mxu0 0.0
  %901 = vmatprep.subr.mxu0 0.0
  %902 = vmatpush1.xpose.msra.mxu0 0.0
  %903 = vmatprep.subr.mxu0 0.0
  %904 = vmatpush1.xpose.msra.mxu0 0.0
  %905 = vmatprep.subr.mxu0 0.0
  %906 = vmatpush1.xpose.msra.mxu0 0.0
  %907 = vmatprep.mubr.f32.mxu0 0.0
  %908 = vmatmul.mubr.f32.gmra.mrb[0].mxu0 %v835
  %v909 = vpop.f32.mrb[0].mxu0
  %v910 = vadd.f32 0.0, %v909
  %v911 = vpop.f32.mrb[0].mxu0
  %912 = vmatprep.mubr.f32.mxu0 0.0
  %913 = vmatmul.mubr.f32.gmra.mrb[0].mxu0 %v837
  %v914 = vpop.f32.mrb[0].mxu0
  %v915 = vadd.f32 0.0, %v914
  %v916 = vpop.f32.mrb[0].mxu0
  %917 = vdwg.mxu0
  %v918 = vmul.f32 %v910, 0.35355338
  %v919 = vmul.f32 %v915, 0.35355338
  %v920 = vadd.f32 %v918, %v159
  %v921 = vadd.f32 %v919, %v160
  %v922 = vsel %vm77, %v920, -inf
  %923 = vmax.xlane.f32.xlu0 %v922
  %v924 = vpop.xlane.xlu0 %923
  %v925 = vsel %vm77, %v921, -inf
  %926 = vmax.xlane.f32.xlu0 %v925
  %v927 = vpop.xlane.xlu0 %926
  %v928 = vsub.f32 %v920, %v924
  %v929 = vsub.f32 %v921, %v927
  %v930 = vmul.f32 %v928, 1.442695
  %v931 = vpow.pop %v930
  %v932 = vmul.f32 %v929, 1.442695
  %v933 = vpow.pop %v932
  %v934 = vsel %vm77, %v931, 0.0
  %935 = vadd.xlane.f32.xlu0 %v934
  %v936 = vpop.xlane.xlu0 %935
  %v937 = vsel %vm77, %v933, 0.0
  %938 = vadd.xlane.f32.xlu0 %v937
  %v939 = vpop.xlane.xlu0 %938
  %v940 = vrcp.pop %v936
  %v941 = vmul.f32 %v931, %v940
  %v942 = vrcp.pop %v939
  %v943 = vmul.f32 %v933, %v942
  %944 = vrot.lane.b32.xlu0 %v246, 48
  %v945 = vpop.permute.xlu0 %944
  %946 = vrot.lane.b32.xlu0 %v251, 48
  %v947 = vpop.permute.xlu0 %946
  %v951 = vsel %vm77, %v941, 0
  %v954 = vsel %vm77, %v943, 0
  %956 = vmatprep.subr.mxu0 0.0
  %957 = vmatpush1.msra.mxu0 %v945
  %958 = vmatprep.subr.mxu0 0.0
  %959 = vmatpush1.msra.mxu0 %v947
  %960 = vmatprep.subr.mxu0 0.0
  %961 = vmatpush1.msra.mxu0 0.0
  %962 = vmatprep.subr.mxu0 0.0
  %963 = vmatpush1.msra.mxu0 0.0
  %964 = vmatprep.subr.mxu0 0.0
  %965 = vmatpush1.msra.mxu0 0.0
  %966 = vmatprep.subr.mxu0 0.0
  %967 = vmatpush1.msra.mxu0 0.0
  %968 = vmatprep.subr.mxu0 0.0
  %969 = vmatpush1.msra.mxu0 0.0
  %970 = vmatprep.subr.mxu0 0.0
  %971 = vmatpush1.msra.mxu0 0.0
  %972 = vmatprep.subr.mxu0 0.0
  %973 = vmatpush1.msra.mxu0 0.0
  %974 = vmatprep.subr.mxu0 0.0
  %975 = vmatpush1.msra.mxu0 0.0
  %976 = vmatprep.subr.mxu0 0.0
  %977 = vmatpush1.msra.mxu0 0.0
  %978 = vmatprep.subr.mxu0 0.0
  %979 = vmatpush1.msra.mxu0 0.0
  %980 = vmatprep.subr.mxu0 0.0
  %981 = vmatpush1.msra.mxu0 0.0
  %982 = vmatprep.subr.mxu0 0.0
  %983 = vmatpush1.msra.mxu0 0.0
  %984 = vmatprep.subr.mxu0 0.0
  %985 = vmatpush1.msra.mxu0 0.0
  %986 = vmatprep.subr.mxu0 0.0
  %987 = vmatpush1.msra.mxu0 0.0
  %988 = vmatprep.subr.mxu0 0.0
  %989 = vmatpush1.msra.mxu0 0.0
  %990 = vmatprep.subr.mxu0 0.0
  %991 = vmatpush1.msra.mxu0 0.0
  %992 = vmatprep.subr.mxu0 0.0
  %993 = vmatpush1.msra.mxu0 0.0
  %994 = vmatprep.subr.mxu0 0.0
  %995 = vmatpush1.msra.mxu0 0.0
  %996 = vmatprep.subr.mxu0 0.0
  %997 = vmatpush1.msra.mxu0 0.0
  %998 = vmatprep.subr.mxu0 0.0
  %999 = vmatpush1.msra.mxu0 0.0
  %1000 = vmatprep.subr.mxu0 0.0
  %1001 = vmatpush1.msra.mxu0 0.0
  %1002 = vmatprep.subr.mxu0 0.0
  %1003 = vmatpush1.msra.mxu0 0.0
  %1004 = vmatprep.subr.mxu0 0.0
  %1005 = vmatpush1.msra.mxu0 0.0
  %1006 = vmatprep.subr.mxu0 0.0
  %1007 = vmatpush1.msra.mxu0 0.0
  %1008 = vmatprep.subr.mxu0 0.0
  %1009 = vmatpush1.msra.mxu0 0.0
  %1010 = vmatprep.subr.mxu0 0.0
  %1011 = vmatpush1.msra.mxu0 0.0
  %1012 = vmatprep.subr.mxu0 0.0
  %1013 = vmatpush1.msra.mxu0 0.0
  %1014 = vmatprep.subr.mxu0 0.0
  %1015 = vmatpush1.msra.mxu0 0.0
  %1016 = vmatprep.subr.mxu0 0.0
  %1017 = vmatpush1.msra.mxu0 0.0
  %1018 = vmatprep.subr.mxu0 0.0
  %1019 = vmatpush1.msra.mxu0 0.0
  %1020 = vmatprep.mubr.f32.mxu0 0.0
  %1021 = vmatmul.mubr.f32.gmra.mrb[0].mxu0 %v951
  %v1022 = vpop.f32.mrb[0].mxu0
  %v1023 = vadd.f32 0.0, %v1022
  %v1024 = vpop.f32.mrb[0].mxu0
  %1025 = vmatprep.mubr.f32.mxu0 0.0
  %1026 = vmatmul.mubr.f32.gmra.mrb[0].mxu0 %v954
  %v1027 = vpop.f32.mrb[0].mxu0
  %v1028 = vadd.f32 0.0, %v1027
  %v1029 = vpop.f32.mrb[0].mxu0
  %1030 = vdwg.mxu0
  %v1032 = vsel %vm264, %v1023, 0
  %v1035 = vsel %vm264, %v1028, 0
  %1037 = vmatprep.subr.mxu0 0.0
  %1038 = vmatpush1.msra.mxu0 %v256
  %1039 = vmatprep.subr.mxu0 0.0
  %1040 = vmatpush1.msra.mxu0 0.0
  %1041 = vmatprep.subr.mxu0 0.0
  %1042 = vmatpush1.msra.mxu0 0.0
  %1043 = vmatprep.subr.mxu0 0.0
  %1044 = vmatpush1.msra.mxu0 0.0
  %1045 = vmatprep.subr.mxu0 0.0
  %1046 = vmatpush1.msra.mxu0 0.0
  %1047 = vmatprep.subr.mxu0 0.0
  %1048 = vmatpush1.msra.mxu0 0.0
  %1049 = vmatprep.subr.mxu0 0.0
  %1050 = vmatpush1.msra.mxu0 0.0
  %1051 = vmatprep.subr.mxu0 0.0
  %1052 = vmatpush1.msra.mxu0 0.0
  %1053 = vmatprep.subr.mxu0 0.0
  %1054 = vmatpush1.msra.mxu0 0.0
  %1055 = vmatprep.subr.mxu0 0.0
  %1056 = vmatpush1.msra.mxu0 0.0
  %1057 = vmatprep.subr.mxu0 0.0
  %1058 = vmatpush1.msra.mxu0 0.0
  %1059 = vmatprep.subr.mxu0 0.0
  %1060 = vmatpush1.msra.mxu0 0.0
  %1061 = vmatprep.subr.mxu0 0.0
  %1062 = vmatpush1.msra.mxu0 0.0
  %1063 = vmatprep.subr.mxu0 0.0
  %1064 = vmatpush1.msra.mxu0 0.0
  %1065 = vmatprep.subr.mxu0 0.0
  %1066 = vmatpush1.msra.mxu0 0.0
  %1067 = vmatprep.subr.mxu0 0.0
  %1068 = vmatpush1.msra.mxu0 0.0
  %1069 = vmatprep.subr.mxu0 0.0
  %1070 = vmatpush1.msra.mxu0 0.0
  %1071 = vmatprep.subr.mxu0 0.0
  %1072 = vmatpush1.msra.mxu0 0.0
  %1073 = vmatprep.subr.mxu0 0.0
  %1074 = vmatpush1.msra.mxu0 0.0
  %1075 = vmatprep.subr.mxu0 0.0
  %1076 = vmatpush1.msra.mxu0 0.0
  %1077 = vmatprep.subr.mxu0 0.0
  %1078 = vmatpush1.msra.mxu0 0.0
  %1079 = vmatprep.subr.mxu0 0.0
  %1080 = vmatpush1.msra.mxu0 0.0
  %1081 = vmatprep.subr.mxu0 0.0
  %1082 = vmatpush1.msra.mxu0 0.0
  %1083 = vmatprep.subr.mxu0 0.0
  %1084 = vmatpush1.msra.mxu0 0.0
  %1085 = vmatprep.subr.mxu0 0.0
  %1086 = vmatpush1.msra.mxu0 0.0
  %1087 = vmatprep.subr.mxu0 0.0
  %1088 = vmatpush1.msra.mxu0 0.0
  %1089 = vmatprep.subr.mxu0 0.0
  %1090 = vmatpush1.msra.mxu0 0.0
  %1091 = vmatprep.subr.mxu0 0.0
  %1092 = vmatpush1.msra.mxu0 0.0
  %1093 = vmatprep.subr.mxu0 0.0
  %1094 = vmatpush1.msra.mxu0 0.0
  %1095 = vmatprep.subr.mxu0 0.0
  %1096 = vmatpush1.msra.mxu0 0.0
  %1097 = vmatprep.subr.mxu0 0.0
  %1098 = vmatpush1.msra.mxu0 0.0
  %1099 = vmatprep.subr.mxu0 0.0
  %1100 = vmatpush1.msra.mxu0 0.0
  %1101 = vmatprep.mubr.f32.mxu0 0.0
  %1102 = vmatmul.mubr.f32.gmra.mrb[0].mxu0 %v1032
  %v1103 = vpop.f32.mrb[0].mxu0
  %v1104 = vadd.f32 0.0, %v1103
  %v1105 = vpop.f32.mrb[0].mxu0
  %1106 = vmatprep.mubr.f32.mxu0 0.0
  %1107 = vmatmul.mubr.f32.gmra.mrb[0].mxu0 %v1035
  %v1108 = vpop.f32.mrb[0].mxu0
  %v1109 = vadd.f32 0.0, %v1108
  %v1110 = vpop.f32.mrb[0].mxu0
  %1111 = vdwg.mxu0
  %v1112 = vadd.f32 %v819, %v1104
  %v1113 = vadd.f32 %v824, %v1109
  %1114 = vrot.lane.b32.xlu0 %v246, 104
  %v1115 = vpop.permute.xlu0 %1114
  %1116 = vrot.lane.b32.xlu0 %v251, 104
  %v1117 = vpop.permute.xlu0 %1116
  %1118 = vrot.lane.b32.xlu0 %v246, 72
  %v1119 = vpop.permute.xlu0 %1118
  %1120 = vrot.lane.b32.xlu0 %v251, 72
  %v1121 = vpop.permute.xlu0 %1120
  %v1122 = vsel %vm264, %v1115, 0
  %v1124 = vsel %vm264, %v1117, 0
  %v1126 = vsel %vm264, %v1119, 0
  %v1128 = vsel %vm264, %v1121, 0
  %1130 = vmatprep.subr.mxu0 0.0
  %1131 = vmatpush1.xpose.msra.mxu0 %v1126
  %1132 = vmatprep.subr.mxu0 0.0
  %1133 = vmatpush1.xpose.msra.mxu0 %v1128
  %1134 = vmatprep.subr.mxu0 0.0
  %1135 = vmatpush1.xpose.msra.mxu0 0.0
  %1136 = vmatprep.subr.mxu0 0.0
  %1137 = vmatpush1.xpose.msra.mxu0 0.0
  %1138 = vmatprep.subr.mxu0 0.0
  %1139 = vmatpush1.xpose.msra.mxu0 0.0
  %1140 = vmatprep.subr.mxu0 0.0
  %1141 = vmatpush1.xpose.msra.mxu0 0.0
  %1142 = vmatprep.subr.mxu0 0.0
  %1143 = vmatpush1.xpose.msra.mxu0 0.0
  %1144 = vmatprep.subr.mxu0 0.0
  %1145 = vmatpush1.xpose.msra.mxu0 0.0
  %1146 = vmatprep.subr.mxu0 0.0
  %1147 = vmatpush1.xpose.msra.mxu0 0.0
  %1148 = vmatprep.subr.mxu0 0.0
  %1149 = vmatpush1.xpose.msra.mxu0 0.0
  %1150 = vmatprep.subr.mxu0 0.0
  %1151 = vmatpush1.xpose.msra.mxu0 0.0
  %1152 = vmatprep.subr.mxu0 0.0
  %1153 = vmatpush1.xpose.msra.mxu0 0.0
  %1154 = vmatprep.subr.mxu0 0.0
  %1155 = vmatpush1.xpose.msra.mxu0 0.0
  %1156 = vmatprep.subr.mxu0 0.0
  %1157 = vmatpush1.xpose.msra.mxu0 0.0
  %1158 = vmatprep.subr.mxu0 0.0
  %1159 = vmatpush1.xpose.msra.mxu0 0.0
  %1160 = vmatprep.subr.mxu0 0.0
  %1161 = vmatpush1.xpose.msra.mxu0 0.0
  %1162 = vmatprep.subr.mxu0 0.0
  %1163 = vmatpush1.xpose.msra.mxu0 0.0
  %1164 = vmatprep.subr.mxu0 0.0
  %1165 = vmatpush1.xpose.msra.mxu0 0.0
  %1166 = vmatprep.subr.mxu0 0.0
  %1167 = vmatpush1.xpose.msra.mxu0 0.0
  %1168 = vmatprep.subr.mxu0 0.0
  %1169 = vmatpush1.xpose.msra.mxu0 0.0
  %1170 = vmatprep.subr.mxu0 0.0
  %1171 = vmatpush1.xpose.msra.mxu0 0.0
  %1172 = vmatprep.subr.mxu0 0.0
  %1173 = vmatpush1.xpose.msra.mxu0 0.0
  %1174 = vmatprep.subr.mxu0 0.0
  %1175 = vmatpush1.xpose.msra.mxu0 0.0
  %1176 = vmatprep.subr.mxu0 0.0
  %1177 = vmatpush1.xpose.msra.mxu0 0.0
  %1178 = vmatprep.subr.mxu0 0.0
  %1179 = vmatpush1.xpose.msra.mxu0 0.0
  %1180 = vmatprep.subr.mxu0 0.0
  %1181 = vmatpush1.xpose.msra.mxu0 0.0
  %1182 = vmatprep.subr.mxu0 0.0
  %1183 = vmatpush1.xpose.msra.mxu0 0.0
  %1184 = vmatprep.subr.mxu0 0.0
  %1185 = vmatpush1.xpose.msra.mxu0 0.0
  %1186 = vmatprep.subr.mxu0 0.0
  %1187 = vmatpush1.xpose.msra.mxu0 0.0
  %1188 = vmatprep.subr.mxu0 0.0
  %1189 = vmatpush1.xpose.msra.mxu0 0.0
  %1190 = vmatprep.subr.mxu0 0.0
  %1191 = vmatpush1.xpose.msra.mxu0 0.0
  %1192 = vmatprep.subr.mxu0 0.0
  %1193 = vmatpush1.xpose.msra.mxu0 0.0
  %1194 = vmatprep.mubr.f32.mxu0 0.0
  %1195 = vmatmul.mubr.f32.gmra.mrb[0].mxu0 %v1122
  %v1196 = vpop.f32.mrb[0].mxu0
  %v1197 = vadd.f32 0.0, %v1196
  %v1198 = vpop.f32.mrb[0].mxu0
  %1199 = vmatprep.mubr.f32.mxu0 0.0
  %1200 = vmatmul.mubr.f32.gmra.mrb[0].mxu0 %v1124
  %v1201 = vpop.f32.mrb[0].mxu0
  %v1202 = vadd.f32 0.0, %v1201
  %v1203 = vpop.f32.mrb[0].mxu0
  %1204 = vdwg.mxu0
  %v1205 = vmul.f32 %v1197, 0.35355338
  %v1206 = vmul.f32 %v1202, 0.35355338
  %v1207 = vadd.f32 %v1205, %v159
  %v1208 = vadd.f32 %v1206, %v160
  %v1209 = vsel %vm77, %v1207, -inf
  %1210 = vmax.xlane.f32.xlu0 %v1209
  %v1211 = vpop.xlane.xlu0 %1210
  %v1212 = vsel %vm77, %v1208, -inf
  %1213 = vmax.xlane.f32.xlu0 %v1212
  %v1214 = vpop.xlane.xlu0 %1213
  %v1215 = vsub.f32 %v1207, %v1211
  %v1216 = vsub.f32 %v1208, %v1214
  %v1217 = vmul.f32 %v1215, 1.442695
  %v1218 = vpow.pop %v1217
  %v1219 = vmul.f32 %v1216, 1.442695
  %v1220 = vpow.pop %v1219
  %v1221 = vsel %vm77, %v1218, 0.0
  %1222 = vadd.xlane.f32.xlu0 %v1221
  %v1223 = vpop.xlane.xlu0 %1222
  %v1224 = vsel %vm77, %v1220, 0.0
  %1225 = vadd.xlane.f32.xlu0 %v1224
  %v1226 = vpop.xlane.xlu0 %1225
  %v1227 = vrcp.pop %v1223
  %v1228 = vmul.f32 %v1218, %v1227
  %v1229 = vrcp.pop %v1226
  %v1230 = vmul.f32 %v1220, %v1229
  %1231 = vrot.lane.b32.xlu0 %v246, 40
  %v1232 = vpop.permute.xlu0 %1231
  %1233 = vrot.lane.b32.xlu0 %v251, 40
  %v1234 = vpop.permute.xlu0 %1233
  %v1238 = vsel %vm77, %v1228, 0
  %v1241 = vsel %vm77, %v1230, 0
  %1243 = vmatprep.subr.mxu0 0.0
  %1244 = vmatpush1.msra.mxu0 %v1232
  %1245 = vmatprep.subr.mxu0 0.0
  %1246 = vmatpush1.msra.mxu0 %v1234
  %1247 = vmatprep.subr.mxu0 0.0
  %1248 = vmatpush1.msra.mxu0 0.0
  %1249 = vmatprep.subr.mxu0 0.0
  %1250 = vmatpush1.msra.mxu0 0.0
  %1251 = vmatprep.subr.mxu0 0.0
  %1252 = vmatpush1.msra.mxu0 0.0
  %1253 = vmatprep.subr.mxu0 0.0
  %1254 = vmatpush1.msra.mxu0 0.0
  %1255 = vmatprep.subr.mxu0 0.0
  %1256 = vmatpush1.msra.mxu0 0.0
  %1257 = vmatprep.subr.mxu0 0.0
  %1258 = vmatpush1.msra.mxu0 0.0
  %1259 = vmatprep.subr.mxu0 0.0
  %1260 = vmatpush1.msra.mxu0 0.0
  %1261 = vmatprep.subr.mxu0 0.0
  %1262 = vmatpush1.msra.mxu0 0.0
  %1263 = vmatprep.subr.mxu0 0.0
  %1264 = vmatpush1.msra.mxu0 0.0
  %1265 = vmatprep.subr.mxu0 0.0
  %1266 = vmatpush1.msra.mxu0 0.0
  %1267 = vmatprep.subr.mxu0 0.0
  %1268 = vmatpush1.msra.mxu0 0.0
  %1269 = vmatprep.subr.mxu0 0.0
  %1270 = vmatpush1.msra.mxu0 0.0
  %1271 = vmatprep.subr.mxu0 0.0
  %1272 = vmatpush1.msra.mxu0 0.0
  %1273 = vmatprep.subr.mxu0 0.0
  %1274 = vmatpush1.msra.mxu0 0.0
  %1275 = vmatprep.subr.mxu0 0.0
  %1276 = vmatpush1.msra.mxu0 0.0
  %1277 = vmatprep.subr.mxu0 0.0
  %1278 = vmatpush1.msra.mxu0 0.0
  %1279 = vmatprep.subr.mxu0 0.0
  %1280 = vmatpush1.msra.mxu0 0.0
  %1281 = vmatprep.subr.mxu0 0.0
  %1282 = vmatpush1.msra.mxu0 0.0
  %1283 = vmatprep.subr.mxu0 0.0
  %1284 = vmatpush1.msra.mxu0 0.0
  %1285 = vmatprep.subr.mxu0 0.0
  %1286 = vmatpush1.msra.mxu0 0.0
  %1287 = vmatprep.subr.mxu0 0.0
  %1288 = vmatpush1.msra.mxu0 0.0
  %1289 = vmatprep.subr.mxu0 0.0
  %1290 = vmatpush1.msra.mxu0 0.0
  %1291 = vmatprep.subr.mxu0 0.0
  %1292 = vmatpush1.msra.mxu0 0.0
  %1293 = vmatprep.subr.mxu0 0.0
  %1294 = vmatpush1.msra.mxu0 0.0
  %1295 = vmatprep.subr.mxu0 0.0
  %1296 = vmatpush1.msra.mxu0 0.0
  %1297 = vmatprep.subr.mxu0 0.0
  %1298 = vmatpush1.msra.mxu0 0.0
  %1299 = vmatprep.subr.mxu0 0.0
  %1300 = vmatpush1.msra.mxu0 0.0
  %1301 = vmatprep.subr.mxu0 0.0
  %1302 = vmatpush1.msra.mxu0 0.0
  %1303 = vmatprep.subr.mxu0 0.0
  %1304 = vmatpush1.msra.mxu0 0.0
  %1305 = vmatprep.subr.mxu0 0.0
  %1306 = vmatpush1.msra.mxu0 0.0
  %1307 = vmatprep.mubr.f32.mxu0 0.0
  %1308 = vmatmul.mubr.f32.gmra.mrb[0].mxu0 %v1238
  %v1309 = vpop.f32.mrb[0].mxu0
  %v1310 = vadd.f32 0.0, %v1309
  %v1311 = vpop.f32.mrb[0].mxu0
  %1312 = vmatprep.mubr.f32.mxu0 0.0
  %1313 = vmatmul.mubr.f32.gmra.mrb[0].mxu0 %v1241
  %v1314 = vpop.f32.mrb[0].mxu0
  %v1315 = vadd.f32 0.0, %v1314
  %v1316 = vpop.f32.mrb[0].mxu0
  %1317 = vdwg.mxu0
  %v1319 = vsel %vm264, %v1310, 0
  %v1322 = vsel %vm264, %v1315, 0
  %1324 = vmatprep.subr.mxu0 0.0
  %1325 = vmatpush1.msra.mxu0 %v257
  %1326 = vmatprep.subr.mxu0 0.0
  %1327 = vmatpush1.msra.mxu0 0.0
  %1328 = vmatprep.subr.mxu0 0.0
  %1329 = vmatpush1.msra.mxu0 0.0
  %1330 = vmatprep.subr.mxu0 0.0
  %1331 = vmatpush1.msra.mxu0 0.0
  %1332 = vmatprep.subr.mxu0 0.0
  %1333 = vmatpush1.msra.mxu0 0.0
  %1334 = vmatprep.subr.mxu0 0.0
  %1335 = vmatpush1.msra.mxu0 0.0
  %1336 = vmatprep.subr.mxu0 0.0
  %1337 = vmatpush1.msra.mxu0 0.0
  %1338 = vmatprep.subr.mxu0 0.0
  %1339 = vmatpush1.msra.mxu0 0.0
  %1340 = vmatprep.subr.mxu0 0.0
  %1341 = vmatpush1.msra.mxu0 0.0
  %1342 = vmatprep.subr.mxu0 0.0
  %1343 = vmatpush1.msra.mxu0 0.0
  %1344 = vmatprep.subr.mxu0 0.0
  %1345 = vmatpush1.msra.mxu0 0.0
  %1346 = vmatprep.subr.mxu0 0.0
  %1347 = vmatpush1.msra.mxu0 0.0
  %1348 = vmatprep.subr.mxu0 0.0
  %1349 = vmatpush1.msra.mxu0 0.0
  %1350 = vmatprep.subr.mxu0 0.0
  %1351 = vmatpush1.msra.mxu0 0.0
  %1352 = vmatprep.subr.mxu0 0.0
  %1353 = vmatpush1.msra.mxu0 0.0
  %1354 = vmatprep.subr.mxu0 0.0
  %1355 = vmatpush1.msra.mxu0 0.0
  %1356 = vmatprep.subr.mxu0 0.0
  %1357 = vmatpush1.msra.mxu0 0.0
  %1358 = vmatprep.subr.mxu0 0.0
  %1359 = vmatpush1.msra.mxu0 0.0
  %1360 = vmatprep.subr.mxu0 0.0
  %1361 = vmatpush1.msra.mxu0 0.0
  %1362 = vmatprep.subr.mxu0 0.0
  %1363 = vmatpush1.msra.mxu0 0.0
  %1364 = vmatprep.subr.mxu0 0.0
  %1365 = vmatpush1.msra.mxu0 0.0
  %1366 = vmatprep.subr.mxu0 0.0
  %1367 = vmatpush1.msra.mxu0 0.0
  %1368 = vmatprep.subr.mxu0 0.0
  %1369 = vmatpush1.msra.mxu0 0.0
  %1370 = vmatprep.subr.mxu0 0.0
  %1371 = vmatpush1.msra.mxu0 0.0
  %1372 = vmatprep.subr.mxu0 0.0
  %1373 = vmatpush1.msra.mxu0 0.0
  %1374 = vmatprep.subr.mxu0 0.0
  %1375 = vmatpush1.msra.mxu0 0.0
  %1376 = vmatprep.subr.mxu0 0.0
  %1377 = vmatpush1.msra.mxu0 0.0
  %1378 = vmatprep.subr.mxu0 0.0
  %1379 = vmatpush1.msra.mxu0 0.0
  %1380 = vmatprep.subr.mxu0 0.0
  %1381 = vmatpush1.msra.mxu0 0.0
  %1382 = vmatprep.subr.mxu0 0.0
  %1383 = vmatpush1.msra.mxu0 0.0
  %1384 = vmatprep.subr.mxu0 0.0
  %1385 = vmatpush1.msra.mxu0 0.0
  %1386 = vmatprep.subr.mxu0 0.0
  %1387 = vmatpush1.msra.mxu0 0.0
  %1388 = vmatprep.mubr.f32.mxu0 0.0
  %1389 = vmatmul.mubr.f32.gmra.mrb[0].mxu0 %v1319
  %v1390 = vpop.f32.mrb[0].mxu0
  %v1391 = vadd.f32 0.0, %v1390
  %v1392 = vpop.f32.mrb[0].mxu0
  %1393 = vmatprep.mubr.f32.mxu0 0.0
  %1394 = vmatmul.mubr.f32.gmra.mrb[0].mxu0 %v1322
  %v1395 = vpop.f32.mrb[0].mxu0
  %v1396 = vadd.f32 0.0, %v1395
  %v1397 = vpop.f32.mrb[0].mxu0
  %1398 = vdwg.mxu0
  %v1399 = vadd.f32 %v1112, %v1391
  %v1400 = vadd.f32 %v1113, %v1396
  %v1401 = vld [vmem:[%s7] sm:$0x1]
  %v1403 = vlaneseq
  %v1404 = vshrl.u32 %v1403, 7
  %v1405 = vsub.s32 0, %v1404
  %v1406 = vrot.slane %v1401, %v1405
  %v1408 = vadd.f32 %v1399, %v1406
  %v1409 = vadd.f32 %v1400, %v1406
  %v1410 = vadd.f32 %v151, %v1408
  %v1411 = vadd.f32 %v156, %v1409
  %v1412 = vld [vmem:[%s8] sm:$0x1]
  %v1413 = vld [vmem:[%s9] sm:$0x1]
  %v1414 = vsel %vm172, %v1410, 0.0
  %1415 = vadd.xlane.f32.xlu0 %v1414
  %v1416 = vpop.xlane.xlu0 %1415
  %v1417 = vsel %vm172, %v1411, 0.0
  %1418 = vadd.xlane.f32.xlu0 %v1417
  %v1419 = vpop.xlane.xlu0 %1418
  %v1420 = vrcp.pop 32.0
  %v1421 = vmul.f32 %v1416, %v1420
  %v1422 = vmul.f32 %v1419, %v1420
  %v1423 = vsub.f32 %v1410, %v1421
  %v1424 = vsub.f32 %v1411, %v1422
  %v1425 = vmul.f32 %v1423, %v1423
  %v1426 = vmul.f32 %v1424, %v1424
  %v1427 = vsel %vm172, %v1425, 0.0
  %1428 = vadd.xlane.f32.xlu0 %v1427
  %v1429 = vpop.xlane.xlu0 %1428
  %v1430 = vsel %vm172, %v1426, 0.0
  %1431 = vadd.xlane.f32.xlu0 %v1430
  %v1432 = vpop.xlane.xlu0 %1431
  %v1433 = vmul.f32 %v1429, %v1420
  %v1434 = vmul.f32 %v1432, %v1420
  %v1435 = vadd.f32 %v1433, 1e-05
  %v1436 = vadd.f32 %v1434, 1e-05
  %v1437 = vrsqrt.pop %v1435
  %v1438 = vrsqrt.pop %v1436
  %v1439 = vmul.f32 %v1423, %v1437
  %v1440 = vmul.f32 %v1424, %v1438
  %v1442 = vlaneseq
  %v1443 = vshrl.u32 %v1442, 7
  %v1444 = vsub.s32 0, %v1443
  %v1445 = vrot.slane %v1412, %v1444
  %v1447 = vmul.f32 %v1439, %v1445
  %v1448 = vmul.f32 %v1440, %v1445
  %v1450 = vlaneseq
  %v1451 = vshrl.u32 %v1450, 7
  %v1452 = vsub.s32 0, %v1451
  %v1453 = vrot.slane %v1413, %v1452
  %v1455 = vadd.f32 %v1447, %v1453
  %v1456 = vadd.f32 %v1448, %v1453
  %v1457 = vld [vmem:[%s10] sm:$0xff]
  %v1458 = vld [vmem:[%s10 + $0x8] sm:$0xff]
  %v1459 = vld [vmem:[%s10 + $0x10] sm:$0xff]
  %v1460 = vld [vmem:[%s10 + $0x18] sm:$0xff]
  %v1461 = vld [vmem:[%s11] sm:$0x1]
  %v1463 = vlaneseq
  %v1464 = vshrl.u32 %v1463, 7
  %v1465 = vsub.s32 0, %v1464
  %v1466 = vrot.slane %v1461, %v1465
  %v1469 = vsel %vm172, %v1455, 0
  %v1472 = vsel %vm172, %v1456, 0
  %1474 = vmatprep.subr.mxu0 0.0
  %1475 = vmatpush1.msra.mxu0 %v1457
  %1476 = vmatprep.subr.mxu0 0.0
  %1477 = vmatpush1.msra.mxu0 %v1458
  %1478 = vmatprep.subr.mxu0 0.0
  %1479 = vmatpush1.msra.mxu0 %v1459
  %1480 = vmatprep.subr.mxu0 0.0
  %1481 = vmatpush1.msra.mxu0 %v1460
  %1482 = vmatprep.subr.mxu0 0.0
  %1483 = vmatpush1.msra.mxu0 0.0
  %1484 = vmatprep.subr.mxu0 0.0
  %1485 = vmatpush1.msra.mxu0 0.0
  %1486 = vmatprep.subr.mxu0 0.0
  %1487 = vmatpush1.msra.mxu0 0.0
  %1488 = vmatprep.subr.mxu0 0.0
  %1489 = vmatpush1.msra.mxu0 0.0
  %1490 = vmatprep.subr.mxu0 0.0
  %1491 = vmatpush1.msra.mxu0 0.0
  %1492 = vmatprep.subr.mxu0 0.0
  %1493 = vmatpush1.msra.mxu0 0.0
  %1494 = vmatprep.subr.mxu0 0.0
  %1495 = vmatpush1.msra.mxu0 0.0
  %1496 = vmatprep.subr.mxu0 0.0
  %1497 = vmatpush1.msra.mxu0 0.0
  %1498 = vmatprep.subr.mxu0 0.0
  %1499 = vmatpush1.msra.mxu0 0.0
  %1500 = vmatprep.subr.mxu0 0.0
  %1501 = vmatpush1.msra.mxu0 0.0
  %1502 = vmatprep.subr.mxu0 0.0
  %1503 = vmatpush1.msra.mxu0 0.0
  %1504 = vmatprep.subr.mxu0 0.0
  %1505 = vmatpush1.msra.mxu0 0.0
  %1506 = vmatprep.subr.mxu0 0.0
  %1507 = vmatpush1.msra.mxu0 0.0
  %1508 = vmatprep.subr.mxu0 0.0
  %1509 = vmatpush1.msra.mxu0 0.0
  %1510 = vmatprep.subr.mxu0 0.0
  %1511 = vmatpush1.msra.mxu0 0.0
  %1512 = vmatprep.subr.mxu0 0.0
  %1513 = vmatpush1.msra.mxu0 0.0
  %1514 = vmatprep.subr.mxu0 0.0
  %1515 = vmatpush1.msra.mxu0 0.0
  %1516 = vmatprep.subr.mxu0 0.0
  %1517 = vmatpush1.msra.mxu0 0.0
  %1518 = vmatprep.subr.mxu0 0.0
  %1519 = vmatpush1.msra.mxu0 0.0
  %1520 = vmatprep.subr.mxu0 0.0
  %1521 = vmatpush1.msra.mxu0 0.0
  %1522 = vmatprep.subr.mxu0 0.0
  %1523 = vmatpush1.msra.mxu0 0.0
  %1524 = vmatprep.subr.mxu0 0.0
  %1525 = vmatpush1.msra.mxu0 0.0
  %1526 = vmatprep.subr.mxu0 0.0
  %1527 = vmatpush1.msra.mxu0 0.0
  %1528 = vmatprep.subr.mxu0 0.0
  %1529 = vmatpush1.msra.mxu0 0.0
  %1530 = vmatprep.subr.mxu0 0.0
  %1531 = vmatpush1.msra.mxu0 0.0
  %1532 = vmatprep.subr.mxu0 0.0
  %1533 = vmatpush1.msra.mxu0 0.0
  %1534 = vmatprep.subr.mxu0 0.0
  %1535 = vmatpush1.msra.mxu0 0.0
  %1536 = vmatprep.subr.mxu0 0.0
  %1537 = vmatpush1.msra.mxu0 0.0
  %1538 = vmatprep.mubr.f32.mxu0 0.0
  %1539 = vmatmul.mubr.f32.gmra.mrb[0].mxu0 %v1469
  %v1540 = vpop.f32.mrb[0].mxu0
  %v1541 = vadd.f32 %v1466, %v1540
  %v1542 = vpop.f32.mrb[0].mxu0
  %1543 = vmatprep.mubr.f32.mxu0 0.0
  %1544 = vmatmul.mubr.f32.gmra.mrb[0].mxu0 %v1472
  %v1545 = vpop.f32.mrb[0].mxu0
  %v1546 = vadd.f32 %v1466, %v1545
  %v1547 = vpop.f32.mrb[0].mxu0
  %1548 = vdwg.mxu0
  %v1549 = vmax.f32 %v1541, 0.0
  %v1550 = vmax.f32 %v1546, 0.0
  %v1551 = vld [vmem:[%s12] sm:$0xff]
  %v1552 = vld [vmem:[%s12 + $0x8] sm:$0xff]
  %v1553 = vld [vmem:[%s12 + $0x10] sm:$0xff]
  %v1554 = vld [vmem:[%s12 + $0x18] sm:$0xff]
  %v1555 = vld [vmem:[%s12 + $0x20] sm:$0xff]
  %v1556 = vld [vmem:[%s12 + $0x28] sm:$0xff]
  %v1557 = vld [vmem:[%s12 + $0x30] sm:$0xff]
  %v1558 = vld [vmem:[%s12 + $0x38] sm:$0xff]
  %vm1559 = vcmask 523264
  %v1561 = vsel %vm1559, %v1549, 0
  %v1564 = vsel %vm1559, %v1550, 0
  %1566 = vmatprep.subr.mxu0 0.0
  %1567 = vmatpush1.msra.mxu0 %v1551
  %1568 = vmatprep.subr.mxu0 0.0
  %1569 = vmatpush1.msra.mxu0 %v1552
  %1570 = vmatprep.subr.mxu0 0.0
  %1571 = vmatpush1.msra.mxu0 %v1553
  %1572 = vmatprep.subr.mxu0 0.0
  %1573 = vmatpush1.msra.mxu0 %v1554
  %1574 = vmatprep.subr.mxu0 0.0
  %1575 = vmatpush1.msra.mxu0 %v1555
  %1576 = vmatprep.subr.mxu0 0.0
  %1577 = vmatpush1.msra.mxu0 %v1556
  %1578 = vmatprep.subr.mxu0 0.0
  %1579 = vmatpush1.msra.mxu0 %v1557
  %1580 = vmatprep.subr.mxu0 0.0
  %1581 = vmatpush1.msra.mxu0 %v1558
  %1582 = vmatprep.subr.mxu0 0.0
  %1583 = vmatpush1.msra.mxu0 0.0
  %1584 = vmatprep.subr.mxu0 0.0
  %1585 = vmatpush1.msra.mxu0 0.0
  %1586 = vmatprep.subr.mxu0 0.0
  %1587 = vmatpush1.msra.mxu0 0.0
  %1588 = vmatprep.subr.mxu0 0.0
  %1589 = vmatpush1.msra.mxu0 0.0
  %1590 = vmatprep.subr.mxu0 0.0
  %1591 = vmatpush1.msra.mxu0 0.0
  %1592 = vmatprep.subr.mxu0 0.0
  %1593 = vmatpush1.msra.mxu0 0.0
  %1594 = vmatprep.subr.mxu0 0.0
  %1595 = vmatpush1.msra.mxu0 0.0
  %1596 = vmatprep.subr.mxu0 0.0
  %1597 = vmatpush1.msra.mxu0 0.0
  %1598 = vmatprep.subr.mxu0 0.0
  %1599 = vmatpush1.msra.mxu0 0.0
  %1600 = vmatprep.subr.mxu0 0.0
  %1601 = vmatpush1.msra.mxu0 0.0
  %1602 = vmatprep.subr.mxu0 0.0
  %1603 = vmatpush1.msra.mxu0 0.0
  %1604 = vmatprep.subr.mxu0 0.0
  %1605 = vmatpush1.msra.mxu0 0.0
  %1606 = vmatprep.subr.mxu0 0.0
  %1607 = vmatpush1.msra.mxu0 0.0
  %1608 = vmatprep.subr.mxu0 0.0
  %1609 = vmatpush1.msra.mxu0 0.0
  %1610 = vmatprep.subr.mxu0 0.0
  %1611 = vmatpush1.msra.mxu0 0.0
  %1612 = vmatprep.subr.mxu0 0.0
  %1613 = vmatpush1.msra.mxu0 0.0
  %1614 = vmatprep.subr.mxu0 0.0
  %1615 = vmatpush1.msra.mxu0 0.0
  %1616 = vmatprep.subr.mxu0 0.0
  %1617 = vmatpush1.msra.mxu0 0.0
  %1618 = vmatprep.subr.mxu0 0.0
  %1619 = vmatpush1.msra.mxu0 0.0
  %1620 = vmatprep.subr.mxu0 0.0
  %1621 = vmatpush1.msra.mxu0 0.0
  %1622 = vmatprep.subr.mxu0 0.0
  %1623 = vmatpush1.msra.mxu0 0.0
  %1624 = vmatprep.subr.mxu0 0.0
  %1625 = vmatpush1.msra.mxu0 0.0
  %1626 = vmatprep.subr.mxu0 0.0
  %1627 = vmatpush1.msra.mxu0 0.0
  %1628 = vmatprep.subr.mxu0 0.0
  %1629 = vmatpush1.msra.mxu0 0.0
  %1630 = vmatprep.mubr.f32.mxu0 0.0
  %1631 = vmatmul.mubr.f32.gmra.mrb[0].mxu0 %v1561
  %v1632 = vpop.f32.mrb[0].mxu0
  %v1633 = vadd.f32 0.0, %v1632
  %v1634 = vpop.f32.mrb[0].mxu0
  %1635 = vmatprep.mubr.f32.mxu0 0.0
  %1636 = vmatmul.mubr.f32.gmra.mrb[0].mxu0 %v1564
  %v1637 = vpop.f32.mrb[0].mxu0
  %v1638 = vadd.f32 0.0, %v1637
  %v1639 = vpop.f32.mrb[0].mxu0
  %1640 = vdwg.mxu0
  %v1641 = vadd.f32 %v1455, %v1633
  %v1642 = vadd.f32 %v1456, %v1638
  %v1643 = vld [vmem:[%s13] sm:$0x1]
  %v1645 = vlaneseq
  %v1646 = vshrl.u32 %v1645, 7
  %v1647 = vsub.s32 0, %v1646
  %v1648 = vrot.slane %v1643, %v1647
  %v1650 = vadd.f32 %v1641, %v1648
  %v1651 = vadd.f32 %v1642, %v1648
  %v1652 = vld [vmem:[%s14] sm:$0x1]
  %v1653 = vld [vmem:[%s15] sm:$0x1]
  %v1654 = vsel %vm172, %v1650, 0.0
  %1655 = vadd.xlane.f32.xlu0 %v1654
  %v1656 = vpop.xlane.xlu0 %1655
  %v1657 = vsel %vm172, %v1651, 0.0
  %1658 = vadd.xlane.f32.xlu0 %v1657
  %v1659 = vpop.xlane.xlu0 %1658
  %v1660 = vmul.f32 %v1656, %v1420
  %v1661 = vmul.f32 %v1659, %v1420
  %v1662 = vsub.f32 %v1650, %v1660
  %v1663 = vsub.f32 %v1651, %v1661
  %v1664 = vmul.f32 %v1662, %v1662
  %v1665 = vmul.f32 %v1663, %v1663
  %v1666 = vsel %vm172, %v1664, 0.0
  %1667 = vadd.xlane.f32.xlu0 %v1666
  %v1668 = vpop.xlane.xlu0 %1667
  %v1669 = vsel %vm172, %v1665, 0.0
  %1670 = vadd.xlane.f32.xlu0 %v1669
  %v1671 = vpop.xlane.xlu0 %1670
  %v1672 = vmul.f32 %v1668, %v1420
  %v1673 = vmul.f32 %v1671, %v1420
  %v1674 = vadd.f32 %v1672, 1e-05
  %v1675 = vadd.f32 %v1673, 1e-05
  %v1676 = vrsqrt.pop %v1674
  %v1677 = vrsqrt.pop %v1675
  %v1678 = vmul.f32 %v1662, %v1676
  %v1679 = vmul.f32 %v1663, %v1677
  %v1681 = vlaneseq
  %v1682 = vshrl.u32 %v1681, 7
  %v1683 = vsub.s32 0, %v1682
  %v1684 = vrot.slane %v1652, %v1683
  %v1686 = vmul.f32 %v1678, %v1684
  %v1687 = vmul.f32 %v1679, %v1684
  %v1689 = vlaneseq
  %v1690 = vshrl.u32 %v1689, 7
  %v1691 = vsub.s32 0, %v1690
  %v1692 = vrot.slane %v1653, %v1691
  %v1694 = vadd.f32 %v1686, %v1692
  %v1695 = vadd.f32 %v1687, %v1692
  %s1696 = scalar_lea.vmem %s4, 32
  %v1697 = vld [vmem:[%s1696] sm:$0xff]
  %v1698 = vld [vmem:[%s1696 + $0x8] sm:$0xff]
  %v1699 = vld [vmem:[%s1696 + $0x10] sm:$0xff]
  %v1700 = vld [vmem:[%s1696 + $0x18] sm:$0xff]
  %s1701 = scalar_lea.vmem %s5, 1
  %v1702 = vld [vmem:[%s1701] sm:$0x1]
  %v1704 = vlaneseq
  %v1705 = vshrl.u32 %v1704, 7
  %v1706 = vsub.s32 0, %v1705
  %v1707 = vrot.slane %v1702, %v1706
  %v1710 = vsel %vm172, %v1694, 0
  %v1713 = vsel %vm172, %v1695, 0
  %1715 = vmatprep.subr.mxu0 0.0
  %1716 = vmatpush1.msra.mxu0 %v1697
  %1717 = vmatprep.subr.mxu0 0.0
  %1718 = vmatpush1.msra.mxu0 %v1698
  %1719 = vmatprep.subr.mxu0 0.0
  %1720 = vmatpush1.msra.mxu0 %v1699
  %1721 = vmatprep.subr.mxu0 0.0
  %1722 = vmatpush1.msra.mxu0 %v1700
  %1723 = vmatprep.subr.mxu0 0.0
  %1724 = vmatpush1.msra.mxu0 0.0
  %1725 = vmatprep.subr.mxu0 0.0
  %1726 = vmatpush1.msra.mxu0 0.0
  %1727 = vmatprep.subr.mxu0 0.0
  %1728 = vmatpush1.msra.mxu0 0.0
  %1729 = vmatprep.subr.mxu0 0.0
  %1730 = vmatpush1.msra.mxu0 0.0
  %1731 = vmatprep.subr.mxu0 0.0
  %1732 = vmatpush1.msra.mxu0 0.0
  %1733 = vmatprep.subr.mxu0 0.0
  %1734 = vmatpush1.msra.mxu0 0.0
  %1735 = vmatprep.subr.mxu0 0.0
  %1736 = vmatpush1.msra.mxu0 0.0
  %1737 = vmatprep.subr.mxu0 0.0
  %1738 = vmatpush1.msra.mxu0 0.0
  %1739 = vmatprep.subr.mxu0 0.0
  %1740 = vmatpush1.msra.mxu0 0.0
  %1741 = vmatprep.subr.mxu0 0.0
  %1742 = vmatpush1.msra.mxu0 0.0
  %1743 = vmatprep.subr.mxu0 0.0
  %1744 = vmatpush1.msra.mxu0 0.0
  %1745 = vmatprep.subr.mxu0 0.0
  %1746 = vmatpush1.msra.mxu0 0.0
  %1747 = vmatprep.subr.mxu0 0.0
  %1748 = vmatpush1.msra.mxu0 0.0
  %1749 = vmatprep.subr.mxu0 0.0
  %1750 = vmatpush1.msra.mxu0 0.0
  %1751 = vmatprep.subr.mxu0 0.0
  %1752 = vmatpush1.msra.mxu0 0.0
  %1753 = vmatprep.subr.mxu0 0.0
  %1754 = vmatpush1.msra.mxu0 0.0
  %1755 = vmatprep.subr.mxu0 0.0
  %1756 = vmatpush1.msra.mxu0 0.0
  %1757 = vmatprep.subr.mxu0 0.0
  %1758 = vmatpush1.msra.mxu0 0.0
  %1759 = vmatprep.subr.mxu0 0.0
  %1760 = vmatpush1.msra.mxu0 0.0
  %1761 = vmatprep.subr.mxu0 0.0
  %1762 = vmatpush1.msra.mxu0 0.0
  %1763 = vmatprep.subr.mxu0 0.0
  %1764 = vmatpush1.msra.mxu0 0.0
  %1765 = vmatprep.subr.mxu0 0.0
  %1766 = vmatpush1.msra.mxu0 0.0
  %1767 = vmatprep.subr.mxu0 0.0
  %1768 = vmatpush1.msra.mxu0 0.0
  %1769 = vmatprep.subr.mxu0 0.0
  %1770 = vmatpush1.msra.mxu0 0.0
  %1771 = vmatprep.subr.mxu0 0.0
  %1772 = vmatpush1.msra.mxu0 0.0
  %1773 = vmatprep.subr.mxu0 0.0
  %1774 = vmatpush1.msra.mxu0 0.0
  %1775 = vmatprep.subr.mxu0 0.0
  %1776 = vmatpush1.msra.mxu0 0.0
  %1777 = vmatprep.subr.mxu0 0.0
  %1778 = vmatpush1.msra.mxu0 0.0
  %1779 = vmatprep.mubr.f32.mxu0 0.0
  %1780 = vmatmul.mubr.f32.gmra.mrb[0].mxu0 %v1710
  %v1781 = vpop.f32.mrb[0].mxu0
  %v1782 = vadd.f32 %v1707, %v1781
  %v1783 = vpop.f32.mrb[0].mxu0
  %1784 = vmatprep.mubr.f32.mxu0 0.0
  %1785 = vmatmul.mubr.f32.gmra.mrb[0].mxu0 %v1713
  %v1786 = vpop.f32.mrb[0].mxu0
  %v1787 = vadd.f32 %v1707, %v1786
  %v1788 = vpop.f32.mrb[0].mxu0
  %1789 = vdwg.mxu0
  %s1790 = scalar_lea.vmem %s6, 32
  %v1791 = vld [vmem:[%s1790] sm:$0xff]
  %v1792 = vld [vmem:[%s1790 + $0x8] sm:$0xff]
  %v1793 = vld [vmem:[%s1790 + $0x10] sm:$0xff]
  %v1794 = vld [vmem:[%s1790 + $0x18] sm:$0xff]
  %1797 = vrot.lane.b32.xlu0 %v1782, 96
  %v1798 = vpop.permute.xlu0 %1797
  %1799 = vrot.lane.b32.xlu0 %v1787, 96
  %v1800 = vpop.permute.xlu0 %1799
  %v1801 = vsel %vm264, %v1782, 0
  %v1803 = vsel %vm264, %v1787, 0
  %v1805 = vsel %vm264, %v1798, 0
  %v1807 = vsel %vm264, %v1800, 0
  %1809 = vmatprep.subr.mxu0 0.0
  %1810 = vmatpush1.xpose.msra.mxu0 %v1805
  %1811 = vmatprep.subr.mxu0 0.0
  %1812 = vmatpush1.xpose.msra.mxu0 %v1807
  %1813 = vmatprep.subr.mxu0 0.0
  %1814 = vmatpush1.xpose.msra.mxu0 0.0
  %1815 = vmatprep.subr.mxu0 0.0
  %1816 = vmatpush1.xpose.msra.mxu0 0.0
  %1817 = vmatprep.subr.mxu0 0.0
  %1818 = vmatpush1.xpose.msra.mxu0 0.0
  %1819 = vmatprep.subr.mxu0 0.0
  %1820 = vmatpush1.xpose.msra.mxu0 0.0
  %1821 = vmatprep.subr.mxu0 0.0
  %1822 = vmatpush1.xpose.msra.mxu0 0.0
  %1823 = vmatprep.subr.mxu0 0.0
  %1824 = vmatpush1.xpose.msra.mxu0 0.0
  %1825 = vmatprep.subr.mxu0 0.0
  %1826 = vmatpush1.xpose.msra.mxu0 0.0
  %1827 = vmatprep.subr.mxu0 0.0
  %1828 = vmatpush1.xpose.msra.mxu0 0.0
  %1829 = vmatprep.subr.mxu0 0.0
  %1830 = vmatpush1.xpose.msra.mxu0 0.0
  %1831 = vmatprep.subr.mxu0 0.0
  %1832 = vmatpush1.xpose.msra.mxu0 0.0
  %1833 = vmatprep.subr.mxu0 0.0
  %1834 = vmatpush1.xpose.msra.mxu0 0.0
  %1835 = vmatprep.subr.mxu0 0.0
  %1836 = vmatpush1.xpose.msra.mxu0 0.0
  %1837 = vmatprep.subr.mxu0 0.0
  %1838 = vmatpush1.xpose.msra.mxu0 0.0
  %1839 = vmatprep.subr.mxu0 0.0
  %1840 = vmatpush1.xpose.msra.mxu0 0.0
  %1841 = vmatprep.subr.mxu0 0.0
  %1842 = vmatpush1.xpose.msra.mxu0 0.0
  %1843 = vmatprep.subr.mxu0 0.0
  %1844 = vmatpush1.xpose.msra.mxu0 0.0
  %1845 = vmatprep.subr.mxu0 0.0
  %1846 = vmatpush1.xpose.msra.mxu0 0.0
  %1847 = vmatprep.subr.mxu0 0.0
  %1848 = vmatpush1.xpose.msra.mxu0 0.0
  %1849 = vmatprep.subr.mxu0 0.0
  %1850 = vmatpush1.xpose.msra.mxu0 0.0
  %1851 = vmatprep.subr.mxu0 0.0
  %1852 = vmatpush1.xpose.msra.mxu0 0.0
  %1853 = vmatprep.subr.mxu0 0.0
  %1854 = vmatpush1.xpose.msra.mxu0 0.0
  %1855 = vmatprep.subr.mxu0 0.0
  %1856 = vmatpush1.xpose.msra.mxu0 0.0
  %1857 = vmatprep.subr.mxu0 0.0
  %1858 = vmatpush1.xpose.msra.mxu0 0.0
  %1859 = vmatprep.subr.mxu0 0.0
  %1860 = vmatpush1.xpose.msra.mxu0 0.0
  %1861 = vmatprep.subr.mxu0 0.0
  %1862 = vmatpush1.xpose.msra.mxu0 0.0
  %1863 = vmatprep.subr.mxu0 0.0
  %1864 = vmatpush1.xpose.msra.mxu0 0.0
  %1865 = vmatprep.subr.mxu0 0.0
  %1866 = vmatpush1.xpose.msra.mxu0 0.0
  %1867 = vmatprep.subr.mxu0 0.0
  %1868 = vmatpush1.xpose.msra.mxu0 0.0
  %1869 = vmatprep.subr.mxu0 0.0
  %1870 = vmatpush1.xpose.msra.mxu0 0.0
  %1871 = vmatprep.subr.mxu0 0.0
  %1872 = vmatpush1.xpose.msra.mxu0 0.0
  %1873 = vmatprep.mubr.f32.mxu0 0.0
  %1874 = vmatmul.mubr.f32.gmra.mrb[0].mxu0 %v1801
  %v1875 = vpop.f32.mrb[0].mxu0
  %v1876 = vadd.f32 0.0, %v1875
  %v1877 = vpop.f32.mrb[0].mxu0
  %1878 = vmatprep.mubr.f32.mxu0 0.0
  %1879 = vmatmul.mubr.f32.gmra.mrb[0].mxu0 %v1803
  %v1880 = vpop.f32.mrb[0].mxu0
  %v1881 = vadd.f32 0.0, %v1880
  %v1882 = vpop.f32.mrb[0].mxu0
  %1883 = vdwg.mxu0
  %v1884 = vmul.f32 %v1876, 0.35355338
  %v1885 = vmul.f32 %v1881, 0.35355338
  %v1886 = vadd.f32 %v1884, %v159
  %v1887 = vadd.f32 %v1885, %v160
  %v1888 = vsel %vm77, %v1886, -inf
  %1889 = vmax.xlane.f32.xlu0 %v1888
  %v1890 = vpop.xlane.xlu0 %1889
  %v1891 = vsel %vm77, %v1887, -inf
  %1892 = vmax.xlane.f32.xlu0 %v1891
  %v1893 = vpop.xlane.xlu0 %1892
  %v1894 = vsub.f32 %v1886, %v1890
  %v1895 = vsub.f32 %v1887, %v1893
  %v1896 = vmul.f32 %v1894, 1.442695
  %v1897 = vpow.pop %v1896
  %v1898 = vmul.f32 %v1895, 1.442695
  %v1899 = vpow.pop %v1898
  %v1900 = vsel %vm77, %v1897, 0.0
  %1901 = vadd.xlane.f32.xlu0 %v1900
  %v1902 = vpop.xlane.xlu0 %1901
  %v1903 = vsel %vm77, %v1899, 0.0
  %1904 = vadd.xlane.f32.xlu0 %v1903
  %v1905 = vpop.xlane.xlu0 %1904
  %v1906 = vrcp.pop %v1902
  %v1907 = vmul.f32 %v1897, %v1906
  %v1908 = vrcp.pop %v1905
  %v1909 = vmul.f32 %v1899, %v1908
  %1910 = vrot.lane.b32.xlu0 %v1782, 64
  %v1911 = vpop.permute.xlu0 %1910
  %1912 = vrot.lane.b32.xlu0 %v1787, 64
  %v1913 = vpop.permute.xlu0 %1912
  %v1917 = vsel %vm77, %v1907, 0
  %v1920 = vsel %vm77, %v1909, 0
  %1922 = vmatprep.subr.mxu0 0.0
  %1923 = vmatpush1.msra.mxu0 %v1911
  %1924 = vmatprep.subr.mxu0 0.0
  %1925 = vmatpush1.msra.mxu0 %v1913
  %1926 = vmatprep.subr.mxu0 0.0
  %1927 = vmatpush1.msra.mxu0 0.0
  %1928 = vmatprep.subr.mxu0 0.0
  %1929 = vmatpush1.msra.mxu0 0.0
  %1930 = vmatprep.subr.mxu0 0.0
  %1931 = vmatpush1.msra.mxu0 0.0
  %1932 = vmatprep.subr.mxu0 0.0
  %1933 = vmatpush1.msra.mxu0 0.0
  %1934 = vmatprep.subr.mxu0 0.0
  %1935 = vmatpush1.msra.mxu0 0.0
  %1936 = vmatprep.subr.mxu0 0.0
  %1937 = vmatpush1.msra.mxu0 0.0
  %1938 = vmatprep.subr.mxu0 0.0
  %1939 = vmatpush1.msra.mxu0 0.0
  %1940 = vmatprep.subr.mxu0 0.0
  %1941 = vmatpush1.msra.mxu0 0.0
  %1942 = vmatprep.subr.mxu0 0.0
  %1943 = vmatpush1.msra.mxu0 0.0
  %1944 = vmatprep.subr.mxu0 0.0
  %1945 = vmatpush1.msra.mxu0 0.0
  %1946 = vmatprep.subr.mxu0 0.0
  %1947 = vmatpush1.msra.mxu0 0.0
  %1948 = vmatprep.subr.mxu0 0.0
  %1949 = vmatpush1.msra.mxu0 0.0
  %1950 = vmatprep.subr.mxu0 0.0
  %1951 = vmatpush1.msra.mxu0 0.0
  %1952 = vmatprep.subr.mxu0 0.0
  %1953 = vmatpush1.msra.mxu0 0.0
  %1954 = vmatprep.subr.mxu0 0.0
  %1955 = vmatpush1.msra.mxu0 0.0
  %1956 = vmatprep.subr.mxu0 0.0
  %1957 = vmatpush1.msra.mxu0 0.0
  %1958 = vmatprep.subr.mxu0 0.0
  %1959 = vmatpush1.msra.mxu0 0.0
  %1960 = vmatprep.subr.mxu0 0.0
  %1961 = vmatpush1.msra.mxu0 0.0
  %1962 = vmatprep.subr.mxu0 0.0
  %1963 = vmatpush1.msra.mxu0 0.0
  %1964 = vmatprep.subr.mxu0 0.0
  %1965 = vmatpush1.msra.mxu0 0.0
  %1966 = vmatprep.subr.mxu0 0.0
  %1967 = vmatpush1.msra.mxu0 0.0
  %1968 = vmatprep.subr.mxu0 0.0
  %1969 = vmatpush1.msra.mxu0 0.0
  %1970 = vmatprep.subr.mxu0 0.0
  %1971 = vmatpush1.msra.mxu0 0.0
  %1972 = vmatprep.subr.mxu0 0.0
  %1973 = vmatpush1.msra.mxu0 0.0
  %1974 = vmatprep.subr.mxu0 0.0
  %1975 = vmatpush1.msra.mxu0 0.0
  %1976 = vmatprep.subr.mxu0 0.0
  %1977 = vmatpush1.msra.mxu0 0.0
  %1978 = vmatprep.subr.mxu0 0.0
  %1979 = vmatpush1.msra.mxu0 0.0
  %1980 = vmatprep.subr.mxu0 0.0
  %1981 = vmatpush1.msra.mxu0 0.0
  %1982 = vmatprep.subr.mxu0 0.0
  %1983 = vmatpush1.msra.mxu0 0.0
  %1984 = vmatprep.subr.mxu0 0.0
  %1985 = vmatpush1.msra.mxu0 0.0
  %1986 = vmatprep.mubr.f32.mxu0 0.0
  %1987 = vmatmul.mubr.f32.gmra.mrb[0].mxu0 %v1917
  %v1988 = vpop.f32.mrb[0].mxu0
  %v1989 = vadd.f32 0.0, %v1988
  %v1990 = vpop.f32.mrb[0].mxu0
  %1991 = vmatprep.mubr.f32.mxu0 0.0
  %1992 = vmatmul.mubr.f32.gmra.mrb[0].mxu0 %v1920
  %v1993 = vpop.f32.mrb[0].mxu0
  %v1994 = vadd.f32 0.0, %v1993
  %v1995 = vpop.f32.mrb[0].mxu0
  %1996 = vdwg.mxu0
  %1997 = vrot.lane.b32.xlu0 %v1782, 120
  %v1998 = vpop.permute.xlu0 %1997
  %1999 = vrot.lane.b32.xlu0 %v1787, 120
  %v2000 = vpop.permute.xlu0 %1999
  %2001 = vrot.lane.b32.xlu0 %v1782, 88
  %v2002 = vpop.permute.xlu0 %2001
  %2003 = vrot.lane.b32.xlu0 %v1787, 88
  %v2004 = vpop.permute.xlu0 %2003
  %v2005 = vsel %vm264, %v1998, 0
  %v2007 = vsel %vm264, %v2000, 0
  %v2009 = vsel %vm264, %v2002, 0
  %v2011 = vsel %vm264, %v2004, 0
  %2013 = vmatprep.subr.mxu0 0.0
  %2014 = vmatpush1.xpose.msra.mxu0 %v2009
  %2015 = vmatprep.subr.mxu0 0.0
  %2016 = vmatpush1.xpose.msra.mxu0 %v2011
  %2017 = vmatprep.subr.mxu0 0.0
  %2018 = vmatpush1.xpose.msra.mxu0 0.0
  %2019 = vmatprep.subr.mxu0 0.0
  %2020 = vmatpush1.xpose.msra.mxu0 0.0
  %2021 = vmatprep.subr.mxu0 0.0
  %2022 = vmatpush1.xpose.msra.mxu0 0.0
  %2023 = vmatprep.subr.mxu0 0.0
  %2024 = vmatpush1.xpose.msra.mxu0 0.0
  %2025 = vmatprep.subr.mxu0 0.0
  %2026 = vmatpush1.xpose.msra.mxu0 0.0
  %2027 = vmatprep.subr.mxu0 0.0
  %2028 = vmatpush1.xpose.msra.mxu0 0.0
  %2029 = vmatprep.subr.mxu0 0.0
  %2030 = vmatpush1.xpose.msra.mxu0 0.0
  %2031 = vmatprep.subr.mxu0 0.0
  %2032 = vmatpush1.xpose.msra.mxu0 0.0
  %2033 = vmatprep.subr.mxu0 0.0
  %2034 = vmatpush1.xpose.msra.mxu0 0.0
  %2035 = vmatprep.subr.mxu0 0.0
  %2036 = vmatpush1.xpose.msra.mxu0 0.0
  %2037 = vmatprep.subr.mxu0 0.0
  %2038 = vmatpush1.xpose.msra.mxu0 0.0
  %2039 = vmatprep.subr.mxu0 0.0
  %2040 = vmatpush1.xpose.msra.mxu0 0.0
  %2041 = vmatprep.subr.mxu0 0.0
  %2042 = vmatpush1.xpose.msra.mxu0 0.0
  %2043 = vmatprep.subr.mxu0 0.0
  %2044 = vmatpush1.xpose.msra.mxu0 0.0
  %2045 = vmatprep.subr.mxu0 0.0
  %2046 = vmatpush1.xpose.msra.mxu0 0.0
  %2047 = vmatprep.subr.mxu0 0.0
  %2048 = vmatpush1.xpose.msra.mxu0 0.0
  %2049 = vmatprep.subr.mxu0 0.0
  %2050 = vmatpush1.xpose.msra.mxu0 0.0
  %2051 = vmatprep.subr.mxu0 0.0
  %2052 = vmatpush1.xpose.msra.mxu0 0.0
  %2053 = vmatprep.subr.mxu0 0.0
  %2054 = vmatpush1.xpose.msra.mxu0 0.0
  %2055 = vmatprep.subr.mxu0 0.0
  %2056 = vmatpush1.xpose.msra.mxu0 0.0
  %2057 = vmatprep.subr.mxu0 0.0
  %2058 = vmatpush1.xpose.msra.mxu0 0.0
  %2059 = vmatprep.subr.mxu0 0.0
  %2060 = vmatpush1.xpose.msra.mxu0 0.0
  %2061 = vmatprep.subr.mxu0 0.0
  %2062 = vmatpush1.xpose.msra.mxu0 0.0
  %2063 = vmatprep.subr.mxu0 0.0
  %2064 = vmatpush1.xpose.msra.mxu0 0.0
  %2065 = vmatprep.subr.mxu0 0.0
  %2066 = vmatpush1.xpose.msra.mxu0 0.0
  %2067 = vmatprep.subr.mxu0 0.0
  %2068 = vmatpush1.xpose.msra.mxu0 0.0
  %2069 = vmatprep.subr.mxu0 0.0
  %2070 = vmatpush1.xpose.msra.mxu0 0.0
  %2071 = vmatprep.subr.mxu0 0.0
  %2072 = vmatpush1.xpose.msra.mxu0 0.0
  %2073 = vmatprep.subr.mxu0 0.0
  %2074 = vmatpush1.xpose.msra.mxu0 0.0
  %2075 = vmatprep.subr.mxu0 0.0
  %2076 = vmatpush1.xpose.msra.mxu0 0.0
  %2077 = vmatprep.mubr.f32.mxu0 0.0
  %2078 = vmatmul.mubr.f32.gmra.mrb[0].mxu0 %v2005
  %v2079 = vpop.f32.mrb[0].mxu0
  %v2080 = vadd.f32 0.0, %v2079
  %v2081 = vpop.f32.mrb[0].mxu0
  %2082 = vmatprep.mubr.f32.mxu0 0.0
  %2083 = vmatmul.mubr.f32.gmra.mrb[0].mxu0 %v2007
  %v2084 = vpop.f32.mrb[0].mxu0
  %v2085 = vadd.f32 0.0, %v2084
  %v2086 = vpop.f32.mrb[0].mxu0
  %2087 = vdwg.mxu0
  %v2088 = vmul.f32 %v2080, 0.35355338
  %v2089 = vmul.f32 %v2085, 0.35355338
  %v2090 = vadd.f32 %v2088, %v159
  %v2091 = vadd.f32 %v2089, %v160
  %v2092 = vsel %vm77, %v2090, -inf
  %2093 = vmax.xlane.f32.xlu0 %v2092
  %v2094 = vpop.xlane.xlu0 %2093
  %v2095 = vsel %vm77, %v2091, -inf
  %2096 = vmax.xlane.f32.xlu0 %v2095
  %v2097 = vpop.xlane.xlu0 %2096
  %v2098 = vsub.f32 %v2090, %v2094
  %v2099 = vsub.f32 %v2091, %v2097
  %v2100 = vmul.f32 %v2098, 1.442695
  %v2101 = vpow.pop %v2100
  %v2102 = vmul.f32 %v2099, 1.442695
  %v2103 = vpow.pop %v2102
  %v2104 = vsel %vm77, %v2101, 0.0
  %2105 = vadd.xlane.f32.xlu0 %v2104
  %v2106 = vpop.xlane.xlu0 %2105
  %v2107 = vsel %vm77, %v2103, 0.0
  %2108 = vadd.xlane.f32.xlu0 %v2107
  %v2109 = vpop.xlane.xlu0 %2108
  %v2110 = vrcp.pop %v2106
  %v2111 = vmul.f32 %v2101, %v2110
  %v2112 = vrcp.pop %v2109
  %v2113 = vmul.f32 %v2103, %v2112
  %2114 = vrot.lane.b32.xlu0 %v1782, 56
  %v2115 = vpop.permute.xlu0 %2114
  %2116 = vrot.lane.b32.xlu0 %v1787, 56
  %v2117 = vpop.permute.xlu0 %2116
  %v2121 = vsel %vm77, %v2111, 0
  %v2124 = vsel %vm77, %v2113, 0
  %2126 = vmatprep.subr.mxu0 0.0
  %2127 = vmatpush1.msra.mxu0 %v2115
  %2128 = vmatprep.subr.mxu0 0.0
  %2129 = vmatpush1.msra.mxu0 %v2117
  %2130 = vmatprep.subr.mxu0 0.0
  %2131 = vmatpush1.msra.mxu0 0.0
  %2132 = vmatprep.subr.mxu0 0.0
  %2133 = vmatpush1.msra.mxu0 0.0
  %2134 = vmatprep.subr.mxu0 0.0
  %2135 = vmatpush1.msra.mxu0 0.0
  %2136 = vmatprep.subr.mxu0 0.0
  %2137 = vmatpush1.msra.mxu0 0.0
  %2138 = vmatprep.subr.mxu0 0.0
  %2139 = vmatpush1.msra.mxu0 0.0
  %2140 = vmatprep.subr.mxu0 0.0
  %2141 = vmatpush1.msra.mxu0 0.0
  %2142 = vmatprep.subr.mxu0 0.0
  %2143 = vmatpush1.msra.mxu0 0.0
  %2144 = vmatprep.subr.mxu0 0.0
  %2145 = vmatpush1.msra.mxu0 0.0
  %2146 = vmatprep.subr.mxu0 0.0
  %2147 = vmatpush1.msra.mxu0 0.0
  %2148 = vmatprep.subr.mxu0 0.0
  %2149 = vmatpush1.msra.mxu0 0.0
  %2150 = vmatprep.subr.mxu0 0.0
  %2151 = vmatpush1.msra.mxu0 0.0
  %2152 = vmatprep.subr.mxu0 0.0
  %2153 = vmatpush1.msra.mxu0 0.0
  %2154 = vmatprep.subr.mxu0 0.0
  %2155 = vmatpush1.msra.mxu0 0.0
  %2156 = vmatprep.subr.mxu0 0.0
  %2157 = vmatpush1.msra.mxu0 0.0
  %2158 = vmatprep.subr.mxu0 0.0
  %2159 = vmatpush1.msra.mxu0 0.0
  %2160 = vmatprep.subr.mxu0 0.0
  %2161 = vmatpush1.msra.mxu0 0.0
  %2162 = vmatprep.subr.mxu0 0.0
  %2163 = vmatpush1.msra.mxu0 0.0
  %2164 = vmatprep.subr.mxu0 0.0
  %2165 = vmatpush1.msra.mxu0 0.0
  %2166 = vmatprep.subr.mxu0 0.0
  %2167 = vmatpush1.msra.mxu0 0.0
  %2168 = vmatprep.subr.mxu0 0.0
  %2169 = vmatpush1.msra.mxu0 0.0
  %2170 = vmatprep.subr.mxu0 0.0
  %2171 = vmatpush1.msra.mxu0 0.0
  %2172 = vmatprep.subr.mxu0 0.0
  %2173 = vmatpush1.msra.mxu0 0.0
  %2174 = vmatprep.subr.mxu0 0.0
  %2175 = vmatpush1.msra.mxu0 0.0
  %2176 = vmatprep.subr.mxu0 0.0
  %2177 = vmatpush1.msra.mxu0 0.0
  %2178 = vmatprep.subr.mxu0 0.0
  %2179 = vmatpush1.msra.mxu0 0.0
  %2180 = vmatprep.subr.mxu0 0.0
  %2181 = vmatpush1.msra.mxu0 0.0
  %2182 = vmatprep.subr.mxu0 0.0
  %2183 = vmatpush1.msra.mxu0 0.0
  %2184 = vmatprep.subr.mxu0 0.0
  %2185 = vmatpush1.msra.mxu0 0.0
  %2186 = vmatprep.subr.mxu0 0.0
  %2187 = vmatpush1.msra.mxu0 0.0
  %2188 = vmatprep.subr.mxu0 0.0
  %2189 = vmatpush1.msra.mxu0 0.0
  %2190 = vmatprep.mubr.f32.mxu0 0.0
  %2191 = vmatmul.mubr.f32.gmra.mrb[0].mxu0 %v2121
  %v2192 = vpop.f32.mrb[0].mxu0
  %v2193 = vadd.f32 0.0, %v2192
  %v2194 = vpop.f32.mrb[0].mxu0
  %2195 = vmatprep.mubr.f32.mxu0 0.0
  %2196 = vmatmul.mubr.f32.gmra.mrb[0].mxu0 %v2124
  %v2197 = vpop.f32.mrb[0].mxu0
  %v2198 = vadd.f32 0.0, %v2197
  %v2199 = vpop.f32.mrb[0].mxu0
  %2200 = vdwg.mxu0
  %v2202 = vsel %vm264, %v2193, 0
  %v2205 = vsel %vm264, %v2198, 0
  %2207 = vmatprep.subr.mxu0 0.0
  %2208 = vmatpush1.msra.mxu0 %v1792
  %2209 = vmatprep.subr.mxu0 0.0
  %2210 = vmatpush1.msra.mxu0 0.0
  %2211 = vmatprep.subr.mxu0 0.0
  %2212 = vmatpush1.msra.mxu0 0.0
  %2213 = vmatprep.subr.mxu0 0.0
  %2214 = vmatpush1.msra.mxu0 0.0
  %2215 = vmatprep.subr.mxu0 0.0
  %2216 = vmatpush1.msra.mxu0 0.0
  %2217 = vmatprep.subr.mxu0 0.0
  %2218 = vmatpush1.msra.mxu0 0.0
  %2219 = vmatprep.subr.mxu0 0.0
  %2220 = vmatpush1.msra.mxu0 0.0
  %2221 = vmatprep.subr.mxu0 0.0
  %2222 = vmatpush1.msra.mxu0 0.0
  %2223 = vmatprep.subr.mxu0 0.0
  %2224 = vmatpush1.msra.mxu0 0.0
  %2225 = vmatprep.subr.mxu0 0.0
  %2226 = vmatpush1.msra.mxu0 0.0
  %2227 = vmatprep.subr.mxu0 0.0
  %2228 = vmatpush1.msra.mxu0 0.0
  %2229 = vmatprep.subr.mxu0 0.0
  %2230 = vmatpush1.msra.mxu0 0.0
  %2231 = vmatprep.subr.mxu0 0.0
  %2232 = vmatpush1.msra.mxu0 0.0
  %2233 = vmatprep.subr.mxu0 0.0
  %2234 = vmatpush1.msra.mxu0 0.0
  %2235 = vmatprep.subr.mxu0 0.0
  %2236 = vmatpush1.msra.mxu0 0.0
  %2237 = vmatprep.subr.mxu0 0.0
  %2238 = vmatpush1.msra.mxu0 0.0
  %2239 = vmatprep.subr.mxu0 0.0
  %2240 = vmatpush1.msra.mxu0 0.0
  %2241 = vmatprep.subr.mxu0 0.0
  %2242 = vmatpush1.msra.mxu0 0.0
  %2243 = vmatprep.subr.mxu0 0.0
  %2244 = vmatpush1.msra.mxu0 0.0
  %2245 = vmatprep.subr.mxu0 0.0
  %2246 = vmatpush1.msra.mxu0 0.0
  %2247 = vmatprep.subr.mxu0 0.0
  %2248 = vmatpush1.msra.mxu0 0.0
  %2249 = vmatprep.subr.mxu0 0.0
  %2250 = vmatpush1.msra.mxu0 0.0
  %2251 = vmatprep.subr.mxu0 0.0
  %2252 = vmatpush1.msra.mxu0 0.0
  %2253 = vmatprep.subr.mxu0 0.0
  %2254 = vmatpush1.msra.mxu0 0.0
  %2255 = vmatprep.subr.mxu0 0.0
  %2256 = vmatpush1.msra.mxu0 0.0
  %2257 = vmatprep.subr.mxu0 0.0
  %2258 = vmatpush1.msra.mxu0 0.0
  %2259 = vmatprep.subr.mxu0 0.0
  %2260 = vmatpush1.msra.mxu0 0.0
  %2261 = vmatprep.subr.mxu0 0.0
  %2262 = vmatpush1.msra.mxu0 0.0
  %2263 = vmatprep.subr.mxu0 0.0
  %2264 = vmatpush1.msra.mxu0 0.0
  %2265 = vmatprep.subr.mxu0 0.0
  %2266 = vmatpush1.msra.mxu0 0.0
  %2267 = vmatprep.subr.mxu0 0.0
  %2268 = vmatpush1.msra.mxu0 0.0
  %2269 = vmatprep.subr.mxu0 0.0
  %2270 = vmatpush1.msra.mxu0 0.0
  %2271 = vmatprep.mubr.f32.mxu0 0.0
  %2272 = vmatmul.mubr.f32.gmra.mrb[0].mxu0 %v2202
  %v2273 = vpop.f32.mrb[0].mxu0
  %v2274 = vadd.f32 0.0, %v2273
  %v2275 = vpop.f32.mrb[0].mxu0
  %2276 = vmatprep.mubr.f32.mxu0 0.0
  %2277 = vmatmul.mubr.f32.gmra.mrb[0].mxu0 %v2205
  %v2278 = vpop.f32.mrb[0].mxu0
  %v2279 = vadd.f32 0.0, %v2278
  %v2280 = vpop.f32.mrb[0].mxu0
  %2281 = vdwg.mxu0
  %v2283 = vsel %vm264, %v1989, 0
  %v2286 = vsel %vm264, %v1994, 0
  %2288 = vmatprep.subr.mxu0 0.0
  %2289 = vmatpush1.msra.mxu0 %v1791
  %2290 = vmatprep.subr.mxu0 0.0
  %2291 = vmatpush1.msra.mxu0 0.0
  %2292 = vmatprep.subr.mxu0 0.0
  %2293 = vmatpush1.msra.mxu0 0.0
  %2294 = vmatprep.subr.mxu0 0.0
  %2295 = vmatpush1.msra.mxu0 0.0
  %2296 = vmatprep.subr.mxu0 0.0
  %2297 = vmatpush1.msra.mxu0 0.0
  %2298 = vmatprep.subr.mxu0 0.0
  %2299 = vmatpush1.msra.mxu0 0.0
  %2300 = vmatprep.subr.mxu0 0.0
  %2301 = vmatpush1.msra.mxu0 0.0
  %2302 = vmatprep.subr.mxu0 0.0
  %2303 = vmatpush1.msra.mxu0 0.0
  %2304 = vmatprep.subr.mxu0 0.0
  %2305 = vmatpush1.msra.mxu0 0.0
  %2306 = vmatprep.subr.mxu0 0.0
  %2307 = vmatpush1.msra.mxu0 0.0
  %2308 = vmatprep.subr.mxu0 0.0
  %2309 = vmatpush1.msra.mxu0 0.0
  %2310 = vmatprep.subr.mxu0 0.0
  %2311 = vmatpush1.msra.mxu0 0.0
  %2312 = vmatprep.subr.mxu0 0.0
  %2313 = vmatpush1.msra.mxu0 0.0
  %2314 = vmatprep.subr.mxu0 0.0
  %2315 = vmatpush1.msra.mxu0 0.0
  %2316 = vmatprep.subr.mxu0 0.0
  %2317 = vmatpush1.msra.mxu0 0.0
  %2318 = vmatprep.subr.mxu0 0.0
  %2319 = vmatpush1.msra.mxu0 0.0
  %2320 = vmatprep.subr.mxu0 0.0
  %2321 = vmatpush1.msra.mxu0 0.0
  %2322 = vmatprep.subr.mxu0 0.0
  %2323 = vmatpush1.msra.mxu0 0.0
  %2324 = vmatprep.subr.mxu0 0.0
  %2325 = vmatpush1.msra.mxu0 0.0
  %2326 = vmatprep.subr.mxu0 0.0
  %2327 = vmatpush1.msra.mxu0 0.0
  %2328 = vmatprep.subr.mxu0 0.0
  %2329 = vmatpush1.msra.mxu0 0.0
  %2330 = vmatprep.subr.mxu0 0.0
  %2331 = vmatpush1.msra.mxu0 0.0
  %2332 = vmatprep.subr.mxu0 0.0
  %2333 = vmatpush1.msra.mxu0 0.0
  %2334 = vmatprep.subr.mxu0 0.0
  %2335 = vmatpush1.msra.mxu0 0.0
  %2336 = vmatprep.subr.mxu0 0.0
  %2337 = vmatpush1.msra.mxu0 0.0
  %2338 = vmatprep.subr.mxu0 0.0
  %2339 = vmatpush1.msra.mxu0 0.0
  %2340 = vmatprep.subr.mxu0 0.0
  %2341 = vmatpush1.msra.mxu0 0.0
  %2342 = vmatprep.subr.mxu0 0.0
  %2343 = vmatpush1.msra.mxu0 0.0
  %2344 = vmatprep.subr.mxu0 0.0
  %2345 = vmatpush1.msra.mxu0 0.0
  %2346 = vmatprep.subr.mxu0 0.0
  %2347 = vmatpush1.msra.mxu0 0.0
  %2348 = vmatprep.subr.mxu0 0.0
  %2349 = vmatpush1.msra.mxu0 0.0
  %2350 = vmatprep.subr.mxu0 0.0
  %2351 = vmatpush1.msra.mxu0 0.0
  %2352 = vmatprep.mubr.f32.mxu0 0.0
  %2353 = vmatmul.mubr.f32.gmra.mrb[0].mxu0 %v2283
  %v2354 = vpop.f32.mrb[0].mxu0
  %v2355 = vadd.f32 %v2274, %v2354
  %v2356 = vpop.f32.mrb[0].mxu0
  %2357 = vmatprep.mubr.f32.mxu0 0.0
  %2358 = vmatmul.mubr.f32.gmra.mrb[0].mxu0 %v2286
  %v2359 = vpop.f32.mrb[0].mxu0
  %v2360 = vadd.f32 %v2279, %v2359
  %v2361 = vpop.f32.mrb[0].mxu0
  %2362 = vdwg.mxu0
  %2363 = vrot.lane.b32.xlu0 %v1782, 112
  %v2364 = vpop.permute.xlu0 %2363
  %2365 = vrot.lane.b32.xlu0 %v1787, 112
  %v2366 = vpop.permute.xlu0 %2365
  %2367 = vrot.lane.b32.xlu0 %v1782, 80
  %v2368 = vpop.permute.xlu0 %2367
  %2369 = vrot.lane.b32.xlu0 %v1787, 80
  %v2370 = vpop.permute.xlu0 %2369
  %v2371 = vsel %vm264, %v2364, 0
  %v2373 = vsel %vm264, %v2366, 0
  %v2375 = vsel %vm264, %v2368, 0
  %v2377 = vsel %vm264, %v2370, 0
  %2379 = vmatprep.subr.mxu0 0.0
  %2380 = vmatpush1.xpose.msra.mxu0 %v2375
  %2381 = vmatprep.subr.mxu0 0.0
  %2382 = vmatpush1.xpose.msra.mxu0 %v2377
  %2383 = vmatprep.subr.mxu0 0.0
  %2384 = vmatpush1.xpose.msra.mxu0 0.0
  %2385 = vmatprep.subr.mxu0 0.0
  %2386 = vmatpush1.xpose.msra.mxu0 0.0
  %2387 = vmatprep.subr.mxu0 0.0
  %2388 = vmatpush1.xpose.msra.mxu0 0.0
  %2389 = vmatprep.subr.mxu0 0.0
  %2390 = vmatpush1.xpose.msra.mxu0 0.0
  %2391 = vmatprep.subr.mxu0 0.0
  %2392 = vmatpush1.xpose.msra.mxu0 0.0
  %2393 = vmatprep.subr.mxu0 0.0
  %2394 = vmatpush1.xpose.msra.mxu0 0.0
  %2395 = vmatprep.subr.mxu0 0.0
  %2396 = vmatpush1.xpose.msra.mxu0 0.0
  %2397 = vmatprep.subr.mxu0 0.0
  %2398 = vmatpush1.xpose.msra.mxu0 0.0
  %2399 = vmatprep.subr.mxu0 0.0
  %2400 = vmatpush1.xpose.msra.mxu0 0.0
  %2401 = vmatprep.subr.mxu0 0.0
  %2402 = vmatpush1.xpose.msra.mxu0 0.0
  %2403 = vmatprep.subr.mxu0 0.0
  %2404 = vmatpush1.xpose.msra.mxu0 0.0
  %2405 = vmatprep.subr.mxu0 0.0
  %2406 = vmatpush1.xpose.msra.mxu0 0.0
  %2407 = vmatprep.subr.mxu0 0.0
  %2408 = vmatpush1.xpose.msra.mxu0 0.0
  %2409 = vmatprep.subr.mxu0 0.0
  %2410 = vmatpush1.xpose.msra.mxu0 0.0
  %2411 = vmatprep.subr.mxu0 0.0
  %2412 = vmatpush1.xpose.msra.mxu0 0.0
  %2413 = vmatprep.subr.mxu0 0.0
  %2414 = vmatpush1.xpose.msra.mxu0 0.0
  %2415 = vmatprep.subr.mxu0 0.0
  %2416 = vmatpush1.xpose.msra.mxu0 0.0
  %2417 = vmatprep.subr.mxu0 0.0
  %2418 = vmatpush1.xpose.msra.mxu0 0.0
  %2419 = vmatprep.subr.mxu0 0.0
  %2420 = vmatpush1.xpose.msra.mxu0 0.0
  %2421 = vmatprep.subr.mxu0 0.0
  %2422 = vmatpush1.xpose.msra.mxu0 0.0
  %2423 = vmatprep.subr.mxu0 0.0
  %2424 = vmatpush1.xpose.msra.mxu0 0.0
  %2425 = vmatprep.subr.mxu0 0.0
  %2426 = vmatpush1.xpose.msra.mxu0 0.0
  %2427 = vmatprep.subr.mxu0 0.0
  %2428 = vmatpush1.xpose.msra.mxu0 0.0
  %2429 = vmatprep.subr.mxu0 0.0
  %2430 = vmatpush1.xpose.msra.mxu0 0.0
  %2431 = vmatprep.subr.mxu0 0.0
  %2432 = vmatpush1.xpose.msra.mxu0 0.0
  %2433 = vmatprep.subr.mxu0 0.0
  %2434 = vmatpush1.xpose.msra.mxu0 0.0
  %2435 = vmatprep.subr.mxu0 0.0
  %2436 = vmatpush1.xpose.msra.mxu0 0.0
  %2437 = vmatprep.subr.mxu0 0.0
  %2438 = vmatpush1.xpose.msra.mxu0 0.0
  %2439 = vmatprep.subr.mxu0 0.0
  %2440 = vmatpush1.xpose.msra.mxu0 0.0
  %2441 = vmatprep.subr.mxu0 0.0
  %2442 = vmatpush1.xpose.msra.mxu0 0.0
  %2443 = vmatprep.mubr.f32.mxu0 0.0
  %2444 = vmatmul.mubr.f32.gmra.mrb[0].mxu0 %v2371
  %v2445 = vpop.f32.mrb[0].mxu0
  %v2446 = vadd.f32 0.0, %v2445
  %v2447 = vpop.f32.mrb[0].mxu0
  %2448 = vmatprep.mubr.f32.mxu0 0.0
  %2449 = vmatmul.mubr.f32.gmra.mrb[0].mxu0 %v2373
  %v2450 = vpop.f32.mrb[0].mxu0
  %v2451 = vadd.f32 0.0, %v2450
  %v2452 = vpop.f32.mrb[0].mxu0
  %2453 = vdwg.mxu0
  %v2454 = vmul.f32 %v2446, 0.35355338
  %v2455 = vmul.f32 %v2451, 0.35355338
  %v2456 = vadd.f32 %v2454, %v159
  %v2457 = vadd.f32 %v2455, %v160
  %v2458 = vsel %vm77, %v2456, -inf
  %2459 = vmax.xlane.f32.xlu0 %v2458
  %v2460 = vpop.xlane.xlu0 %2459
  %v2461 = vsel %vm77, %v2457, -inf
  %2462 = vmax.xlane.f32.xlu0 %v2461
  %v2463 = vpop.xlane.xlu0 %2462
  %v2464 = vsub.f32 %v2456, %v2460
  %v2465 = vsub.f32 %v2457, %v2463
  %v2466 = vmul.f32 %v2464, 1.442695
  %v2467 = vpow.pop %v2466
  %v2468 = vmul.f32 %v2465, 1.442695
  %v2469 = vpow.pop %v2468
  %v2470 = vsel %vm77, %v2467, 0.0
  %2471 = vadd.xlane.f32.xlu0 %v2470
  %v2472 = vpop.xlane.xlu0 %2471
  %v2473 = vsel %vm77, %v2469, 0.0
  %2474 = vadd.xlane.f32.xlu0 %v2473
  %v2475 = vpop.xlane.xlu0 %2474
  %v2476 = vrcp.pop %v2472
  %v2477 = vmul.f32 %v2467, %v2476
  %v2478 = vrcp.pop %v2475
  %v2479 = vmul.f32 %v2469, %v2478
  %2480 = vrot.lane.b32.xlu0 %v1782, 48
  %v2481 = vpop.permute.xlu0 %2480
  %2482 = vrot.lane.b32.xlu0 %v1787, 48
  %v2483 = vpop.permute.xlu0 %2482
  %v2487 = vsel %vm77, %v2477, 0
  %v2490 = vsel %vm77, %v2479, 0
  %2492 = vmatprep.subr.mxu0 0.0
  %2493 = vmatpush1.msra.mxu0 %v2481
  %2494 = vmatprep.subr.mxu0 0.0
  %2495 = vmatpush1.msra.mxu0 %v2483
  %2496 = vmatprep.subr.mxu0 0.0
  %2497 = vmatpush1.msra.mxu0 0.0
  %2498 = vmatprep.subr.mxu0 0.0
  %2499 = vmatpush1.msra.mxu0 0.0
  %2500 = vmatprep.subr.mxu0 0.0
  %2501 = vmatpush1.msra.mxu0 0.0
  %2502 = vmatprep.subr.mxu0 0.0
  %2503 = vmatpush1.msra.mxu0 0.0
  %2504 = vmatprep.subr.mxu0 0.0
  %2505 = vmatpush1.msra.mxu0 0.0
  %2506 = vmatprep.subr.mxu0 0.0
  %2507 = vmatpush1.msra.mxu0 0.0
  %2508 = vmatprep.subr.mxu0 0.0
  %2509 = vmatpush1.msra.mxu0 0.0
  %2510 = vmatprep.subr.mxu0 0.0
  %2511 = vmatpush1.msra.mxu0 0.0
  %2512 = vmatprep.subr.mxu0 0.0
  %2513 = vmatpush1.msra.mxu0 0.0
  %2514 = vmatprep.subr.mxu0 0.0
  %2515 = vmatpush1.msra.mxu0 0.0
  %2516 = vmatprep.subr.mxu0 0.0
  %2517 = vmatpush1.msra.mxu0 0.0
  %2518 = vmatprep.subr.mxu0 0.0
  %2519 = vmatpush1.msra.mxu0 0.0
  %2520 = vmatprep.subr.mxu0 0.0
  %2521 = vmatpush1.msra.mxu0 0.0
  %2522 = vmatprep.subr.mxu0 0.0
  %2523 = vmatpush1.msra.mxu0 0.0
  %2524 = vmatprep.subr.mxu0 0.0
  %2525 = vmatpush1.msra.mxu0 0.0
  %2526 = vmatprep.subr.mxu0 0.0
  %2527 = vmatpush1.msra.mxu0 0.0
  %2528 = vmatprep.subr.mxu0 0.0
  %2529 = vmatpush1.msra.mxu0 0.0
  %2530 = vmatprep.subr.mxu0 0.0
  %2531 = vmatpush1.msra.mxu0 0.0
  %2532 = vmatprep.subr.mxu0 0.0
  %2533 = vmatpush1.msra.mxu0 0.0
  %2534 = vmatprep.subr.mxu0 0.0
  %2535 = vmatpush1.msra.mxu0 0.0
  %2536 = vmatprep.subr.mxu0 0.0
  %2537 = vmatpush1.msra.mxu0 0.0
  %2538 = vmatprep.subr.mxu0 0.0
  %2539 = vmatpush1.msra.mxu0 0.0
  %2540 = vmatprep.subr.mxu0 0.0
  %2541 = vmatpush1.msra.mxu0 0.0
  %2542 = vmatprep.subr.mxu0 0.0
  %2543 = vmatpush1.msra.mxu0 0.0
  %2544 = vmatprep.subr.mxu0 0.0
  %2545 = vmatpush1.msra.mxu0 0.0
  %2546 = vmatprep.subr.mxu0 0.0
  %2547 = vmatpush1.msra.mxu0 0.0
  %2548 = vmatprep.subr.mxu0 0.0
  %2549 = vmatpush1.msra.mxu0 0.0
  %2550 = vmatprep.subr.mxu0 0.0
  %2551 = vmatpush1.msra.mxu0 0.0
  %2552 = vmatprep.subr.mxu0 0.0
  %2553 = vmatpush1.msra.mxu0 0.0
  %2554 = vmatprep.subr.mxu0 0.0
  %2555 = vmatpush1.msra.mxu0 0.0
  %2556 = vmatprep.mubr.f32.mxu0 0.0
  %2557 = vmatmul.mubr.f32.gmra.mrb[0].mxu0 %v2487
  %v2558 = vpop.f32.mrb[0].mxu0
  %v2559 = vadd.f32 0.0, %v2558
  %v2560 = vpop.f32.mrb[0].mxu0
  %2561 = vmatprep.mubr.f32.mxu0 0.0
  %2562 = vmatmul.mubr.f32.gmra.mrb[0].mxu0 %v2490
  %v2563 = vpop.f32.mrb[0].mxu0
  %v2564 = vadd.f32 0.0, %v2563
  %v2565 = vpop.f32.mrb[0].mxu0
  %2566 = vdwg.mxu0
  %v2568 = vsel %vm264, %v2559, 0
  %v2571 = vsel %vm264, %v2564, 0
  %2573 = vmatprep.subr.mxu0 0.0
  %2574 = vmatpush1.msra.mxu0 %v1793
  %2575 = vmatprep.subr.mxu0 0.0
  %2576 = vmatpush1.msra.mxu0 0.0
  %2577 = vmatprep.subr.mxu0 0.0
  %2578 = vmatpush1.msra.mxu0 0.0
  %2579 = vmatprep.subr.mxu0 0.0
  %2580 = vmatpush1.msra.mxu0 0.0
  %2581 = vmatprep.subr.mxu0 0.0
  %2582 = vmatpush1.msra.mxu0 0.0
  %2583 = vmatprep.subr.mxu0 0.0
  %2584 = vmatpush1.msra.mxu0 0.0
  %2585 = vmatprep.subr.mxu0 0.0
  %2586 = vmatpush1.msra.mxu0 0.0
  %2587 = vmatprep.subr.mxu0 0.0
  %2588 = vmatpush1.msra.mxu0 0.0
  %2589 = vmatprep.subr.mxu0 0.0
  %2590 = vmatpush1.msra.mxu0 0.0
  %2591 = vmatprep.subr.mxu0 0.0
  %2592 = vmatpush1.msra.mxu0 0.0
  %2593 = vmatprep.subr.mxu0 0.0
  %2594 = vmatpush1.msra.mxu0 0.0
  %2595 = vmatprep.subr.mxu0 0.0
  %2596 = vmatpush1.msra.mxu0 0.0
  %2597 = vmatprep.subr.mxu0 0.0
  %2598 = vmatpush1.msra.mxu0 0.0
  %2599 = vmatprep.subr.mxu0 0.0
  %2600 = vmatpush1.msra.mxu0 0.0
  %2601 = vmatprep.subr.mxu0 0.0
  %2602 = vmatpush1.msra.mxu0 0.0
  %2603 = vmatprep.subr.mxu0 0.0
  %2604 = vmatpush1.msra.mxu0 0.0
  %2605 = vmatprep.subr.mxu0 0.0
  %2606 = vmatpush1.msra.mxu0 0.0
  %2607 = vmatprep.subr.mxu0 0.0
  %2608 = vmatpush1.msra.mxu0 0.0
  %2609 = vmatprep.subr.mxu0 0.0
  %2610 = vmatpush1.msra.mxu0 0.0
  %2611 = vmatprep.subr.mxu0 0.0
  %2612 = vmatpush1.msra.mxu0 0.0
  %2613 = vmatprep.subr.mxu0 0.0
  %2614 = vmatpush1.msra.mxu0 0.0
  %2615 = vmatprep.subr.mxu0 0.0
  %2616 = vmatpush1.msra.mxu0 0.0
  %2617 = vmatprep.subr.mxu0 0.0
  %2618 = vmatpush1.msra.mxu0 0.0
  %2619 = vmatprep.subr.mxu0 0.0
  %2620 = vmatpush1.msra.mxu0 0.0
  %2621 = vmatprep.subr.mxu0 0.0
  %2622 = vmatpush1.msra.mxu0 0.0
  %2623 = vmatprep.subr.mxu0 0.0
  %2624 = vmatpush1.msra.mxu0 0.0
  %2625 = vmatprep.subr.mxu0 0.0
  %2626 = vmatpush1.msra.mxu0 0.0
  %2627 = vmatprep.subr.mxu0 0.0
  %2628 = vmatpush1.msra.mxu0 0.0
  %2629 = vmatprep.subr.mxu0 0.0
  %2630 = vmatpush1.msra.mxu0 0.0
  %2631 = vmatprep.subr.mxu0 0.0
  %2632 = vmatpush1.msra.mxu0 0.0
  %2633 = vmatprep.subr.mxu0 0.0
  %2634 = vmatpush1.msra.mxu0 0.0
  %2635 = vmatprep.subr.mxu0 0.0
  %2636 = vmatpush1.msra.mxu0 0.0
  %2637 = vmatprep.mubr.f32.mxu0 0.0
  %2638 = vmatmul.mubr.f32.gmra.mrb[0].mxu0 %v2568
  %v2639 = vpop.f32.mrb[0].mxu0
  %v2640 = vadd.f32 0.0, %v2639
  %v2641 = vpop.f32.mrb[0].mxu0
  %2642 = vmatprep.mubr.f32.mxu0 0.0
  %2643 = vmatmul.mubr.f32.gmra.mrb[0].mxu0 %v2571
  %v2644 = vpop.f32.mrb[0].mxu0
  %v2645 = vadd.f32 0.0, %v2644
  %v2646 = vpop.f32.mrb[0].mxu0
  %2647 = vdwg.mxu0
  %v2648 = vadd.f32 %v2355, %v2640
  %v2649 = vadd.f32 %v2360, %v2645
  %2650 = vrot.lane.b32.xlu0 %v1782, 104
  %v2651 = vpop.permute.xlu0 %2650
  %2652 = vrot.lane.b32.xlu0 %v1787, 104
  %v2653 = vpop.permute.xlu0 %2652
  %2654 = vrot.lane.b32.xlu0 %v1782, 72
  %v2655 = vpop.permute.xlu0 %2654
  %2656 = vrot.lane.b32.xlu0 %v1787, 72
  %v2657 = vpop.permute.xlu0 %2656
  %v2658 = vsel %vm264, %v2651, 0
  %v2660 = vsel %vm264, %v2653, 0
  %v2662 = vsel %vm264, %v2655, 0
  %v2664 = vsel %vm264, %v2657, 0
  %2666 = vmatprep.subr.mxu0 0.0
  %2667 = vmatpush1.xpose.msra.mxu0 %v2662
  %2668 = vmatprep.subr.mxu0 0.0
  %2669 = vmatpush1.xpose.msra.mxu0 %v2664
  %2670 = vmatprep.subr.mxu0 0.0
  %2671 = vmatpush1.xpose.msra.mxu0 0.0
  %2672 = vmatprep.subr.mxu0 0.0
  %2673 = vmatpush1.xpose.msra.mxu0 0.0
  %2674 = vmatprep.subr.mxu0 0.0
  %2675 = vmatpush1.xpose.msra.mxu0 0.0
  %2676 = vmatprep.subr.mxu0 0.0
  %2677 = vmatpush1.xpose.msra.mxu0 0.0
  %2678 = vmatprep.subr.mxu0 0.0
  %2679 = vmatpush1.xpose.msra.mxu0 0.0
  %2680 = vmatprep.subr.mxu0 0.0
  %2681 = vmatpush1.xpose.msra.mxu0 0.0
  %2682 = vmatprep.subr.mxu0 0.0
  %2683 = vmatpush1.xpose.msra.mxu0 0.0
  %2684 = vmatprep.subr.mxu0 0.0
  %2685 = vmatpush1.xpose.msra.mxu0 0.0
  %2686 = vmatprep.subr.mxu0 0.0
  %2687 = vmatpush1.xpose.msra.mxu0 0.0
  %2688 = vmatprep.subr.mxu0 0.0
  %2689 = vmatpush1.xpose.msra.mxu0 0.0
  %2690 = vmatprep.subr.mxu0 0.0
  %2691 = vmatpush1.xpose.msra.mxu0 0.0
  %2692 = vmatprep.subr.mxu0 0.0
  %2693 = vmatpush1.xpose.msra.mxu0 0.0
  %2694 = vmatprep.subr.mxu0 0.0
  %2695 = vmatpush1.xpose.msra.mxu0 0.0
  %2696 = vmatprep.subr.mxu0 0.0
  %2697 = vmatpush1.xpose.msra.mxu0 0.0
  %2698 = vmatprep.subr.mxu0 0.0
  %2699 = vmatpush1.xpose.msra.mxu0 0.0
  %2700 = vmatprep.subr.mxu0 0.0
  %2701 = vmatpush1.xpose.msra.mxu0 0.0
  %2702 = vmatprep.subr.mxu0 0.0
  %2703 = vmatpush1.xpose.msra.mxu0 0.0
  %2704 = vmatprep.subr.mxu0 0.0
  %2705 = vmatpush1.xpose.msra.mxu0 0.0
  %2706 = vmatprep.subr.mxu0 0.0
  %2707 = vmatpush1.xpose.msra.mxu0 0.0
  %2708 = vmatprep.subr.mxu0 0.0
  %2709 = vmatpush1.xpose.msra.mxu0 0.0
  %2710 = vmatprep.subr.mxu0 0.0
  %2711 = vmatpush1.xpose.msra.mxu0 0.0
  %2712 = vmatprep.subr.mxu0 0.0
  %2713 = vmatpush1.xpose.msra.mxu0 0.0
  %2714 = vmatprep.subr.mxu0 0.0
  %2715 = vmatpush1.xpose.msra.mxu0 0.0
  %2716 = vmatprep.subr.mxu0 0.0
  %2717 = vmatpush1.xpose.msra.mxu0 0.0
  %2718 = vmatprep.subr.mxu0 0.0
  %2719 = vmatpush1.xpose.msra.mxu0 0.0
  %2720 = vmatprep.subr.mxu0 0.0
  %2721 = vmatpush1.xpose.msra.mxu0 0.0
  %2722 = vmatprep.subr.mxu0 0.0
  %2723 = vmatpush1.xpose.msra.mxu0 0.0
  %2724 = vmatprep.subr.mxu0 0.0
  %2725 = vmatpush1.xpose.msra.mxu0 0.0
  %2726 = vmatprep.subr.mxu0 0.0
  %2727 = vmatpush1.xpose.msra.mxu0 0.0
  %2728 = vmatprep.subr.mxu0 0.0
  %2729 = vmatpush1.xpose.msra.mxu0 0.0
  %2730 = vmatprep.mubr.f32.mxu0 0.0
  %2731 = vmatmul.mubr.f32.gmra.mrb[0].mxu0 %v2658
  %v2732 = vpop.f32.mrb[0].mxu0
  %v2733 = vadd.f32 0.0, %v2732
  %v2734 = vpop.f32.mrb[0].mxu0
  %2735 = vmatprep.mubr.f32.mxu0 0.0
  %2736 = vmatmul.mubr.f32.gmra.mrb[0].mxu0 %v2660
  %v2737 = vpop.f32.mrb[0].mxu0
  %v2738 = vadd.f32 0.0, %v2737
  %v2739 = vpop.f32.mrb[0].mxu0
  %2740 = vdwg.mxu0
  %v2741 = vmul.f32 %v2733, 0.35355338
  %v2742 = vmul.f32 %v2738, 0.35355338
  %v2743 = vadd.f32 %v2741, %v159
  %v2744 = vadd.f32 %v2742, %v160
  %v2745 = vsel %vm77, %v2743, -inf
  %2746 = vmax.xlane.f32.xlu0 %v2745
  %v2747 = vpop.xlane.xlu0 %2746
  %v2748 = vsel %vm77, %v2744, -inf
  %2749 = vmax.xlane.f32.xlu0 %v2748
  %v2750 = vpop.xlane.xlu0 %2749
  %v2751 = vsub.f32 %v2743, %v2747
  %v2752 = vsub.f32 %v2744, %v2750
  %v2753 = vmul.f32 %v2751, 1.442695
  %v2754 = vpow.pop %v2753
  %v2755 = vmul.f32 %v2752, 1.442695
  %v2756 = vpow.pop %v2755
  %v2757 = vsel %vm77, %v2754, 0.0
  %2758 = vadd.xlane.f32.xlu0 %v2757
  %v2759 = vpop.xlane.xlu0 %2758
  %v2760 = vsel %vm77, %v2756, 0.0
  %2761 = vadd.xlane.f32.xlu0 %v2760
  %v2762 = vpop.xlane.xlu0 %2761
  %v2763 = vrcp.pop %v2759
  %v2764 = vmul.f32 %v2754, %v2763
  %v2765 = vrcp.pop %v2762
  %v2766 = vmul.f32 %v2756, %v2765
  %2767 = vrot.lane.b32.xlu0 %v1782, 40
  %v2768 = vpop.permute.xlu0 %2767
  %2769 = vrot.lane.b32.xlu0 %v1787, 40
  %v2770 = vpop.permute.xlu0 %2769
  %v2774 = vsel %vm77, %v2764, 0
  %v2777 = vsel %vm77, %v2766, 0
  %2779 = vmatprep.subr.mxu0 0.0
  %2780 = vmatpush1.msra.mxu0 %v2768
  %2781 = vmatprep.subr.mxu0 0.0
  %2782 = vmatpush1.msra.mxu0 %v2770
  %2783 = vmatprep.subr.mxu0 0.0
  %2784 = vmatpush1.msra.mxu0 0.0
  %2785 = vmatprep.subr.mxu0 0.0
  %2786 = vmatpush1.msra.mxu0 0.0
  %2787 = vmatprep.subr.mxu0 0.0
  %2788 = vmatpush1.msra.mxu0 0.0
  %2789 = vmatprep.subr.mxu0 0.0
  %2790 = vmatpush1.msra.mxu0 0.0
  %2791 = vmatprep.subr.mxu0 0.0
  %2792 = vmatpush1.msra.mxu0 0.0
  %2793 = vmatprep.subr.mxu0 0.0
  %2794 = vmatpush1.msra.mxu0 0.0
  %2795 = vmatprep.subr.mxu0 0.0
  %2796 = vmatpush1.msra.mxu0 0.0
  %2797 = vmatprep.subr.mxu0 0.0
  %2798 = vmatpush1.msra.mxu0 0.0
  %2799 = vmatprep.subr.mxu0 0.0
  %2800 = vmatpush1.msra.mxu0 0.0
  %2801 = vmatprep.subr.mxu0 0.0
  %2802 = vmatpush1.msra.mxu0 0.0
  %2803 = vmatprep.subr.mxu0 0.0
  %2804 = vmatpush1.msra.mxu0 0.0
  %2805 = vmatprep.subr.mxu0 0.0
  %2806 = vmatpush1.msra.mxu0 0.0
  %2807 = vmatprep.subr.mxu0 0.0
  %2808 = vmatpush1.msra.mxu0 0.0
  %2809 = vmatprep.subr.mxu0 0.0
  %2810 = vmatpush1.msra.mxu0 0.0
  %2811 = vmatprep.subr.mxu0 0.0
  %2812 = vmatpush1.msra.mxu0 0.0
  %2813 = vmatprep.subr.mxu0 0.0
  %2814 = vmatpush1.msra.mxu0 0.0
  %2815 = vmatprep.subr.mxu0 0.0
  %2816 = vmatpush1.msra.mxu0 0.0
  %2817 = vmatprep.subr.mxu0 0.0
  %2818 = vmatpush1.msra.mxu0 0.0
  %2819 = vmatprep.subr.mxu0 0.0
  %2820 = vmatpush1.msra.mxu0 0.0
  %2821 = vmatprep.subr.mxu0 0.0
  %2822 = vmatpush1.msra.mxu0 0.0
  %2823 = vmatprep.subr.mxu0 0.0
  %2824 = vmatpush1.msra.mxu0 0.0
  %2825 = vmatprep.subr.mxu0 0.0
  %2826 = vmatpush1.msra.mxu0 0.0
  %2827 = vmatprep.subr.mxu0 0.0
  %2828 = vmatpush1.msra.mxu0 0.0
  %2829 = vmatprep.subr.mxu0 0.0
  %2830 = vmatpush1.msra.mxu0 0.0
  %2831 = vmatprep.subr.mxu0 0.0
  %2832 = vmatpush1.msra.mxu0 0.0
  %2833 = vmatprep.subr.mxu0 0.0
  %2834 = vmatpush1.msra.mxu0 0.0
  %2835 = vmatprep.subr.mxu0 0.0
  %2836 = vmatpush1.msra.mxu0 0.0
  %2837 = vmatprep.subr.mxu0 0.0
  %2838 = vmatpush1.msra.mxu0 0.0
  %2839 = vmatprep.subr.mxu0 0.0
  %2840 = vmatpush1.msra.mxu0 0.0
  %2841 = vmatprep.subr.mxu0 0.0
  %2842 = vmatpush1.msra.mxu0 0.0
  %2843 = vmatprep.mubr.f32.mxu0 0.0
  %2844 = vmatmul.mubr.f32.gmra.mrb[0].mxu0 %v2774
  %v2845 = vpop.f32.mrb[0].mxu0
  %v2846 = vadd.f32 0.0, %v2845
  %v2847 = vpop.f32.mrb[0].mxu0
  %2848 = vmatprep.mubr.f32.mxu0 0.0
  %2849 = vmatmul.mubr.f32.gmra.mrb[0].mxu0 %v2777
  %v2850 = vpop.f32.mrb[0].mxu0
  %v2851 = vadd.f32 0.0, %v2850
  %v2852 = vpop.f32.mrb[0].mxu0
  %2853 = vdwg.mxu0
  %v2855 = vsel %vm264, %v2846, 0
  %v2858 = vsel %vm264, %v2851, 0
  %2860 = vmatprep.subr.mxu0 0.0
  %2861 = vmatpush1.msra.mxu0 %v1794
  %2862 = vmatprep.subr.mxu0 0.0
  %2863 = vmatpush1.msra.mxu0 0.0
  %2864 = vmatprep.subr.mxu0 0.0
  %2865 = vmatpush1.msra.mxu0 0.0
  %2866 = vmatprep.subr.mxu0 0.0
  %2867 = vmatpush1.msra.mxu0 0.0
  %2868 = vmatprep.subr.mxu0 0.0
  %2869 = vmatpush1.msra.mxu0 0.0
  %2870 = vmatprep.subr.mxu0 0.0
  %2871 = vmatpush1.msra.mxu0 0.0
  %2872 = vmatprep.subr.mxu0 0.0
  %2873 = vmatpush1.msra.mxu0 0.0
  %2874 = vmatprep.subr.mxu0 0.0
  %2875 = vmatpush1.msra.mxu0 0.0
  %2876 = vmatprep.subr.mxu0 0.0
  %2877 = vmatpush1.msra.mxu0 0.0
  %2878 = vmatprep.subr.mxu0 0.0
  %2879 = vmatpush1.msra.mxu0 0.0
  %2880 = vmatprep.subr.mxu0 0.0
  %2881 = vmatpush1.msra.mxu0 0.0
  %2882 = vmatprep.subr.mxu0 0.0
  %2883 = vmatpush1.msra.mxu0 0.0
  %2884 = vmatprep.subr.mxu0 0.0
  %2885 = vmatpush1.msra.mxu0 0.0
  %2886 = vmatprep.subr.mxu0 0.0
  %2887 = vmatpush1.msra.mxu0 0.0
  %2888 = vmatprep.subr.mxu0 0.0
  %2889 = vmatpush1.msra.mxu0 0.0
  %2890 = vmatprep.subr.mxu0 0.0
  %2891 = vmatpush1.msra.mxu0 0.0
  %2892 = vmatprep.subr.mxu0 0.0
  %2893 = vmatpush1.msra.mxu0 0.0
  %2894 = vmatprep.subr.mxu0 0.0
  %2895 = vmatpush1.msra.mxu0 0.0
  %2896 = vmatprep.subr.mxu0 0.0
  %2897 = vmatpush1.msra.mxu0 0.0
  %2898 = vmatprep.subr.mxu0 0.0
  %2899 = vmatpush1.msra.mxu0 0.0
  %2900 = vmatprep.subr.mxu0 0.0
  %2901 = vmatpush1.msra.mxu0 0.0
  %2902 = vmatprep.subr.mxu0 0.0
  %2903 = vmatpush1.msra.mxu0 0.0
  %2904 = vmatprep.subr.mxu0 0.0
  %2905 = vmatpush1.msra.mxu0 0.0
  %2906 = vmatprep.subr.mxu0 0.0
  %2907 = vmatpush1.msra.mxu0 0.0
  %2908 = vmatprep.subr.mxu0 0.0
  %2909 = vmatpush1.msra.mxu0 0.0
  %2910 = vmatprep.subr.mxu0 0.0
  %2911 = vmatpush1.msra.mxu0 0.0
  %2912 = vmatprep.subr.mxu0 0.0
  %2913 = vmatpush1.msra.mxu0 0.0
  %2914 = vmatprep.subr.mxu0 0.0
  %2915 = vmatpush1.msra.mxu0 0.0
  %2916 = vmatprep.subr.mxu0 0.0
  %2917 = vmatpush1.msra.mxu0 0.0
  %2918 = vmatprep.subr.mxu0 0.0
  %2919 = vmatpush1.msra.mxu0 0.0
  %2920 = vmatprep.subr.mxu0 0.0
  %2921 = vmatpush1.msra.mxu0 0.0
  %2922 = vmatprep.subr.mxu0 0.0
  %2923 = vmatpush1.msra.mxu0 0.0
  %2924 = vmatprep.mubr.f32.mxu0 0.0
  %2925 = vmatmul.mubr.f32.gmra.mrb[0].mxu0 %v2855
  %v2926 = vpop.f32.mrb[0].mxu0
  %v2927 = vadd.f32 0.0, %v2926
  %v2928 = vpop.f32.mrb[0].mxu0
  %2929 = vmatprep.mubr.f32.mxu0 0.0
  %2930 = vmatmul.mubr.f32.gmra.mrb[0].mxu0 %v2858
  %v2931 = vpop.f32.mrb[0].mxu0
  %v2932 = vadd.f32 0.0, %v2931
  %v2933 = vpop.f32.mrb[0].mxu0
  %2934 = vdwg.mxu0
  %v2935 = vadd.f32 %v2648, %v2927
  %v2936 = vadd.f32 %v2649, %v2932
  %s2937 = scalar_lea.vmem %s7, 1
  %v2938 = vld [vmem:[%s2937] sm:$0x1]
  %v2940 = vlaneseq
  %v2941 = vshrl.u32 %v2940, 7
  %v2942 = vsub.s32 0, %v2941
  %v2943 = vrot.slane %v2938, %v2942
  %v2945 = vadd.f32 %v2935, %v2943
  %v2946 = vadd.f32 %v2936, %v2943
  %v2947 = vadd.f32 %v1694, %v2945
  %v2948 = vadd.f32 %v1695, %v2946
  %s2949 = scalar_lea.vmem %s8, 1
  %v2950 = vld [vmem:[%s2949] sm:$0x1]
  %s2951 = scalar_lea.vmem %s9, 1
  %v2952 = vld [vmem:[%s2951] sm:$0x1]
  %v2953 = vsel %vm172, %v2947, 0.0
  %2954 = vadd.xlane.f32.xlu0 %v2953
  %v2955 = vpop.xlane.xlu0 %2954
  %v2956 = vsel %vm172, %v2948, 0.0
  %2957 = vadd.xlane.f32.xlu0 %v2956
  %v2958 = vpop.xlane.xlu0 %2957
  %v2959 = vmul.f32 %v2955, %v1420
  %v2960 = vmul.f32 %v2958, %v1420
  %v2961 = vsub.f32 %v2947, %v2959
  %v2962 = vsub.f32 %v2948, %v2960
  %v2963 = vmul.f32 %v2961, %v2961
  %v2964 = vmul.f32 %v2962, %v2962
  %v2965 = vsel %vm172, %v2963, 0.0
  %2966 = vadd.xlane.f32.xlu0 %v2965
  %v2967 = vpop.xlane.xlu0 %2966
  %v2968 = vsel %vm172, %v2964, 0.0
  %2969 = vadd.xlane.f32.xlu0 %v2968
  %v2970 = vpop.xlane.xlu0 %2969
  %v2971 = vmul.f32 %v2967, %v1420
  %v2972 = vmul.f32 %v2970, %v1420
  %v2973 = vadd.f32 %v2971, 1e-05
  %v2974 = vadd.f32 %v2972, 1e-05
  %v2975 = vrsqrt.pop %v2973
  %v2976 = vrsqrt.pop %v2974
  %v2977 = vmul.f32 %v2961, %v2975
  %v2978 = vmul.f32 %v2962, %v2976
  %v2980 = vlaneseq
  %v2981 = vshrl.u32 %v2980, 7
  %v2982 = vsub.s32 0, %v2981
  %v2983 = vrot.slane %v2950, %v2982
  %v2985 = vmul.f32 %v2977, %v2983
  %v2986 = vmul.f32 %v2978, %v2983
  %v2988 = vlaneseq
  %v2989 = vshrl.u32 %v2988, 7
  %v2990 = vsub.s32 0, %v2989
  %v2991 = vrot.slane %v2952, %v2990
  %v2993 = vadd.f32 %v2985, %v2991
  %v2994 = vadd.f32 %v2986, %v2991
  %s2995 = scalar_lea.vmem %s10, 32
  %v2996 = vld [vmem:[%s2995] sm:$0xff]
  %v2997 = vld [vmem:[%s2995 + $0x8] sm:$0xff]
  %v2998 = vld [vmem:[%s2995 + $0x10] sm:$0xff]
  %v2999 = vld [vmem:[%s2995 + $0x18] sm:$0xff]
  %s3000 = scalar_lea.vmem %s11, 1
  %v3001 = vld [vmem:[%s3000] sm:$0x1]
  %v3003 = vlaneseq
  %v3004 = vshrl.u32 %v3003, 7
  %v3005 = vsub.s32 0, %v3004
  %v3006 = vrot.slane %v3001, %v3005
  %v3009 = vsel %vm172, %v2993, 0
  %v3012 = vsel %vm172, %v2994, 0
  %3014 = vmatprep.subr.mxu0 0.0
  %3015 = vmatpush1.msra.mxu0 %v2996
  %3016 = vmatprep.subr.mxu0 0.0
  %3017 = vmatpush1.msra.mxu0 %v2997
  %3018 = vmatprep.subr.mxu0 0.0
  %3019 = vmatpush1.msra.mxu0 %v2998
  %3020 = vmatprep.subr.mxu0 0.0
  %3021 = vmatpush1.msra.mxu0 %v2999
  %3022 = vmatprep.subr.mxu0 0.0
  %3023 = vmatpush1.msra.mxu0 0.0
  %3024 = vmatprep.subr.mxu0 0.0
  %3025 = vmatpush1.msra.mxu0 0.0
  %3026 = vmatprep.subr.mxu0 0.0
  %3027 = vmatpush1.msra.mxu0 0.0
  %3028 = vmatprep.subr.mxu0 0.0
  %3029 = vmatpush1.msra.mxu0 0.0
  %3030 = vmatprep.subr.mxu0 0.0
  %3031 = vmatpush1.msra.mxu0 0.0
  %3032 = vmatprep.subr.mxu0 0.0
  %3033 = vmatpush1.msra.mxu0 0.0
  %3034 = vmatprep.subr.mxu0 0.0
  %3035 = vmatpush1.msra.mxu0 0.0
  %3036 = vmatprep.subr.mxu0 0.0
  %3037 = vmatpush1.msra.mxu0 0.0
  %3038 = vmatprep.subr.mxu0 0.0
  %3039 = vmatpush1.msra.mxu0 0.0
  %3040 = vmatprep.subr.mxu0 0.0
  %3041 = vmatpush1.msra.mxu0 0.0
  %3042 = vmatprep.subr.mxu0 0.0
  %3043 = vmatpush1.msra.mxu0 0.0
  %3044 = vmatprep.subr.mxu0 0.0
  %3045 = vmatpush1.msra.mxu0 0.0
  %3046 = vmatprep.subr.mxu0 0.0
  %3047 = vmatpush1.msra.mxu0 0.0
  %3048 = vmatprep.subr.mxu0 0.0
  %3049 = vmatpush1.msra.mxu0 0.0
  %3050 = vmatprep.subr.mxu0 0.0
  %3051 = vmatpush1.msra.mxu0 0.0
  %3052 = vmatprep.subr.mxu0 0.0
  %3053 = vmatpush1.msra.mxu0 0.0
  %3054 = vmatprep.subr.mxu0 0.0
  %3055 = vmatpush1.msra.mxu0 0.0
  %3056 = vmatprep.subr.mxu0 0.0
  %3057 = vmatpush1.msra.mxu0 0.0
  %3058 = vmatprep.subr.mxu0 0.0
  %3059 = vmatpush1.msra.mxu0 0.0
  %3060 = vmatprep.subr.mxu0 0.0
  %3061 = vmatpush1.msra.mxu0 0.0
  %3062 = vmatprep.subr.mxu0 0.0
  %3063 = vmatpush1.msra.mxu0 0.0
  %3064 = vmatprep.subr.mxu0 0.0
  %3065 = vmatpush1.msra.mxu0 0.0
  %3066 = vmatprep.subr.mxu0 0.0
  %3067 = vmatpush1.msra.mxu0 0.0
  %3068 = vmatprep.subr.mxu0 0.0
  %3069 = vmatpush1.msra.mxu0 0.0
  %3070 = vmatprep.subr.mxu0 0.0
  %3071 = vmatpush1.msra.mxu0 0.0
  %3072 = vmatprep.subr.mxu0 0.0
  %3073 = vmatpush1.msra.mxu0 0.0
  %3074 = vmatprep.subr.mxu0 0.0
  %3075 = vmatpush1.msra.mxu0 0.0
  %3076 = vmatprep.subr.mxu0 0.0
  %3077 = vmatpush1.msra.mxu0 0.0
  %3078 = vmatprep.mubr.f32.mxu0 0.0
  %3079 = vmatmul.mubr.f32.gmra.mrb[0].mxu0 %v3009
  %v3080 = vpop.f32.mrb[0].mxu0
  %v3081 = vadd.f32 %v3006, %v3080
  %v3082 = vpop.f32.mrb[0].mxu0
  %3083 = vmatprep.mubr.f32.mxu0 0.0
  %3084 = vmatmul.mubr.f32.gmra.mrb[0].mxu0 %v3012
  %v3085 = vpop.f32.mrb[0].mxu0
  %v3086 = vadd.f32 %v3006, %v3085
  %v3087 = vpop.f32.mrb[0].mxu0
  %3088 = vdwg.mxu0
  %v3089 = vmax.f32 %v3081, 0.0
  %v3090 = vmax.f32 %v3086, 0.0
  %s3091 = scalar_lea.vmem %s12, 64
  %v3092 = vld [vmem:[%s3091] sm:$0xff]
  %v3093 = vld [vmem:[%s3091 + $0x8] sm:$0xff]
  %v3094 = vld [vmem:[%s3091 + $0x10] sm:$0xff]
  %v3095 = vld [vmem:[%s3091 + $0x18] sm:$0xff]
  %v3096 = vld [vmem:[%s3091 + $0x20] sm:$0xff]
  %v3097 = vld [vmem:[%s3091 + $0x28] sm:$0xff]
  %v3098 = vld [vmem:[%s3091 + $0x30] sm:$0xff]
  %v3099 = vld [vmem:[%s3091 + $0x38] sm:$0xff]
  %v3101 = vsel %vm1559, %v3089, 0
  %v3104 = vsel %vm1559, %v3090, 0
  %3106 = vmatprep.subr.mxu0 0.0
  %3107 = vmatpush1.msra.mxu0 %v3092
  %3108 = vmatprep.subr.mxu0 0.0
  %3109 = vmatpush1.msra.mxu0 %v3093
  %3110 = vmatprep.subr.mxu0 0.0
  %3111 = vmatpush1.msra.mxu0 %v3094
  %3112 = vmatprep.subr.mxu0 0.0
  %3113 = vmatpush1.msra.mxu0 %v3095
  %3114 = vmatprep.subr.mxu0 0.0
  %3115 = vmatpush1.msra.mxu0 %v3096
  %3116 = vmatprep.subr.mxu0 0.0
  %3117 = vmatpush1.msra.mxu0 %v3097
  %3118 = vmatprep.subr.mxu0 0.0
  %3119 = vmatpush1.msra.mxu0 %v3098
  %3120 = vmatprep.subr.mxu0 0.0
  %3121 = vmatpush1.msra.mxu0 %v3099
  %3122 = vmatprep.subr.mxu0 0.0
  %3123 = vmatpush1.msra.mxu0 0.0
  %3124 = vmatprep.subr.mxu0 0.0
  %3125 = vmatpush1.msra.mxu0 0.0
  %3126 = vmatprep.subr.mxu0 0.0
  %3127 = vmatpush1.msra.mxu0 0.0
  %3128 = vmatprep.subr.mxu0 0.0
  %3129 = vmatpush1.msra.mxu0 0.0
  %3130 = vmatprep.subr.mxu0 0.0
  %3131 = vmatpush1.msra.mxu0 0.0
  %3132 = vmatprep.subr.mxu0 0.0
  %3133 = vmatpush1.msra.mxu0 0.0
  %3134 = vmatprep.subr.mxu0 0.0
  %3135 = vmatpush1.msra.mxu0 0.0
  %3136 = vmatprep.subr.mxu0 0.0
  %3137 = vmatpush1.msra.mxu0 0.0
  %3138 = vmatprep.subr.mxu0 0.0
  %3139 = vmatpush1.msra.mxu0 0.0
  %3140 = vmatprep.subr.mxu0 0.0
  %3141 = vmatpush1.msra.mxu0 0.0
  %3142 = vmatprep.subr.mxu0 0.0
  %3143 = vmatpush1.msra.mxu0 0.0
  %3144 = vmatprep.subr.mxu0 0.0
  %3145 = vmatpush1.msra.mxu0 0.0
  %3146 = vmatprep.subr.mxu0 0.0
  %3147 = vmatpush1.msra.mxu0 0.0
  %3148 = vmatprep.subr.mxu0 0.0
  %3149 = vmatpush1.msra.mxu0 0.0
  %3150 = vmatprep.subr.mxu0 0.0
  %3151 = vmatpush1.msra.mxu0 0.0
  %3152 = vmatprep.subr.mxu0 0.0
  %3153 = vmatpush1.msra.mxu0 0.0
  %3154 = vmatprep.subr.mxu0 0.0
  %3155 = vmatpush1.msra.mxu0 0.0
  %3156 = vmatprep.subr.mxu0 0.0
  %3157 = vmatpush1.msra.mxu0 0.0
  %3158 = vmatprep.subr.mxu0 0.0
  %3159 = vmatpush1.msra.mxu0 0.0
  %3160 = vmatprep.subr.mxu0 0.0
  %3161 = vmatpush1.msra.mxu0 0.0
  %3162 = vmatprep.subr.mxu0 0.0
  %3163 = vmatpush1.msra.mxu0 0.0
  %3164 = vmatprep.subr.mxu0 0.0
  %3165 = vmatpush1.msra.mxu0 0.0
  %3166 = vmatprep.subr.mxu0 0.0
  %3167 = vmatpush1.msra.mxu0 0.0
  %3168 = vmatprep.subr.mxu0 0.0
  %3169 = vmatpush1.msra.mxu0 0.0
  %3170 = vmatprep.mubr.f32.mxu0 0.0
  %3171 = vmatmul.mubr.f32.gmra.mrb[0].mxu0 %v3101
  %v3172 = vpop.f32.mrb[0].mxu0
  %v3173 = vadd.f32 0.0, %v3172
  %v3174 = vpop.f32.mrb[0].mxu0
  %3175 = vmatprep.mubr.f32.mxu0 0.0
  %3176 = vmatmul.mubr.f32.gmra.mrb[0].mxu0 %v3104
  %v3177 = vpop.f32.mrb[0].mxu0
  %v3178 = vadd.f32 0.0, %v3177
  %v3179 = vpop.f32.mrb[0].mxu0
  %3180 = vdwg.mxu0
  %v3181 = vadd.f32 %v2993, %v3173
  %v3182 = vadd.f32 %v2994, %v3178
  %s3183 = scalar_lea.vmem %s13, 1
  %v3184 = vld [vmem:[%s3183] sm:$0x1]
  %v3186 = vlaneseq
  %v3187 = vshrl.u32 %v3186, 7
  %v3188 = vsub.s32 0, %v3187
  %v3189 = vrot.slane %v3184, %v3188
  %v3191 = vadd.f32 %v3181, %v3189
  %v3192 = vadd.f32 %v3182, %v3189
  %s3193 = scalar_lea.vmem %s14, 1
  %v3194 = vld [vmem:[%s3193] sm:$0x1]
  %s3195 = scalar_lea.vmem %s15, 1
  %v3196 = vld [vmem:[%s3195] sm:$0x1]
  %v3197 = vsel %vm172, %v3191, 0.0
  %3198 = vadd.xlane.f32.xlu0 %v3197
  %v3199 = vpop.xlane.xlu0 %3198
  %v3200 = vsel %vm172, %v3192, 0.0
  %3201 = vadd.xlane.f32.xlu0 %v3200
  %v3202 = vpop.xlane.xlu0 %3201
  %v3203 = vmul.f32 %v3199, %v1420
  %v3204 = vmul.f32 %v3202, %v1420
  %v3205 = vsub.f32 %v3191, %v3203
  %v3206 = vsub.f32 %v3192, %v3204
  %v3207 = vmul.f32 %v3205, %v3205
  %v3208 = vmul.f32 %v3206, %v3206
  %v3209 = vsel %vm172, %v3207, 0.0
  %3210 = vadd.xlane.f32.xlu0 %v3209
  %v3211 = vpop.xlane.xlu0 %3210
  %v3212 = vsel %vm172, %v3208, 0.0
  %3213 = vadd.xlane.f32.xlu0 %v3212
  %v3214 = vpop.xlane.xlu0 %3213
  %v3215 = vmul.f32 %v3211, %v1420
  %v3216 = vmul.f32 %v3214, %v1420
  %v3217 = vadd.f32 %v3215, 1e-05
  %v3218 = vadd.f32 %v3216, 1e-05
  %v3219 = vrsqrt.pop %v3217
  %v3220 = vrsqrt.pop %v3218
  %v3221 = vmul.f32 %v3205, %v3219
  %v3222 = vmul.f32 %v3206, %v3220
  %v3224 = vlaneseq
  %v3225 = vshrl.u32 %v3224, 7
  %v3226 = vsub.s32 0, %v3225
  %v3227 = vrot.slane %v3194, %v3226
  %v3229 = vmul.f32 %v3221, %v3227
  %v3230 = vmul.f32 %v3222, %v3227
  %v3232 = vlaneseq
  %v3233 = vshrl.u32 %v3232, 7
  %v3234 = vsub.s32 0, %v3233
  %v3235 = vrot.slane %v3196, %v3234
  %v3237 = vadd.f32 %v3229, %v3235
  %v3238 = vadd.f32 %v3230, %v3235
  %v3239 = vld [vmem:[%s16] sm:$0xff]
  %v3240 = vld [vmem:[%s16 + $0x8] sm:$0xff]
  %v3241 = vld [vmem:[%s16 + $0x10] sm:$0xff]
  %v3242 = vld [vmem:[%s16 + $0x18] sm:$0xff]
  %v3243 = vld [vmem:[%s17] sm:$0x1]
  %v3245 = vlaneseq
  %v3246 = vshrl.u32 %v3245, 7
  %v3247 = vsub.s32 0, %v3246
  %v3248 = vrot.slane %v3243, %v3247
  %v3251 = vsel %vm172, %v3237, 0
  %v3254 = vsel %vm172, %v3238, 0
  %3256 = vmatprep.subr.mxu0 0.0
  %3257 = vmatpush1.msra.mxu0 %v3239
  %3258 = vmatprep.subr.mxu0 0.0
  %3259 = vmatpush1.msra.mxu0 %v3240
  %3260 = vmatprep.subr.mxu0 0.0
  %3261 = vmatpush1.msra.mxu0 %v3241
  %3262 = vmatprep.subr.mxu0 0.0
  %3263 = vmatpush1.msra.mxu0 %v3242
  %3264 = vmatprep.subr.mxu0 0.0
  %3265 = vmatpush1.msra.mxu0 0.0
  %3266 = vmatprep.subr.mxu0 0.0
  %3267 = vmatpush1.msra.mxu0 0.0
  %3268 = vmatprep.subr.mxu0 0.0
  %3269 = vmatpush1.msra.mxu0 0.0
  %3270 = vmatprep.subr.mxu0 0.0
  %3271 = vmatpush1.msra.mxu0 0.0
  %3272 = vmatprep.subr.mxu0 0.0
  %3273 = vmatpush1.msra.mxu0 0.0
  %3274 = vmatprep.subr.mxu0 0.0
  %3275 = vmatpush1.msra.mxu0 0.0
  %3276 = vmatprep.subr.mxu0 0.0
  %3277 = vmatpush1.msra.mxu0 0.0
  %3278 = vmatprep.subr.mxu0 0.0
  %3279 = vmatpush1.msra.mxu0 0.0
  %3280 = vmatprep.subr.mxu0 0.0
  %3281 = vmatpush1.msra.mxu0 0.0
  %3282 = vmatprep.subr.mxu0 0.0
  %3283 = vmatpush1.msra.mxu0 0.0
  %3284 = vmatprep.subr.mxu0 0.0
  %3285 = vmatpush1.msra.mxu0 0.0
  %3286 = vmatprep.subr.mxu0 0.0
  %3287 = vmatpush1.msra.mxu0 0.0
  %3288 = vmatprep.subr.mxu0 0.0
  %3289 = vmatpush1.msra.mxu0 0.0
  %3290 = vmatprep.subr.mxu0 0.0
  %3291 = vmatpush1.msra.mxu0 0.0
  %3292 = vmatprep.subr.mxu0 0.0
  %3293 = vmatpush1.msra.mxu0 0.0
  %3294 = vmatprep.subr.mxu0 0.0
  %3295 = vmatpush1.msra.mxu0 0.0
  %3296 = vmatprep.subr.mxu0 0.0
  %3297 = vmatpush1.msra.mxu0 0.0
  %3298 = vmatprep.subr.mxu0 0.0
  %3299 = vmatpush1.msra.mxu0 0.0
  %3300 = vmatprep.subr.mxu0 0.0
  %3301 = vmatpush1.msra.mxu0 0.0
  %3302 = vmatprep.subr.mxu0 0.0
  %3303 = vmatpush1.msra.mxu0 0.0
  %3304 = vmatprep.subr.mxu0 0.0
  %3305 = vmatpush1.msra.mxu0 0.0
  %3306 = vmatprep.subr.mxu0 0.0
  %3307 = vmatpush1.msra.mxu0 0.0
  %3308 = vmatprep.subr.mxu0 0.0
  %3309 = vmatpush1.msra.mxu0 0.0
  %3310 = vmatprep.subr.mxu0 0.0
  %3311 = vmatpush1.msra.mxu0 0.0
  %3312 = vmatprep.subr.mxu0 0.0
  %3313 = vmatpush1.msra.mxu0 0.0
  %3314 = vmatprep.subr.mxu0 0.0
  %3315 = vmatpush1.msra.mxu0 0.0
  %3316 = vmatprep.subr.mxu0 0.0
  %3317 = vmatpush1.msra.mxu0 0.0
  %3318 = vmatprep.subr.mxu0 0.0
  %3319 = vmatpush1.msra.mxu0 0.0
  %3320 = vmatprep.mubr.f32.mxu0 0.0
  %3321 = vmatmul.mubr.f32.gmra.mrb[0].mxu0 %v3251
  %v3322 = vpop.f32.mrb[0].mxu0
  %v3323 = vadd.f32 %v3248, %v3322
  %v3324 = vpop.f32.mrb[0].mxu0
  %3325 = vmatprep.mubr.f32.mxu0 0.0
  %3326 = vmatmul.mubr.f32.gmra.mrb[0].mxu0 %v3254
  %v3327 = vpop.f32.mrb[0].mxu0
  %v3328 = vadd.f32 %v3248, %v3327
  %v3329 = vpop.f32.mrb[0].mxu0
  %3330 = vdwg.mxu0
  %v3331 = vmax.f32 %v3323, 0.0
  %v3332 = vmax.f32 %v3328, 0.0
  %v3333 = vld [vmem:[%s18] sm:$0xff]
  %v3334 = vld [vmem:[%s18 + $0x8] sm:$0xff]
  %v3335 = vld [vmem:[%s18 + $0x10] sm:$0xff]
  %v3336 = vld [vmem:[%s18 + $0x18] sm:$0xff]
  %v3337 = vld [vmem:[%s18 + $0x20] sm:$0xff]
  %v3338 = vld [vmem:[%s18 + $0x28] sm:$0xff]
  %v3339 = vld [vmem:[%s18 + $0x30] sm:$0xff]
  %v3340 = vld [vmem:[%s18 + $0x38] sm:$0xff]
  %v3341 = vld [vmem:[%s18 + $0x40] sm:$0xff]
  %v3342 = vld [vmem:[%s18 + $0x48] sm:$0xff]
  %v3343 = vld [vmem:[%s18 + $0x50] sm:$0xff]
  %v3344 = vld [vmem:[%s18 + $0x58] sm:$0xff]
  %v3345 = vld [vmem:[%s18 + $0x60] sm:$0xff]
  %v3346 = vld [vmem:[%s18 + $0x68] sm:$0xff]
  %v3347 = vld [vmem:[%s18 + $0x70] sm:$0xff]
  %v3348 = vld [vmem:[%s18 + $0x78] sm:$0xff]
  %v3349 = vld [vmem:[%s19] sm:$0x1]
  %v3351 = vlaneseq
  %v3352 = vshrl.u32 %v3351, 7
  %v3353 = vsub.s32 0, %v3352
  %v3354 = vrot.slane %v3349, %v3353
  %3356 = vmatprep.subr.mxu0 0.0
  %3357 = vmatpush1.msra.mxu0 %v3333
  %3358 = vmatprep.subr.mxu0 0.0
  %3359 = vmatpush1.msra.mxu0 %v3334
  %3360 = vmatprep.subr.mxu0 0.0
  %3361 = vmatpush1.msra.mxu0 %v3335
  %3362 = vmatprep.subr.mxu0 0.0
  %3363 = vmatpush1.msra.mxu0 %v3336
  %3364 = vmatprep.subr.mxu0 0.0
  %3365 = vmatpush1.msra.mxu0 %v3337
  %3366 = vmatprep.subr.mxu0 0.0
  %3367 = vmatpush1.msra.mxu0 %v3338
  %3368 = vmatprep.subr.mxu0 0.0
  %3369 = vmatpush1.msra.mxu0 %v3339
  %3370 = vmatprep.subr.mxu0 0.0
  %3371 = vmatpush1.msra.mxu0 %v3340
  %3372 = vmatprep.subr.mxu0 0.0
  %3373 = vmatpush1.msra.mxu0 %v3341
  %3374 = vmatprep.subr.mxu0 0.0
  %3375 = vmatpush1.msra.mxu0 %v3342
  %3376 = vmatprep.subr.mxu0 0.0
  %3377 = vmatpush1.msra.mxu0 %v3343
  %3378 = vmatprep.subr.mxu0 0.0
  %3379 = vmatpush1.msra.mxu0 %v3344
  %3380 = vmatprep.subr.mxu0 0.0
  %3381 = vmatpush1.msra.mxu0 %v3345
  %3382 = vmatprep.subr.mxu0 0.0
  %3383 = vmatpush1.msra.mxu0 %v3346
  %3384 = vmatprep.subr.mxu0 0.0
  %3385 = vmatpush1.msra.mxu0 %v3347
  %3386 = vmatprep.subr.mxu0 0.0
  %3387 = vmatpush1.msra.mxu0 %v3348
  %3388 = vmatprep.subr.mxu0 0.0
  %3389 = vmatpush1.msra.mxu0 0.0
  %3390 = vmatprep.subr.mxu0 0.0
  %3391 = vmatpush1.msra.mxu0 0.0
  %3392 = vmatprep.subr.mxu0 0.0
  %3393 = vmatpush1.msra.mxu0 0.0
  %3394 = vmatprep.subr.mxu0 0.0
  %3395 = vmatpush1.msra.mxu0 0.0
  %3396 = vmatprep.subr.mxu0 0.0
  %3397 = vmatpush1.msra.mxu0 0.0
  %3398 = vmatprep.subr.mxu0 0.0
  %3399 = vmatpush1.msra.mxu0 0.0
  %3400 = vmatprep.subr.mxu0 0.0
  %3401 = vmatpush1.msra.mxu0 0.0
  %3402 = vmatprep.subr.mxu0 0.0
  %3403 = vmatpush1.msra.mxu0 0.0
  %3404 = vmatprep.subr.mxu0 0.0
  %3405 = vmatpush1.msra.mxu0 0.0
  %3406 = vmatprep.subr.mxu0 0.0
  %3407 = vmatpush1.msra.mxu0 0.0
  %3408 = vmatprep.subr.mxu0 0.0
  %3409 = vmatpush1.msra.mxu0 0.0
  %3410 = vmatprep.subr.mxu0 0.0
  %3411 = vmatpush1.msra.mxu0 0.0
  %3412 = vmatprep.subr.mxu0 0.0
  %3413 = vmatpush1.msra.mxu0 0.0
  %3414 = vmatprep.subr.mxu0 0.0
  %3415 = vmatpush1.msra.mxu0 0.0
  %3416 = vmatprep.subr.mxu0 0.0
  %3417 = vmatpush1.msra.mxu0 0.0
  %3418 = vmatprep.subr.mxu0 0.0
  %3419 = vmatpush1.msra.mxu0 0.0
  %3420 = vmatprep.mubr.f32.mxu0 0.0
  %3421 = vmatmul.mubr.f32.gmra.mrb[0].mxu0 %v3331
  %v3422 = vpop.f32.mrb[0].mxu0
  %v3423 = vadd.f32 %v3354, %v3422
  %v3424 = vpop.f32.mrb[0].mxu0
  %3425 = vmatprep.mubr.f32.mxu0 0.0
  %3426 = vmatmul.mubr.f32.gmra.mrb[0].mxu0 %v3332
  %v3427 = vpop.f32.mrb[0].mxu0
  %v3428 = vadd.f32 %v3354, %v3427
  %v3429 = vpop.f32.mrb[0].mxu0
  %3430 = vdwg.mxu0
  %v3431 = vmax.f32 %v3423, 0.0
  %v3432 = vmax.f32 %v3428, 0.0
  %v3433 = vld [vmem:[%s20] sm:$0xff]
  %v3434 = vld [vmem:[%s20 + $0x8] sm:$0xff]
  %v3435 = vld [vmem:[%s20 + $0x10] sm:$0xff]
  %v3436 = vld [vmem:[%s20 + $0x18] sm:$0xff]
  %v3437 = vld [vmem:[%s20 + $0x20] sm:$0xff]
  %v3438 = vld [vmem:[%s20 + $0x28] sm:$0xff]
  %v3439 = vld [vmem:[%s20 + $0x30] sm:$0xff]
  %v3440 = vld [vmem:[%s20 + $0x38] sm:$0xff]
  %v3441 = vld [vmem:[%s21] sm:$0x1]
  %v3443 = vlaneseq
  %v3444 = vshrl.u32 %v3443, 7
  %v3445 = vsub.s32 0, %v3444
  %v3446 = vrot.slane %v3441, %v3445
  %v3449 = vsel %vm1559, %v3431, 0
  %v3452 = vsel %vm1559, %v3432, 0
  %3454 = vmatprep.subr.mxu0 0.0
  %3455 = vmatpush1.msra.mxu0 %v3433
  %3456 = vmatprep.subr.mxu0 0.0
  %3457 = vmatpush1.msra.mxu0 %v3434
  %3458 = vmatprep.subr.mxu0 0.0
  %3459 = vmatpush1.msra.mxu0 %v3435
  %3460 = vmatprep.subr.mxu0 0.0
  %3461 = vmatpush1.msra.mxu0 %v3436
  %3462 = vmatprep.subr.mxu0 0.0
  %3463 = vmatpush1.msra.mxu0 %v3437
  %3464 = vmatprep.subr.mxu0 0.0
  %3465 = vmatpush1.msra.mxu0 %v3438
  %3466 = vmatprep.subr.mxu0 0.0
  %3467 = vmatpush1.msra.mxu0 %v3439
  %3468 = vmatprep.subr.mxu0 0.0
  %3469 = vmatpush1.msra.mxu0 %v3440
  %3470 = vmatprep.subr.mxu0 0.0
  %3471 = vmatpush1.msra.mxu0 0.0
  %3472 = vmatprep.subr.mxu0 0.0
  %3473 = vmatpush1.msra.mxu0 0.0
  %3474 = vmatprep.subr.mxu0 0.0
  %3475 = vmatpush1.msra.mxu0 0.0
  %3476 = vmatprep.subr.mxu0 0.0
  %3477 = vmatpush1.msra.mxu0 0.0
  %3478 = vmatprep.subr.mxu0 0.0
  %3479 = vmatpush1.msra.mxu0 0.0
  %3480 = vmatprep.subr.mxu0 0.0
  %3481 = vmatpush1.msra.mxu0 0.0
  %3482 = vmatprep.subr.mxu0 0.0
  %3483 = vmatpush1.msra.mxu0 0.0
  %3484 = vmatprep.subr.mxu0 0.0
  %3485 = vmatpush1.msra.mxu0 0.0
  %3486 = vmatprep.subr.mxu0 0.0
  %3487 = vmatpush1.msra.mxu0 0.0
  %3488 = vmatprep.subr.mxu0 0.0
  %3489 = vmatpush1.msra.mxu0 0.0
  %3490 = vmatprep.subr.mxu0 0.0
  %3491 = vmatpush1.msra.mxu0 0.0
  %3492 = vmatprep.subr.mxu0 0.0
  %3493 = vmatpush1.msra.mxu0 0.0
  %3494 = vmatprep.subr.mxu0 0.0
  %3495 = vmatpush1.msra.mxu0 0.0
  %3496 = vmatprep.subr.mxu0 0.0
  %3497 = vmatpush1.msra.mxu0 0.0
  %3498 = vmatprep.subr.mxu0 0.0
  %3499 = vmatpush1.msra.mxu0 0.0
  %3500 = vmatprep.subr.mxu0 0.0
  %3501 = vmatpush1.msra.mxu0 0.0
  %3502 = vmatprep.subr.mxu0 0.0
  %3503 = vmatpush1.msra.mxu0 0.0
  %3504 = vmatprep.subr.mxu0 0.0
  %3505 = vmatpush1.msra.mxu0 0.0
  %3506 = vmatprep.subr.mxu0 0.0
  %3507 = vmatpush1.msra.mxu0 0.0
  %3508 = vmatprep.subr.mxu0 0.0
  %3509 = vmatpush1.msra.mxu0 0.0
  %3510 = vmatprep.subr.mxu0 0.0
  %3511 = vmatpush1.msra.mxu0 0.0
  %3512 = vmatprep.subr.mxu0 0.0
  %3513 = vmatpush1.msra.mxu0 0.0
  %3514 = vmatprep.subr.mxu0 0.0
  %3515 = vmatpush1.msra.mxu0 0.0
  %3516 = vmatprep.subr.mxu0 0.0
  %3517 = vmatpush1.msra.mxu0 0.0
  %3518 = vmatprep.mubr.f32.mxu0 0.0
  %3519 = vmatmul.mubr.f32.gmra.mrb[0].mxu0 %v3449
  %v3520 = vpop.f32.mrb[0].mxu0
  %v3521 = vadd.f32 %v3446, %v3520
  %v3522 = vpop.f32.mrb[0].mxu0
  %3523 = vmatprep.mubr.f32.mxu0 0.0
  %3524 = vmatmul.mubr.f32.gmra.mrb[0].mxu0 %v3452
  %v3525 = vpop.f32.mrb[0].mxu0
  %v3526 = vadd.f32 %v3446, %v3525
  %v3527 = vpop.f32.mrb[0].mxu0
  %3528 = vdwg.mxu0
  %v3529 = vtanh.pop %v3521
  %v3530 = vtanh.pop %v3526
  %3531 = vst [vmem:[%s22] sm:$0xff] %v3529
  %3532 = vst [vmem:[%s22 + $0x8] sm:$0xff] %v3530
  // Predicated region
  $region90: #{_lambda_.1} parent=0 // pred_check
    _
  $region91: #{_lambda_.1} parent=0 // pred_check_branch
    %3534 = sbr.rel (0) target = $region93
  $region92: #{_lambda_.1} parent=0 // pred_region
    _
  $region93: #{_lambda_.1} parent=0 // pred_fallthru
    _
  // Predicated region
  $region94: #{_lambda_.1} parent=0 // pred_check
    _
  $region95: #{_lambda_.1} parent=0 // pred_check_branch
    %3536 = sbr.rel (0) target = $region97
  $region96: #{_lambda_.1} parent=0 // pred_region
    _
  $region97: #{_lambda_.1} parent=0 // pred_fallthru
    _

</llo_original>
